<compile_context>
chip_gen: v5e
topology: v5e:2x2
jax: 0.10.0
libtpu: 0.0.40
codegen_flags: <defaults>
</compile_context>

<pallas_src>
import functools

import jax
import jax.numpy as jnp
import numpy as np
from jax.experimental import pallas as pl
from jax.experimental.pallas import tpu as pltpu


_SEM_POOL = 16  # row DMAs round-robin over a fixed semaphore pool per slot


def _round_up(x, m):
    return (x + m - 1) // m * m


def _gather_kernel(ids_ref, w_hbm, out_ref, rows_vmem, sems):
    """Grid step i: drain tile i's rows, having already issued tile i+1."""
    tn = out_ref.shape[0]
    i = pl.program_id(0)
    nsteps = pl.num_programs(0)
    slot = i % 2
    pool = sems.shape[1]

    def issue(tile, slot_idx):
        base = tile * tn
        for j in range(tn):
            row = ids_ref[base + j]            # SMEM scalar read (DMA address)
            pltpu.make_async_copy(
                w_hbm.at[row],
                rows_vmem.at[slot_idx, j],
                sems.at[slot_idx, j % pool]).start()

    # Prime the pipeline with tile 0 on the first step.
    @pl.when(i == 0)
    def _():
        issue(0, 0)

    # Issue tile i+1's row DMAs BEFORE any .wait(): keeps the SMEM scalar
    # (address) reads off the critical path and overlaps the next tile's HBM
    # latency with this tile's drain + store + output writeback.
    @pl.when(i + 1 < nsteps)
    def _():
        issue(i + 1, 1 - slot)

    # Drain this tile's row DMAs (wait-descriptor trick: same-shaped src).
    for j in range(tn):
        pltpu.make_async_copy(
            w_hbm.at[0],
            rows_vmem.at[slot, j],
            sems.at[slot, j % pool]).wait()

    # Masked / padded tokens were mapped to the appended all-zero row, so no
    # mask multiply is needed; this is a cheap VMEM->VMEM copy and the HBM
    # writeback of out_ref is pipelined by Pallas.
    out_ref[...] = rows_vmem[slot]


@functools.partial(jax.jit, static_argnames=("vocab_start", "tn"))
def vocab_parallel_embedding(ids, weight, *, vocab_start=0, tn=128):
    """ids: (B, S) int; weight: (V_part, D) -> (B, S, D) in weight.dtype."""
    B, S = ids.shape
    v_part, d = weight.shape
    itemsize = int(np.dtype(weight.dtype).itemsize)

    # Minimum sublane tile per dtype: f32 -> 8, bf16 -> 16, int8/fp8 -> 32.
    min_sublane = max(8, 32 // itemsize)

    n = B * S

    # Generation-aware VMEM budget (v7x: 64 MiB/TC, v5e/v6e: 128 MiB).
    try:
        vmem_cap = int(pltpu.get_tpu_info().vmem_capacity_bytes)
    except Exception:
        vmem_cap = 64 << 20  # conservative (v7x-sized) fallback

    # Working set per step: (2, tn, d) gather scratch + Pallas-double-buffered
    # (tn, d) output tile ~= 4 * tn * d bytes.  Clamp tn to the token count
    # (sublane-rounded) and to a fraction of VMEM with headroom.
    tn = max(min_sublane, min(int(tn), _round_up(n, min_sublane)))
    tn = _round_up(tn, min_sublane)
    max_work_bytes = int(0.55 * vmem_cap)
    while tn > min_sublane and 4 * tn * d * itemsize > max_work_bytes:
        tn = max(min_sublane, _round_up(tn // 2, min_sublane))

    n_pad = _round_up(n, tn)

    ids_flat = ids.reshape(-1).astype(jnp.int32)
    in_range = (ids_flat >= vocab_start) & (ids_flat < vocab_start + v_part)
    # Out-of-partition tokens -> index v_part (the appended all-zero row);
    # grid-padding slots also point there.
    ids_local = jnp.where(in_range, ids_flat - vocab_start, v_part)
    ids_local = jnp.pad(ids_local, (0, n_pad - n), constant_values=v_part)

    # TODO(synk): in production pre-pad the table once at init instead of
    # concatenating the zero row on every call.
    weight_z = jnp.concatenate(
        [weight, jnp.zeros((1, d), weight.dtype)], axis=0)

    needed = 4 * tn * d * itemsize + (4 << 20)
    vmem_limit = int(min(max(needed, 32 << 20), int(0.7 * vmem_cap)))

    out_flat = pl.pallas_call(
        _gather_kernel,
        out_shape=jax.ShapeDtypeStruct((n_pad, d), weight.dtype),
        grid_spec=pltpu.PrefetchScalarGridSpec(
            num_scalar_prefetch=1,                       # clamped ids -> SMEM
            grid=(n_pad // tn,),
            in_specs=[pl.BlockSpec(memory_space=pl.ANY)],  # weight stays in HBM
            out_specs=pl.BlockSpec((tn, d), lambda i, *_: (i, 0)),
            scratch_shapes=[
                pltpu.VMEM((2, tn, d), weight.dtype),      # double-buffered rows
                pltpu.SemaphoreType.DMA((2, min(tn, _SEM_POOL))),
            ],
        ),
        compiler_params=pltpu.CompilerParams(
            # Cross-step issue-ahead carries state in scratch, so the token
            # axis must run sequentially; a megacore ("parallel") split would
            # break the pipeline priming.  TODO(synk): per-core pipelines.
            dimension_semantics=("arbitrary",),
            vmem_limit_bytes=vmem_limit,
        ),
    )(ids_local, weight_z)

    # _reduce / reduce_from_model_parallel_region: identity for world_size == 1.
    return out_flat[:n].reshape(B, S, d)


if __name__ == "__main__":
    # Module config (world_size = 1 -> full vocab on this "partition").
    num_embeddings = 128      # V
    embedding_dim = 128       # D (multiple of 128 -> lane-dense output stores)
    pad_id = 0                # padding_idx (forward output unaffected by it)
    vocab_start, vocab_end = 0, num_embeddings

    # Deterministic "init_method": scaled normal weights.
    key = jax.random.PRNGKey(0)
    k_w, k_ids = jax.random.split(key)
    weight = 0.02 * jax.random.normal(
        k_w, (num_embeddings, embedding_dim), dtype=jnp.float32)

    # Small example input: batch=2, seq=8 token ids, including an
    # out-of-partition id (must map to an all-zero row) and the pad id.
    B, S = 2, 8
    ids = jax.random.randint(k_ids, (B, S), minval=0,
                             maxval=num_embeddings, dtype=jnp.int32)
    ids = ids.at[0, 0].set(num_embeddings + 5)   # out of range -> zero row
    ids = ids.at[1, 3].set(pad_id)

    out = vocab_parallel_embedding(ids, weight, vocab_start=vocab_start, tn=128)
    out = jax.block_until_ready(out)

    # Pure-JAX reference of the PyTorch forward semantics.
    mask = (ids < vocab_start) | (ids >= vocab_end)
    masked = jnp.where(mask, 0, ids - vocab_start)
    ref = weight[masked]
    ref = jnp.where(mask[..., None], 0.0, ref)

    assert out.shape == (B, S, embedding_dim)
    assert out.dtype == jnp.float32
    assert jnp.allclose(out, ref, atol=0.0), "mismatch vs reference"
    print("KERNEL_OK")
</pallas_src>

<mosaic_0001>
module attributes {stable_mosaic.version = 11 : i64} {
  func.func @_gather_kernel(%arg0: i32, %arg1: memref<16xi32, #tpu.memory_space<smem>>, %arg2: memref<129x128xf32, #tpu.memory_space<any>>, %arg3: memref<16x128xf32, #tpu.memory_space<vmem>>, %arg4: memref<2x16x128xf32, #tpu.memory_space<vmem>>, %arg5: memref<2x16x!tpu.dma_semaphore, #tpu.memory_space<semaphore_mem>>) attributes {dimension_semantics = [#tpu.dimension_semantics<arbitrary>], iteration_bounds = array<i64: 1>, scalar_prefetch = 1 : i64, scratch_operands = 2 : i64, tpu.core_type = #tpu.core_type<tc>, window_params = [{}, {transform_indices = @transform_1, window_bounds = array<i64: 16, 128>}]} {
    %c2_i32 = arith.constant 2 : i32
    %c0_i32 = arith.constant 0 : i32
    %0 = arith.cmpi eq, %c2_i32, %c0_i32 : i32
    %c1_i32 = arith.constant 1 : i32
    %1 = arith.select %0, %c1_i32, %c2_i32 : i32
    %2 = arith.remsi %arg0, %1 : i32
    %c0_i32_0 = arith.constant 0 : i32
    %3 = arith.cmpi ne, %2, %c0_i32_0 : i32
    %c0_i32_1 = arith.constant 0 : i32
    %4 = arith.cmpi slt, %2, %c0_i32_1 : i32
    %c0_i32_2 = arith.constant 0 : i32
    %5 = arith.cmpi slt, %1, %c0_i32_2 : i32
    %6 = arith.xori %4, %5 : i1
    %7 = arith.andi %6, %3 : i1
    %8 = arith.addi %2, %1 : i32
    %9 = arith.select %7, %8, %2 : i32
    %c0_i32_3 = arith.constant 0 : i32
    %10 = arith.cmpi eq, %arg0, %c0_i32_3 : i32
    %11 = arith.extui %10 : i1 to i32
    %c0_i32_4 = arith.constant 0 : i32
    %12 = arith.cmpi ne, %11, %c0_i32_4 : i32
    scf.if %12 {
      %c0_78 = arith.constant 0 : index
      %117 = memref.load %arg1[%c0_78] : memref<16xi32, #tpu.memory_space<smem>>
      %c0_i32_79 = arith.constant 0 : i32
      %c0_i32_80 = arith.constant 0 : i32
      %c0_i32_81 = arith.constant 0 : i32
      %c0_i32_82 = arith.constant 0 : i32
      %c0_i32_83 = arith.constant 0 : i32
      %118 = tpu.memref_slice %arg2[%117, %c0_i32_83] : memref<129x128xf32, #tpu.memory_space<any>> -> memref<1x128xf32, #tpu.memory_space<any>>
      %119 = tpu.memref_squeeze %118 : memref<1x128xf32, #tpu.memory_space<any>> -> memref<128xf32, #tpu.memory_space<any>>
      %c0_i32_84 = arith.constant 0 : i32
      %120 = tpu.memref_slice %arg4[%c0_i32_79, %c0_i32_80, %c0_i32_84] : memref<2x16x128xf32, #tpu.memory_space<vmem>> -> memref<1x1x128xf32, #tpu.memory_space<vmem>>
      %121 = tpu.memref_squeeze %120 : memref<1x1x128xf32, #tpu.memory_space<vmem>> -> memref<128xf32, #tpu.memory_space<vmem>>
      %122 = tpu.memref_slice %arg5[%c0_i32_81, %c0_i32_82] : memref<2x16x!tpu.dma_semaphore, #tpu.memory_space<semaphore_mem>> -> memref<1x1x!tpu.dma_semaphore, #tpu.memory_space<semaphore_mem>>
      %123 = tpu.memref_squeeze %122 : memref<1x1x!tpu.dma_semaphore, #tpu.memory_space<semaphore_mem>> -> memref<!tpu.dma_semaphore, #tpu.memory_space<semaphore_mem>>
      tpu.enqueue_dma source(%119 : memref<128xf32, #tpu.memory_space<any>>) target(%121 : memref<128xf32, #tpu.memory_space<vmem>>) target_semaphore(%123 : memref<!tpu.dma_semaphore, #tpu.memory_space<semaphore_mem>>)
      %c1 = arith.constant 1 : index
      %124 = memref.load %arg1[%c1] : memref<16xi32, #tpu.memory_space<smem>>
      %c0_i32_85 = arith.constant 0 : i32
      %c1_i32_86 = arith.constant 1 : i32
      %c0_i32_87 = arith.constant 0 : i32
      %c1_i32_88 = arith.constant 1 : i32
      %c0_i32_89 = arith.constant 0 : i32
      %125 = tpu.memref_slice %arg2[%124, %c0_i32_89] : memref<129x128xf32, #tpu.memory_space<any>> -> memref<1x128xf32, #tpu.memory_space<any>>
      %126 = tpu.memref_squeeze %125 : memref<1x128xf32, #tpu.memory_space<any>> -> memref<128xf32, #tpu.memory_space<any>>
      %c0_i32_90 = arith.constant 0 : i32
      %127 = tpu.memref_slice %arg4[%c0_i32_85, %c1_i32_86, %c0_i32_90] : memref<2x16x128xf32, #tpu.memory_space<vmem>> -> memref<1x1x128xf32, #tpu.memory_space<vmem>>
      %128 = tpu.memref_squeeze %127 : memref<1x1x128xf32, #tpu.memory_space<vmem>> -> memref<128xf32, #tpu.memory_space<vmem>>
      %129 = tpu.memref_slice %arg5[%c0_i32_87, %c1_i32_88] : memref<2x16x!tpu.dma_semaphore, #tpu.memory_space<semaphore_mem>> -> memref<1x1x!tpu.dma_semaphore, #tpu.memory_space<semaphore_mem>>
      %130 = tpu.memref_squeeze %129 : memref<1x1x!tpu.dma_semaphore, #tpu.memory_space<semaphore_mem>> -> memref<!tpu.dma_semaphore, #tpu.memory_space<semaphore_mem>>
      tpu.enqueue_dma source(%126 : memref<128xf32, #tpu.memory_space<any>>) target(%128 : memref<128xf32, #tpu.memory_space<vmem>>) target_semaphore(%130 : memref<!tpu.dma_semaphore, #tpu.memory_space<semaphore_mem>>)
      %c2 = arith.constant 2 : index
      %131 = memref.load %arg1[%c2] : memref<16xi32, #tpu.memory_space<smem>>
      %c0_i32_91 = arith.constant 0 : i32
      %c2_i32_92 = arith.constant 2 : i32
      %c0_i32_93 = arith.constant 0 : i32
      %c2_i32_94 = arith.constant 2 : i32
      %c0_i32_95 = arith.constant 0 : i32
      %132 = tpu.memref_slice %arg2[%131, %c0_i32_95] : memref<129x128xf32, #tpu.memory_space<any>> -> memref<1x128xf32, #tpu.memory_space<any>>
      %133 = tpu.memref_squeeze %132 : memref<1x128xf32, #tpu.memory_space<any>> -> memref<128xf32, #tpu.memory_space<any>>
      %c0_i32_96 = arith.constant 0 : i32
      %134 = tpu.memref_slice %arg4[%c0_i32_91, %c2_i32_92, %c0_i32_96] : memref<2x16x128xf32, #tpu.memory_space<vmem>> -> memref<1x1x128xf32, #tpu.memory_space<vmem>>
      %135 = tpu.memref_squeeze %134 : memref<1x1x128xf32, #tpu.memory_space<vmem>> -> memref<128xf32, #tpu.memory_space<vmem>>
      %136 = tpu.memref_slice %arg5[%c0_i32_93, %c2_i32_94] : memref<2x16x!tpu.dma_semaphore, #tpu.memory_space<semaphore_mem>> -> memref<1x1x!tpu.dma_semaphore, #tpu.memory_space<semaphore_mem>>
      %137 = tpu.memref_squeeze %136 : memref<1x1x!tpu.dma_semaphore, #tpu.memory_space<semaphore_mem>> -> memref<!tpu.dma_semaphore, #tpu.memory_space<semaphore_mem>>
      tpu.enqueue_dma source(%133 : memref<128xf32, #tpu.memory_space<any>>) target(%135 : memref<128xf32, #tpu.memory_space<vmem>>) target_semaphore(%137 : memref<!tpu.dma_semaphore, #tpu.memory_space<semaphore_mem>>)
      %c3 = arith.constant 3 : index
      %138 = memref.load %arg1[%c3] : memref<16xi32, #tpu.memory_space<smem>>
      %c0_i32_97 = arith.constant 0 : i32
      %c3_i32_98 = arith.constant 3 : i32
      %c0_i32_99 = arith.constant 0 : i32
      %c3_i32_100 = arith.constant 3 : i32
      %c0_i32_101 = arith.constant 0 : i32
      %139 = tpu.memref_slice %arg2[%138, %c0_i32_101] : memref<129x128xf32, #tpu.memory_space<any>> -> memref<1x128xf32, #tpu.memory_space<any>>
      %140 = tpu.memref_squeeze %139 : memref<1x128xf32, #tpu.memory_space<any>> -> memref<128xf32, #tpu.memory_space<any>>
      %c0_i32_102 = arith.constant 0 : i32
      %141 = tpu.memref_slice %arg4[%c0_i32_97, %c3_i32_98, %c0_i32_102] : memref<2x16x128xf32, #tpu.memory_space<vmem>> -> memref<1x1x128xf32, #tpu.memory_space<vmem>>
      %142 = tpu.memref_squeeze %141 : memref<1x1x128xf32, #tpu.memory_space<vmem>> -> memref<128xf32, #tpu.memory_space<vmem>>
      %143 = tpu.memref_slice %arg5[%c0_i32_99, %c3_i32_100] : memref<2x16x!tpu.dma_semaphore, #tpu.memory_space<semaphore_mem>> -> memref<1x1x!tpu.dma_semaphore, #tpu.memory_space<semaphore_mem>>
      %144 = tpu.memref_squeeze %143 : memref<1x1x!tpu.dma_semaphore, #tpu.memory_space<semaphore_mem>> -> memref<!tpu.dma_semaphore, #tpu.memory_space<semaphore_mem>>
      tpu.enqueue_dma source(%140 : memref<128xf32, #tpu.memory_space<any>>) target(%142 : memref<128xf32, #tpu.memory_space<vmem>>) target_semaphore(%144 : memref<!tpu.dma_semaphore, #tpu.memory_space<semaphore_mem>>)
      %c4 = arith.constant 4 : index
      %145 = memref.load %arg1[%c4] : memref<16xi32, #tpu.memory_space<smem>>
      %c0_i32_103 = arith.constant 0 : i32
      %c4_i32_104 = arith.constant 4 : i32
      %c0_i32_105 = arith.constant 0 : i32
      %c4_i32_106 = arith.constant 4 : i32
      %c0_i32_107 = arith.constant 0 : i32
      %146 = tpu.memref_slice %arg2[%145, %c0_i32_107] : memref<129x128xf32, #tpu.memory_space<any>> -> memref<1x128xf32, #tpu.memory_space<any>>
      %147 = tpu.memref_squeeze %146 : memref<1x128xf32, #tpu.memory_space<any>> -> memref<128xf32, #tpu.memory_space<any>>
      %c0_i32_108 = arith.constant 0 : i32
      %148 = tpu.memref_slice %arg4[%c0_i32_103, %c4_i32_104, %c0_i32_108] : memref<2x16x128xf32, #tpu.memory_space<vmem>> -> memref<1x1x128xf32, #tpu.memory_space<vmem>>
      %149 = tpu.memref_squeeze %148 : memref<1x1x128xf32, #tpu.memory_space<vmem>> -> memref<128xf32, #tpu.memory_space<vmem>>
      %150 = tpu.memref_slice %arg5[%c0_i32_105, %c4_i32_106] : memref<2x16x!tpu.dma_semaphore, #tpu.memory_space<semaphore_mem>> -> memref<1x1x!tpu.dma_semaphore, #tpu.memory_space<semaphore_mem>>
      %151 = tpu.memref_squeeze %150 : memref<1x1x!tpu.dma_semaphore, #tpu.memory_space<semaphore_mem>> -> memref<!tpu.dma_semaphore, #tpu.memory_space<semaphore_mem>>
      tpu.enqueue_dma source(%147 : memref<128xf32, #tpu.memory_space<any>>) target(%149 : memref<128xf32, #tpu.memory_space<vmem>>) target_semaphore(%151 : memref<!tpu.dma_semaphore, #tpu.memory_space<semaphore_mem>>)
      %c5 = arith.constant 5 : index
      %152 = memref.load %arg1[%c5] : memref<16xi32, #tpu.memory_space<smem>>
      %c0_i32_109 = arith.constant 0 : i32
      %c5_i32_110 = arith.constant 5 : i32
      %c0_i32_111 = arith.constant 0 : i32
      %c5_i32_112 = arith.constant 5 : i32
      %c0_i32_113 = arith.constant 0 : i32
      %153 = tpu.memref_slice %arg2[%152, %c0_i32_113] : memref<129x128xf32, #tpu.memory_space<any>> -> memref<1x128xf32, #tpu.memory_space<any>>
      %154 = tpu.memref_squeeze %153 : memref<1x128xf32, #tpu.memory_space<any>> -> memref<128xf32, #tpu.memory_space<any>>
      %c0_i32_114 = arith.constant 0 : i32
      %155 = tpu.memref_slice %arg4[%c0_i32_109, %c5_i32_110, %c0_i32_114] : memref<2x16x128xf32, #tpu.memory_space<vmem>> -> memref<1x1x128xf32, #tpu.memory_space<vmem>>
      %156 = tpu.memref_squeeze %155 : memref<1x1x128xf32, #tpu.memory_space<vmem>> -> memref<128xf32, #tpu.memory_space<vmem>>
      %157 = tpu.memref_slice %arg5[%c0_i32_111, %c5_i32_112] : memref<2x16x!tpu.dma_semaphore, #tpu.memory_space<semaphore_mem>> -> memref<1x1x!tpu.dma_semaphore, #tpu.memory_space<semaphore_mem>>
      %158 = tpu.memref_squeeze %157 : memref<1x1x!tpu.dma_semaphore, #tpu.memory_space<semaphore_mem>> -> memref<!tpu.dma_semaphore, #tpu.memory_space<semaphore_mem>>
      tpu.enqueue_dma source(%154 : memref<128xf32, #tpu.memory_space<any>>) target(%156 : memref<128xf32, #tpu.memory_space<vmem>>) target_semaphore(%158 : memref<!tpu.dma_semaphore, #tpu.memory_space<semaphore_mem>>)
      %c6 = arith.constant 6 : index
      %159 = memref.load %arg1[%c6] : memref<16xi32, #tpu.memory_space<smem>>
      %c0_i32_115 = arith.constant 0 : i32
      %c6_i32_116 = arith.constant 6 : i32
      %c0_i32_117 = arith.constant 0 : i32
      %c6_i32_118 = arith.constant 6 : i32
      %c0_i32_119 = arith.constant 0 : i32
      %160 = tpu.memref_slice %arg2[%159, %c0_i32_119] : memref<129x128xf32, #tpu.memory_space<any>> -> memref<1x128xf32, #tpu.memory_space<any>>
      %161 = tpu.memref_squeeze %160 : memref<1x128xf32, #tpu.memory_space<any>> -> memref<128xf32, #tpu.memory_space<any>>
      %c0_i32_120 = arith.constant 0 : i32
      %162 = tpu.memref_slice %arg4[%c0_i32_115, %c6_i32_116, %c0_i32_120] : memref<2x16x128xf32, #tpu.memory_space<vmem>> -> memref<1x1x128xf32, #tpu.memory_space<vmem>>
      %163 = tpu.memref_squeeze %162 : memref<1x1x128xf32, #tpu.memory_space<vmem>> -> memref<128xf32, #tpu.memory_space<vmem>>
      %164 = tpu.memref_slice %arg5[%c0_i32_117, %c6_i32_118] : memref<2x16x!tpu.dma_semaphore, #tpu.memory_space<semaphore_mem>> -> memref<1x1x!tpu.dma_semaphore, #tpu.memory_space<semaphore_mem>>
      %165 = tpu.memref_squeeze %164 : memref<1x1x!tpu.dma_semaphore, #tpu.memory_space<semaphore_mem>> -> memref<!tpu.dma_semaphore, #tpu.memory_space<semaphore_mem>>
      tpu.enqueue_dma source(%161 : memref<128xf32, #tpu.memory_space<any>>) target(%163 : memref<128xf32, #tpu.memory_space<vmem>>) target_semaphore(%165 : memref<!tpu.dma_semaphore, #tpu.memory_space<semaphore_mem>>)
      %c7 = arith.constant 7 : index
      %166 = memref.load %arg1[%c7] : memref<16xi32, #tpu.memory_space<smem>>
      %c0_i32_121 = arith.constant 0 : i32
      %c7_i32_122 = arith.constant 7 : i32
      %c0_i32_123 = arith.constant 0 : i32
      %c7_i32_124 = arith.constant 7 : i32
      %c0_i32_125 = arith.constant 0 : i32
      %167 = tpu.memref_slice %arg2[%166, %c0_i32_125] : memref<129x128xf32, #tpu.memory_space<any>> -> memref<1x128xf32, #tpu.memory_space<any>>
      %168 = tpu.memref_squeeze %167 : memref<1x128xf32, #tpu.memory_space<any>> -> memref<128xf32, #tpu.memory_space<any>>
      %c0_i32_126 = arith.constant 0 : i32
      %169 = tpu.memref_slice %arg4[%c0_i32_121, %c7_i32_122, %c0_i32_126] : memref<2x16x128xf32, #tpu.memory_space<vmem>> -> memref<1x1x128xf32, #tpu.memory_space<vmem>>
      %170 = tpu.memref_squeeze %169 : memref<1x1x128xf32, #tpu.memory_space<vmem>> -> memref<128xf32, #tpu.memory_space<vmem>>
      %171 = tpu.memref_slice %arg5[%c0_i32_123, %c7_i32_124] : memref<2x16x!tpu.dma_semaphore, #tpu.memory_space<semaphore_mem>> -> memref<1x1x!tpu.dma_semaphore, #tpu.memory_space<semaphore_mem>>
      %172 = tpu.memref_squeeze %171 : memref<1x1x!tpu.dma_semaphore, #tpu.memory_space<semaphore_mem>> -> memref<!tpu.dma_semaphore, #tpu.memory_space<semaphore_mem>>
      tpu.enqueue_dma source(%168 : memref<128xf32, #tpu.memory_space<any>>) target(%170 : memref<128xf32, #tpu.memory_space<vmem>>) target_semaphore(%172 : memref<!tpu.dma_semaphore, #tpu.memory_space<semaphore_mem>>)
      %c8 = arith.constant 8 : index
      %173 = memref.load %arg1[%c8] : memref<16xi32, #tpu.memory_space<smem>>
      %c0_i32_127 = arith.constant 0 : i32
      %c8_i32_128 = arith.constant 8 : i32
      %c0_i32_129 = arith.constant 0 : i32
      %c8_i32_130 = arith.constant 8 : i32
      %c0_i32_131 = arith.constant 0 : i32
      %174 = tpu.memref_slice %arg2[%173, %c0_i32_131] : memref<129x128xf32, #tpu.memory_space<any>> -> memref<1x128xf32, #tpu.memory_space<any>>
      %175 = tpu.memref_squeeze %174 : memref<1x128xf32, #tpu.memory_space<any>> -> memref<128xf32, #tpu.memory_space<any>>
      %c0_i32_132 = arith.constant 0 : i32
      %176 = tpu.memref_slice %arg4[%c0_i32_127, %c8_i32_128, %c0_i32_132] : memref<2x16x128xf32, #tpu.memory_space<vmem>> -> memref<1x1x128xf32, #tpu.memory_space<vmem>>
      %177 = tpu.memref_squeeze %176 : memref<1x1x128xf32, #tpu.memory_space<vmem>> -> memref<128xf32, #tpu.memory_space<vmem>>
      %178 = tpu.memref_slice %arg5[%c0_i32_129, %c8_i32_130] : memref<2x16x!tpu.dma_semaphore, #tpu.memory_space<semaphore_mem>> -> memref<1x1x!tpu.dma_semaphore, #tpu.memory_space<semaphore_mem>>
      %179 = tpu.memref_squeeze %178 : memref<1x1x!tpu.dma_semaphore, #tpu.memory_space<semaphore_mem>> -> memref<!tpu.dma_semaphore, #tpu.memory_space<semaphore_mem>>
      tpu.enqueue_dma source(%175 : memref<128xf32, #tpu.memory_space<any>>) target(%177 : memref<128xf32, #tpu.memory_space<vmem>>) target_semaphore(%179 : memref<!tpu.dma_semaphore, #tpu.memory_space<semaphore_mem>>)
      %c9 = arith.constant 9 : index
      %180 = memref.load %arg1[%c9] : memref<16xi32, #tpu.memory_space<smem>>
      %c0_i32_133 = arith.constant 0 : i32
      %c9_i32_134 = arith.constant 9 : i32
      %c0_i32_135 = arith.constant 0 : i32
      %c9_i32_136 = arith.constant 9 : i32
      %c0_i32_137 = arith.constant 0 : i32
      %181 = tpu.memref_slice %arg2[%180, %c0_i32_137] : memref<129x128xf32, #tpu.memory_space<any>> -> memref<1x128xf32, #tpu.memory_space<any>>
      %182 = tpu.memref_squeeze %181 : memref<1x128xf32, #tpu.memory_space<any>> -> memref<128xf32, #tpu.memory_space<any>>
      %c0_i32_138 = arith.constant 0 : i32
      %183 = tpu.memref_slice %arg4[%c0_i32_133, %c9_i32_134, %c0_i32_138] : memref<2x16x128xf32, #tpu.memory_space<vmem>> -> memref<1x1x128xf32, #tpu.memory_space<vmem>>
      %184 = tpu.memref_squeeze %183 : memref<1x1x128xf32, #tpu.memory_space<vmem>> -> memref<128xf32, #tpu.memory_space<vmem>>
      %185 = tpu.memref_slice %arg5[%c0_i32_135, %c9_i32_136] : memref<2x16x!tpu.dma_semaphore, #tpu.memory_space<semaphore_mem>> -> memref<1x1x!tpu.dma_semaphore, #tpu.memory_space<semaphore_mem>>
      %186 = tpu.memref_squeeze %185 : memref<1x1x!tpu.dma_semaphore, #tpu.memory_space<semaphore_mem>> -> memref<!tpu.dma_semaphore, #tpu.memory_space<semaphore_mem>>
      tpu.enqueue_dma source(%182 : memref<128xf32, #tpu.memory_space<any>>) target(%184 : memref<128xf32, #tpu.memory_space<vmem>>) target_semaphore(%186 : memref<!tpu.dma_semaphore, #tpu.memory_space<semaphore_mem>>)
      %c10 = arith.constant 10 : index
      %187 = memref.load %arg1[%c10] : memref<16xi32, #tpu.memory_space<smem>>
      %c0_i32_139 = arith.constant 0 : i32
      %c10_i32_140 = arith.constant 10 : i32
      %c0_i32_141 = arith.constant 0 : i32
      %c10_i32_142 = arith.constant 10 : i32
      %c0_i32_143 = arith.constant 0 : i32
      %188 = tpu.memref_slice %arg2[%187, %c0_i32_143] : memref<129x128xf32, #tpu.memory_space<any>> -> memref<1x128xf32, #tpu.memory_space<any>>
      %189 = tpu.memref_squeeze %188 : memref<1x128xf32, #tpu.memory_space<any>> -> memref<128xf32, #tpu.memory_space<any>>
      %c0_i32_144 = arith.constant 0 : i32
      %190 = tpu.memref_slice %arg4[%c0_i32_139, %c10_i32_140, %c0_i32_144] : memref<2x16x128xf32, #tpu.memory_space<vmem>> -> memref<1x1x128xf32, #tpu.memory_space<vmem>>
      %191 = tpu.memref_squeeze %190 : memref<1x1x128xf32, #tpu.memory_space<vmem>> -> memref<128xf32, #tpu.memory_space<vmem>>
      %192 = tpu.memref_slice %arg5[%c0_i32_141, %c10_i32_142] : memref<2x16x!tpu.dma_semaphore, #tpu.memory_space<semaphore_mem>> -> memref<1x1x!tpu.dma_semaphore, #tpu.memory_space<semaphore_mem>>
      %193 = tpu.memref_squeeze %192 : memref<1x1x!tpu.dma_semaphore, #tpu.memory_space<semaphore_mem>> -> memref<!tpu.dma_semaphore, #tpu.memory_space<semaphore_mem>>
      tpu.enqueue_dma source(%189 : memref<128xf32, #tpu.memory_space<any>>) target(%191 : memref<128xf32, #tpu.memory_space<vmem>>) target_semaphore(%193 : memref<!tpu.dma_semaphore, #tpu.memory_space<semaphore_mem>>)
      %c11 = arith.constant 11 : index
      %194 = memref.load %arg1[%c11] : memref<16xi32, #tpu.memory_space<smem>>
      %c0_i32_145 = arith.constant 0 : i32
      %c11_i32_146 = arith.constant 11 : i32
      %c0_i32_147 = arith.constant 0 : i32
      %c11_i32_148 = arith.constant 11 : i32
      %c0_i32_149 = arith.constant 0 : i32
      %195 = tpu.memref_slice %arg2[%194, %c0_i32_149] : memref<129x128xf32, #tpu.memory_space<any>> -> memref<1x128xf32, #tpu.memory_space<any>>
      %196 = tpu.memref_squeeze %195 : memref<1x128xf32, #tpu.memory_space<any>> -> memref<128xf32, #tpu.memory_space<any>>
      %c0_i32_150 = arith.constant 0 : i32
      %197 = tpu.memref_slice %arg4[%c0_i32_145, %c11_i32_146, %c0_i32_150] : memref<2x16x128xf32, #tpu.memory_space<vmem>> -> memref<1x1x128xf32, #tpu.memory_space<vmem>>
      %198 = tpu.memref_squeeze %197 : memref<1x1x128xf32, #tpu.memory_space<vmem>> -> memref<128xf32, #tpu.memory_space<vmem>>
      %199 = tpu.memref_slice %arg5[%c0_i32_147, %c11_i32_148] : memref<2x16x!tpu.dma_semaphore, #tpu.memory_space<semaphore_mem>> -> memref<1x1x!tpu.dma_semaphore, #tpu.memory_space<semaphore_mem>>
      %200 = tpu.memref_squeeze %199 : memref<1x1x!tpu.dma_semaphore, #tpu.memory_space<semaphore_mem>> -> memref<!tpu.dma_semaphore, #tpu.memory_space<semaphore_mem>>
      tpu.enqueue_dma source(%196 : memref<128xf32, #tpu.memory_space<any>>) target(%198 : memref<128xf32, #tpu.memory_space<vmem>>) target_semaphore(%200 : memref<!tpu.dma_semaphore, #tpu.memory_space<semaphore_mem>>)
      %c12 = arith.constant 12 : index
      %201 = memref.load %arg1[%c12] : memref<16xi32, #tpu.memory_space<smem>>
      %c0_i32_151 = arith.constant 0 : i32
      %c12_i32_152 = arith.constant 12 : i32
      %c0_i32_153 = arith.constant 0 : i32
      %c12_i32_154 = arith.constant 12 : i32
      %c0_i32_155 = arith.constant 0 : i32
      %202 = tpu.memref_slice %arg2[%201, %c0_i32_155] : memref<129x128xf32, #tpu.memory_space<any>> -> memref<1x128xf32, #tpu.memory_space<any>>
      %203 = tpu.memref_squeeze %202 : memref<1x128xf32, #tpu.memory_space<any>> -> memref<128xf32, #tpu.memory_space<any>>
      %c0_i32_156 = arith.constant 0 : i32
      %204 = tpu.memref_slice %arg4[%c0_i32_151, %c12_i32_152, %c0_i32_156] : memref<2x16x128xf32, #tpu.memory_space<vmem>> -> memref<1x1x128xf32, #tpu.memory_space<vmem>>
      %205 = tpu.memref_squeeze %204 : memref<1x1x128xf32, #tpu.memory_space<vmem>> -> memref<128xf32, #tpu.memory_space<vmem>>
      %206 = tpu.memref_slice %arg5[%c0_i32_153, %c12_i32_154] : memref<2x16x!tpu.dma_semaphore, #tpu.memory_space<semaphore_mem>> -> memref<1x1x!tpu.dma_semaphore, #tpu.memory_space<semaphore_mem>>
      %207 = tpu.memref_squeeze %206 : memref<1x1x!tpu.dma_semaphore, #tpu.memory_space<semaphore_mem>> -> memref<!tpu.dma_semaphore, #tpu.memory_space<semaphore_mem>>
      tpu.enqueue_dma source(%203 : memref<128xf32, #tpu.memory_space<any>>) target(%205 : memref<128xf32, #tpu.memory_space<vmem>>) target_semaphore(%207 : memref<!tpu.dma_semaphore, #tpu.memory_space<semaphore_mem>>)
      %c13 = arith.constant 13 : index
      %208 = memref.load %arg1[%c13] : memref<16xi32, #tpu.memory_space<smem>>
      %c0_i32_157 = arith.constant 0 : i32
      %c13_i32_158 = arith.constant 13 : i32
      %c0_i32_159 = arith.constant 0 : i32
      %c13_i32_160 = arith.constant 13 : i32
      %c0_i32_161 = arith.constant 0 : i32
      %209 = tpu.memref_slice %arg2[%208, %c0_i32_161] : memref<129x128xf32, #tpu.memory_space<any>> -> memref<1x128xf32, #tpu.memory_space<any>>
      %210 = tpu.memref_squeeze %209 : memref<1x128xf32, #tpu.memory_space<any>> -> memref<128xf32, #tpu.memory_space<any>>
      %c0_i32_162 = arith.constant 0 : i32
      %211 = tpu.memref_slice %arg4[%c0_i32_157, %c13_i32_158, %c0_i32_162] : memref<2x16x128xf32, #tpu.memory_space<vmem>> -> memref<1x1x128xf32, #tpu.memory_space<vmem>>
      %212 = tpu.memref_squeeze %211 : memref<1x1x128xf32, #tpu.memory_space<vmem>> -> memref<128xf32, #tpu.memory_space<vmem>>
      %213 = tpu.memref_slice %arg5[%c0_i32_159, %c13_i32_160] : memref<2x16x!tpu.dma_semaphore, #tpu.memory_space<semaphore_mem>> -> memref<1x1x!tpu.dma_semaphore, #tpu.memory_space<semaphore_mem>>
      %214 = tpu.memref_squeeze %213 : memref<1x1x!tpu.dma_semaphore, #tpu.memory_space<semaphore_mem>> -> memref<!tpu.dma_semaphore, #tpu.memory_space<semaphore_mem>>
      tpu.enqueue_dma source(%210 : memref<128xf32, #tpu.memory_space<any>>) target(%212 : memref<128xf32, #tpu.memory_space<vmem>>) target_semaphore(%214 : memref<!tpu.dma_semaphore, #tpu.memory_space<semaphore_mem>>)
      %c14 = arith.constant 14 : index
      %215 = memref.load %arg1[%c14] : memref<16xi32, #tpu.memory_space<smem>>
      %c0_i32_163 = arith.constant 0 : i32
      %c14_i32_164 = arith.constant 14 : i32
      %c0_i32_165 = arith.constant 0 : i32
      %c14_i32_166 = arith.constant 14 : i32
      %c0_i32_167 = arith.constant 0 : i32
      %216 = tpu.memref_slice %arg2[%215, %c0_i32_167] : memref<129x128xf32, #tpu.memory_space<any>> -> memref<1x128xf32, #tpu.memory_space<any>>
      %217 = tpu.memref_squeeze %216 : memref<1x128xf32, #tpu.memory_space<any>> -> memref<128xf32, #tpu.memory_space<any>>
      %c0_i32_168 = arith.constant 0 : i32
      %218 = tpu.memref_slice %arg4[%c0_i32_163, %c14_i32_164, %c0_i32_168] : memref<2x16x128xf32, #tpu.memory_space<vmem>> -> memref<1x1x128xf32, #tpu.memory_space<vmem>>
      %219 = tpu.memref_squeeze %218 : memref<1x1x128xf32, #tpu.memory_space<vmem>> -> memref<128xf32, #tpu.memory_space<vmem>>
      %220 = tpu.memref_slice %arg5[%c0_i32_165, %c14_i32_166] : memref<2x16x!tpu.dma_semaphore, #tpu.memory_space<semaphore_mem>> -> memref<1x1x!tpu.dma_semaphore, #tpu.memory_space<semaphore_mem>>
      %221 = tpu.memref_squeeze %220 : memref<1x1x!tpu.dma_semaphore, #tpu.memory_space<semaphore_mem>> -> memref<!tpu.dma_semaphore, #tpu.memory_space<semaphore_mem>>
      tpu.enqueue_dma source(%217 : memref<128xf32, #tpu.memory_space<any>>) target(%219 : memref<128xf32, #tpu.memory_space<vmem>>) target_semaphore(%221 : memref<!tpu.dma_semaphore, #tpu.memory_space<semaphore_mem>>)
      %c15 = arith.constant 15 : index
      %222 = memref.load %arg1[%c15] : memref<16xi32, #tpu.memory_space<smem>>
      %c0_i32_169 = arith.constant 0 : i32
      %c15_i32_170 = arith.constant 15 : i32
      %c0_i32_171 = arith.constant 0 : i32
      %c15_i32_172 = arith.constant 15 : i32
      %c0_i32_173 = arith.constant 0 : i32
      %223 = tpu.memref_slice %arg2[%222, %c0_i32_173] : memref<129x128xf32, #tpu.memory_space<any>> -> memref<1x128xf32, #tpu.memory_space<any>>
      %224 = tpu.memref_squeeze %223 : memref<1x128xf32, #tpu.memory_space<any>> -> memref<128xf32, #tpu.memory_space<any>>
      %c0_i32_174 = arith.constant 0 : i32
      %225 = tpu.memref_slice %arg4[%c0_i32_169, %c15_i32_170, %c0_i32_174] : memref<2x16x128xf32, #tpu.memory_space<vmem>> -> memref<1x1x128xf32, #tpu.memory_space<vmem>>
      %226 = tpu.memref_squeeze %225 : memref<1x1x128xf32, #tpu.memory_space<vmem>> -> memref<128xf32, #tpu.memory_space<vmem>>
      %227 = tpu.memref_slice %arg5[%c0_i32_171, %c15_i32_172] : memref<2x16x!tpu.dma_semaphore, #tpu.memory_space<semaphore_mem>> -> memref<1x1x!tpu.dma_semaphore, #tpu.memory_space<semaphore_mem>>
      %228 = tpu.memref_squeeze %227 : memref<1x1x!tpu.dma_semaphore, #tpu.memory_space<semaphore_mem>> -> memref<!tpu.dma_semaphore, #tpu.memory_space<semaphore_mem>>
      tpu.enqueue_dma source(%224 : memref<128xf32, #tpu.memory_space<any>>) target(%226 : memref<128xf32, #tpu.memory_space<vmem>>) target_semaphore(%228 : memref<!tpu.dma_semaphore, #tpu.memory_space<semaphore_mem>>)
    } else {
    }
    %c1_i32_5 = arith.constant 1 : i32
    %13 = arith.addi %arg0, %c1_i32_5 : i32
    %c1_i32_6 = arith.constant 1 : i32
    %14 = arith.cmpi slt, %13, %c1_i32_6 : i32
    %15 = arith.extui %14 : i1 to i32
    %c0_i32_7 = arith.constant 0 : i32
    %16 = arith.cmpi ne, %15, %c0_i32_7 : i32
    scf.if %16 {
      %c1_i32_78 = arith.constant 1 : i32
      %117 = arith.addi %arg0, %c1_i32_78 : i32
      %c1_i32_79 = arith.constant 1 : i32
      %118 = arith.subi %c1_i32_79, %9 : i32
      %c16_i32 = arith.constant 16 : i32
      %119 = arith.muli %117, %c16_i32 : i32
      %c0_i32_80 = arith.constant 0 : i32
      %120 = arith.addi %119, %c0_i32_80 : i32
      %121 = arith.index_cast %120 : i32 to index
      %122 = memref.load %arg1[%121] : memref<16xi32, #tpu.memory_space<smem>>
      %c0_i32_81 = arith.constant 0 : i32
      %c0_i32_82 = arith.constant 0 : i32
      %c0_i32_83 = arith.constant 0 : i32
      %123 = tpu.memref_slice %arg2[%122, %c0_i32_83] : memref<129x128xf32, #tpu.memory_space<any>> -> memref<1x128xf32, #tpu.memory_space<any>>
      %124 = tpu.memref_squeeze %123 : memref<1x128xf32, #tpu.memory_space<any>> -> memref<128xf32, #tpu.memory_space<any>>
      %c0_i32_84 = arith.constant 0 : i32
      %125 = tpu.memref_slice %arg4[%118, %c0_i32_81, %c0_i32_84] : memref<2x16x128xf32, #tpu.memory_space<vmem>> -> memref<1x1x128xf32, #tpu.memory_space<vmem>>
      %126 = tpu.memref_squeeze %125 : memref<1x1x128xf32, #tpu.memory_space<vmem>> -> memref<128xf32, #tpu.memory_space<vmem>>
      %127 = tpu.memref_slice %arg5[%118, %c0_i32_82] : memref<2x16x!tpu.dma_semaphore, #tpu.memory_space<semaphore_mem>> -> memref<1x1x!tpu.dma_semaphore, #tpu.memory_space<semaphore_mem>>
      %128 = tpu.memref_squeeze %127 : memref<1x1x!tpu.dma_semaphore, #tpu.memory_space<semaphore_mem>> -> memref<!tpu.dma_semaphore, #tpu.memory_space<semaphore_mem>>
      tpu.enqueue_dma source(%124 : memref<128xf32, #tpu.memory_space<any>>) target(%126 : memref<128xf32, #tpu.memory_space<vmem>>) target_semaphore(%128 : memref<!tpu.dma_semaphore, #tpu.memory_space<semaphore_mem>>)
      %c1_i32_85 = arith.constant 1 : i32
      %129 = arith.addi %119, %c1_i32_85 : i32
      %130 = arith.index_cast %129 : i32 to index
      %131 = memref.load %arg1[%130] : memref<16xi32, #tpu.memory_space<smem>>
      %c1_i32_86 = arith.constant 1 : i32
      %c1_i32_87 = arith.constant 1 : i32
      %c0_i32_88 = arith.constant 0 : i32
      %132 = tpu.memref_slice %arg2[%131, %c0_i32_88] : memref<129x128xf32, #tpu.memory_space<any>> -> memref<1x128xf32, #tpu.memory_space<any>>
      %133 = tpu.memref_squeeze %132 : memref<1x128xf32, #tpu.memory_space<any>> -> memref<128xf32, #tpu.memory_space<any>>
      %c0_i32_89 = arith.constant 0 : i32
      %134 = tpu.memref_slice %arg4[%118, %c1_i32_86, %c0_i32_89] : memref<2x16x128xf32, #tpu.memory_space<vmem>> -> memref<1x1x128xf32, #tpu.memory_space<vmem>>
      %135 = tpu.memref_squeeze %134 : memref<1x1x128xf32, #tpu.memory_space<vmem>> -> memref<128xf32, #tpu.memory_space<vmem>>
      %136 = tpu.memref_slice %arg5[%118, %c1_i32_87] : memref<2x16x!tpu.dma_semaphore, #tpu.memory_space<semaphore_mem>> -> memref<1x1x!tpu.dma_semaphore, #tpu.memory_space<semaphore_mem>>
      %137 = tpu.memref_squeeze %136 : memref<1x1x!tpu.dma_semaphore, #tpu.memory_space<semaphore_mem>> -> memref<!tpu.dma_semaphore, #tpu.memory_space<semaphore_mem>>
      tpu.enqueue_dma source(%133 : memref<128xf32, #tpu.memory_space<any>>) target(%135 : memref<128xf32, #tpu.memory_space<vmem>>) target_semaphore(%137 : memref<!tpu.dma_semaphore, #tpu.memory_space<semaphore_mem>>)
      %c2_i32_90 = arith.constant 2 : i32
      %138 = arith.addi %119, %c2_i32_90 : i32
      %139 = arith.index_cast %138 : i32 to index
      %140 = memref.load %arg1[%139] : memref<16xi32, #tpu.memory_space<smem>>
      %c2_i32_91 = arith.constant 2 : i32
      %c2_i32_92 = arith.constant 2 : i32
      %c0_i32_93 = arith.constant 0 : i32
      %141 = tpu.memref_slice %arg2[%140, %c0_i32_93] : memref<129x128xf32, #tpu.memory_space<any>> -> memref<1x128xf32, #tpu.memory_space<any>>
      %142 = tpu.memref_squeeze %141 : memref<1x128xf32, #tpu.memory_space<any>> -> memref<128xf32, #tpu.memory_space<any>>
      %c0_i32_94 = arith.constant 0 : i32
      %143 = tpu.memref_slice %arg4[%118, %c2_i32_91, %c0_i32_94] : memref<2x16x128xf32, #tpu.memory_space<vmem>> -> memref<1x1x128xf32, #tpu.memory_space<vmem>>
      %144 = tpu.memref_squeeze %143 : memref<1x1x128xf32, #tpu.memory_space<vmem>> -> memref<128xf32, #tpu.memory_space<vmem>>
      %145 = tpu.memref_slice %arg5[%118, %c2_i32_92] : memref<2x16x!tpu.dma_semaphore, #tpu.memory_space<semaphore_mem>> -> memref<1x1x!tpu.dma_semaphore, #tpu.memory_space<semaphore_mem>>
      %146 = tpu.memref_squeeze %145 : memref<1x1x!tpu.dma_semaphore, #tpu.memory_space<semaphore_mem>> -> memref<!tpu.dma_semaphore, #tpu.memory_space<semaphore_mem>>
      tpu.enqueue_dma source(%142 : memref<128xf32, #tpu.memory_space<any>>) target(%144 : memref<128xf32, #tpu.memory_space<vmem>>) target_semaphore(%146 : memref<!tpu.dma_semaphore, #tpu.memory_space<semaphore_mem>>)
      %c3_i32_95 = arith.constant 3 : i32
      %147 = arith.addi %119, %c3_i32_95 : i32
      %148 = arith.index_cast %147 : i32 to index
      %149 = memref.load %arg1[%148] : memref<16xi32, #tpu.memory_space<smem>>
      %c3_i32_96 = arith.constant 3 : i32
      %c3_i32_97 = arith.constant 3 : i32
      %c0_i32_98 = arith.constant 0 : i32
      %150 = tpu.memref_slice %arg2[%149, %c0_i32_98] : memref<129x128xf32, #tpu.memory_space<any>> -> memref<1x128xf32, #tpu.memory_space<any>>
      %151 = tpu.memref_squeeze %150 : memref<1x128xf32, #tpu.memory_space<any>> -> memref<128xf32, #tpu.memory_space<any>>
      %c0_i32_99 = arith.constant 0 : i32
      %152 = tpu.memref_slice %arg4[%118, %c3_i32_96, %c0_i32_99] : memref<2x16x128xf32, #tpu.memory_space<vmem>> -> memref<1x1x128xf32, #tpu.memory_space<vmem>>
      %153 = tpu.memref_squeeze %152 : memref<1x1x128xf32, #tpu.memory_space<vmem>> -> memref<128xf32, #tpu.memory_space<vmem>>
      %154 = tpu.memref_slice %arg5[%118, %c3_i32_97] : memref<2x16x!tpu.dma_semaphore, #tpu.memory_space<semaphore_mem>> -> memref<1x1x!tpu.dma_semaphore, #tpu.memory_space<semaphore_mem>>
      %155 = tpu.memref_squeeze %154 : memref<1x1x!tpu.dma_semaphore, #tpu.memory_space<semaphore_mem>> -> memref<!tpu.dma_semaphore, #tpu.memory_space<semaphore_mem>>
      tpu.enqueue_dma source(%151 : memref<128xf32, #tpu.memory_space<any>>) target(%153 : memref<128xf32, #tpu.memory_space<vmem>>) target_semaphore(%155 : memref<!tpu.dma_semaphore, #tpu.memory_space<semaphore_mem>>)
      %c4_i32_100 = arith.constant 4 : i32
      %156 = arith.addi %119, %c4_i32_100 : i32
      %157 = arith.index_cast %156 : i32 to index
      %158 = memref.load %arg1[%157] : memref<16xi32, #tpu.memory_space<smem>>
      %c4_i32_101 = arith.constant 4 : i32
      %c4_i32_102 = arith.constant 4 : i32
      %c0_i32_103 = arith.constant 0 : i32
      %159 = tpu.memref_slice %arg2[%158, %c0_i32_103] : memref<129x128xf32, #tpu.memory_space<any>> -> memref<1x128xf32, #tpu.memory_space<any>>
      %160 = tpu.memref_squeeze %159 : memref<1x128xf32, #tpu.memory_space<any>> -> memref<128xf32, #tpu.memory_space<any>>
      %c0_i32_104 = arith.constant 0 : i32
      %161 = tpu.memref_slice %arg4[%118, %c4_i32_101, %c0_i32_104] : memref<2x16x128xf32, #tpu.memory_space<vmem>> -> memref<1x1x128xf32, #tpu.memory_space<vmem>>
      %162 = tpu.memref_squeeze %161 : memref<1x1x128xf32, #tpu.memory_space<vmem>> -> memref<128xf32, #tpu.memory_space<vmem>>
      %163 = tpu.memref_slice %arg5[%118, %c4_i32_102] : memref<2x16x!tpu.dma_semaphore, #tpu.memory_space<semaphore_mem>> -> memref<1x1x!tpu.dma_semaphore, #tpu.memory_space<semaphore_mem>>
      %164 = tpu.memref_squeeze %163 : memref<1x1x!tpu.dma_semaphore, #tpu.memory_space<semaphore_mem>> -> memref<!tpu.dma_semaphore, #tpu.memory_space<semaphore_mem>>
      tpu.enqueue_dma source(%160 : memref<128xf32, #tpu.memory_space<any>>) target(%162 : memref<128xf32, #tpu.memory_space<vmem>>) target_semaphore(%164 : memref<!tpu.dma_semaphore, #tpu.memory_space<semaphore_mem>>)
      %c5_i32_105 = arith.constant 5 : i32
      %165 = arith.addi %119, %c5_i32_105 : i32
      %166 = arith.index_cast %165 : i32 to index
      %167 = memref.load %arg1[%166] : memref<16xi32, #tpu.memory_space<smem>>
      %c5_i32_106 = arith.constant 5 : i32
      %c5_i32_107 = arith.constant 5 : i32
      %c0_i32_108 = arith.constant 0 : i32
      %168 = tpu.memref_slice %arg2[%167, %c0_i32_108] : memref<129x128xf32, #tpu.memory_space<any>> -> memref<1x128xf32, #tpu.memory_space<any>>
      %169 = tpu.memref_squeeze %168 : memref<1x128xf32, #tpu.memory_space<any>> -> memref<128xf32, #tpu.memory_space<any>>
      %c0_i32_109 = arith.constant 0 : i32
      %170 = tpu.memref_slice %arg4[%118, %c5_i32_106, %c0_i32_109] : memref<2x16x128xf32, #tpu.memory_space<vmem>> -> memref<1x1x128xf32, #tpu.memory_space<vmem>>
      %171 = tpu.memref_squeeze %170 : memref<1x1x128xf32, #tpu.memory_space<vmem>> -> memref<128xf32, #tpu.memory_space<vmem>>
      %172 = tpu.memref_slice %arg5[%118, %c5_i32_107] : memref<2x16x!tpu.dma_semaphore, #tpu.memory_space<semaphore_mem>> -> memref<1x1x!tpu.dma_semaphore, #tpu.memory_space<semaphore_mem>>
      %173 = tpu.memref_squeeze %172 : memref<1x1x!tpu.dma_semaphore, #tpu.memory_space<semaphore_mem>> -> memref<!tpu.dma_semaphore, #tpu.memory_space<semaphore_mem>>
      tpu.enqueue_dma source(%169 : memref<128xf32, #tpu.memory_space<any>>) target(%171 : memref<128xf32, #tpu.memory_space<vmem>>) target_semaphore(%173 : memref<!tpu.dma_semaphore, #tpu.memory_space<semaphore_mem>>)
      %c6_i32_110 = arith.constant 6 : i32
      %174 = arith.addi %119, %c6_i32_110 : i32
      %175 = arith.index_cast %174 : i32 to index
      %176 = memref.load %arg1[%175] : memref<16xi32, #tpu.memory_space<smem>>
      %c6_i32_111 = arith.constant 6 : i32
      %c6_i32_112 = arith.constant 6 : i32
      %c0_i32_113 = arith.constant 0 : i32
      %177 = tpu.memref_slice %arg2[%176, %c0_i32_113] : memref<129x128xf32, #tpu.memory_space<any>> -> memref<1x128xf32, #tpu.memory_space<any>>
      %178 = tpu.memref_squeeze %177 : memref<1x128xf32, #tpu.memory_space<any>> -> memref<128xf32, #tpu.memory_space<any>>
      %c0_i32_114 = arith.constant 0 : i32
      %179 = tpu.memref_slice %arg4[%118, %c6_i32_111, %c0_i32_114] : memref<2x16x128xf32, #tpu.memory_space<vmem>> -> memref<1x1x128xf32, #tpu.memory_space<vmem>>
      %180 = tpu.memref_squeeze %179 : memref<1x1x128xf32, #tpu.memory_space<vmem>> -> memref<128xf32, #tpu.memory_space<vmem>>
      %181 = tpu.memref_slice %arg5[%118, %c6_i32_112] : memref<2x16x!tpu.dma_semaphore, #tpu.memory_space<semaphore_mem>> -> memref<1x1x!tpu.dma_semaphore, #tpu.memory_space<semaphore_mem>>
      %182 = tpu.memref_squeeze %181 : memref<1x1x!tpu.dma_semaphore, #tpu.memory_space<semaphore_mem>> -> memref<!tpu.dma_semaphore, #tpu.memory_space<semaphore_mem>>
      tpu.enqueue_dma source(%178 : memref<128xf32, #tpu.memory_space<any>>) target(%180 : memref<128xf32, #tpu.memory_space<vmem>>) target_semaphore(%182 : memref<!tpu.dma_semaphore, #tpu.memory_space<semaphore_mem>>)
      %c7_i32_115 = arith.constant 7 : i32
      %183 = arith.addi %119, %c7_i32_115 : i32
      %184 = arith.index_cast %183 : i32 to index
      %185 = memref.load %arg1[%184] : memref<16xi32, #tpu.memory_space<smem>>
      %c7_i32_116 = arith.constant 7 : i32
      %c7_i32_117 = arith.constant 7 : i32
      %c0_i32_118 = arith.constant 0 : i32
      %186 = tpu.memref_slice %arg2[%185, %c0_i32_118] : memref<129x128xf32, #tpu.memory_space<any>> -> memref<1x128xf32, #tpu.memory_space<any>>
      %187 = tpu.memref_squeeze %186 : memref<1x128xf32, #tpu.memory_space<any>> -> memref<128xf32, #tpu.memory_space<any>>
      %c0_i32_119 = arith.constant 0 : i32
      %188 = tpu.memref_slice %arg4[%118, %c7_i32_116, %c0_i32_119] : memref<2x16x128xf32, #tpu.memory_space<vmem>> -> memref<1x1x128xf32, #tpu.memory_space<vmem>>
      %189 = tpu.memref_squeeze %188 : memref<1x1x128xf32, #tpu.memory_space<vmem>> -> memref<128xf32, #tpu.memory_space<vmem>>
      %190 = tpu.memref_slice %arg5[%118, %c7_i32_117] : memref<2x16x!tpu.dma_semaphore, #tpu.memory_space<semaphore_mem>> -> memref<1x1x!tpu.dma_semaphore, #tpu.memory_space<semaphore_mem>>
      %191 = tpu.memref_squeeze %190 : memref<1x1x!tpu.dma_semaphore, #tpu.memory_space<semaphore_mem>> -> memref<!tpu.dma_semaphore, #tpu.memory_space<semaphore_mem>>
      tpu.enqueue_dma source(%187 : memref<128xf32, #tpu.memory_space<any>>) target(%189 : memref<128xf32, #tpu.memory_space<vmem>>) target_semaphore(%191 : memref<!tpu.dma_semaphore, #tpu.memory_space<semaphore_mem>>)
      %c8_i32_120 = arith.constant 8 : i32
      %192 = arith.addi %119, %c8_i32_120 : i32
      %193 = arith.index_cast %192 : i32 to index
      %194 = memref.load %arg1[%193] : memref<16xi32, #tpu.memory_space<smem>>
      %c8_i32_121 = arith.constant 8 : i32
      %c8_i32_122 = arith.constant 8 : i32
      %c0_i32_123 = arith.constant 0 : i32
      %195 = tpu.memref_slice %arg2[%194, %c0_i32_123] : memref<129x128xf32, #tpu.memory_space<any>> -> memref<1x128xf32, #tpu.memory_space<any>>
      %196 = tpu.memref_squeeze %195 : memref<1x128xf32, #tpu.memory_space<any>> -> memref<128xf32, #tpu.memory_space<any>>
      %c0_i32_124 = arith.constant 0 : i32
      %197 = tpu.memref_slice %arg4[%118, %c8_i32_121, %c0_i32_124] : memref<2x16x128xf32, #tpu.memory_space<vmem>> -> memref<1x1x128xf32, #tpu.memory_space<vmem>>
      %198 = tpu.memref_squeeze %197 : memref<1x1x128xf32, #tpu.memory_space<vmem>> -> memref<128xf32, #tpu.memory_space<vmem>>
      %199 = tpu.memref_slice %arg5[%118, %c8_i32_122] : memref<2x16x!tpu.dma_semaphore, #tpu.memory_space<semaphore_mem>> -> memref<1x1x!tpu.dma_semaphore, #tpu.memory_space<semaphore_mem>>
      %200 = tpu.memref_squeeze %199 : memref<1x1x!tpu.dma_semaphore, #tpu.memory_space<semaphore_mem>> -> memref<!tpu.dma_semaphore, #tpu.memory_space<semaphore_mem>>
      tpu.enqueue_dma source(%196 : memref<128xf32, #tpu.memory_space<any>>) target(%198 : memref<128xf32, #tpu.memory_space<vmem>>) target_semaphore(%200 : memref<!tpu.dma_semaphore, #tpu.memory_space<semaphore_mem>>)
      %c9_i32_125 = arith.constant 9 : i32
      %201 = arith.addi %119, %c9_i32_125 : i32
      %202 = arith.index_cast %201 : i32 to index
      %203 = memref.load %arg1[%202] : memref<16xi32, #tpu.memory_space<smem>>
      %c9_i32_126 = arith.constant 9 : i32
      %c9_i32_127 = arith.constant 9 : i32
      %c0_i32_128 = arith.constant 0 : i32
      %204 = tpu.memref_slice %arg2[%203, %c0_i32_128] : memref<129x128xf32, #tpu.memory_space<any>> -> memref<1x128xf32, #tpu.memory_space<any>>
      %205 = tpu.memref_squeeze %204 : memref<1x128xf32, #tpu.memory_space<any>> -> memref<128xf32, #tpu.memory_space<any>>
      %c0_i32_129 = arith.constant 0 : i32
      %206 = tpu.memref_slice %arg4[%118, %c9_i32_126, %c0_i32_129] : memref<2x16x128xf32, #tpu.memory_space<vmem>> -> memref<1x1x128xf32, #tpu.memory_space<vmem>>
      %207 = tpu.memref_squeeze %206 : memref<1x1x128xf32, #tpu.memory_space<vmem>> -> memref<128xf32, #tpu.memory_space<vmem>>
      %208 = tpu.memref_slice %arg5[%118, %c9_i32_127] : memref<2x16x!tpu.dma_semaphore, #tpu.memory_space<semaphore_mem>> -> memref<1x1x!tpu.dma_semaphore, #tpu.memory_space<semaphore_mem>>
      %209 = tpu.memref_squeeze %208 : memref<1x1x!tpu.dma_semaphore, #tpu.memory_space<semaphore_mem>> -> memref<!tpu.dma_semaphore, #tpu.memory_space<semaphore_mem>>
      tpu.enqueue_dma source(%205 : memref<128xf32, #tpu.memory_space<any>>) target(%207 : memref<128xf32, #tpu.memory_space<vmem>>) target_semaphore(%209 : memref<!tpu.dma_semaphore, #tpu.memory_space<semaphore_mem>>)
      %c10_i32_130 = arith.constant 10 : i32
      %210 = arith.addi %119, %c10_i32_130 : i32
      %211 = arith.index_cast %210 : i32 to index
      %212 = memref.load %arg1[%211] : memref<16xi32, #tpu.memory_space<smem>>
      %c10_i32_131 = arith.constant 10 : i32
      %c10_i32_132 = arith.constant 10 : i32
      %c0_i32_133 = arith.constant 0 : i32
      %213 = tpu.memref_slice %arg2[%212, %c0_i32_133] : memref<129x128xf32, #tpu.memory_space<any>> -> memref<1x128xf32, #tpu.memory_space<any>>
      %214 = tpu.memref_squeeze %213 : memref<1x128xf32, #tpu.memory_space<any>> -> memref<128xf32, #tpu.memory_space<any>>
      %c0_i32_134 = arith.constant 0 : i32
      %215 = tpu.memref_slice %arg4[%118, %c10_i32_131, %c0_i32_134] : memref<2x16x128xf32, #tpu.memory_space<vmem>> -> memref<1x1x128xf32, #tpu.memory_space<vmem>>
      %216 = tpu.memref_squeeze %215 : memref<1x1x128xf32, #tpu.memory_space<vmem>> -> memref<128xf32, #tpu.memory_space<vmem>>
      %217 = tpu.memref_slice %arg5[%118, %c10_i32_132] : memref<2x16x!tpu.dma_semaphore, #tpu.memory_space<semaphore_mem>> -> memref<1x1x!tpu.dma_semaphore, #tpu.memory_space<semaphore_mem>>
      %218 = tpu.memref_squeeze %217 : memref<1x1x!tpu.dma_semaphore, #tpu.memory_space<semaphore_mem>> -> memref<!tpu.dma_semaphore, #tpu.memory_space<semaphore_mem>>
      tpu.enqueue_dma source(%214 : memref<128xf32, #tpu.memory_space<any>>) target(%216 : memref<128xf32, #tpu.memory_space<vmem>>) target_semaphore(%218 : memref<!tpu.dma_semaphore, #tpu.memory_space<semaphore_mem>>)
      %c11_i32_135 = arith.constant 11 : i32
      %219 = arith.addi %119, %c11_i32_135 : i32
      %220 = arith.index_cast %219 : i32 to index
      %221 = memref.load %arg1[%220] : memref<16xi32, #tpu.memory_space<smem>>
      %c11_i32_136 = arith.constant 11 : i32
      %c11_i32_137 = arith.constant 11 : i32
      %c0_i32_138 = arith.constant 0 : i32
      %222 = tpu.memref_slice %arg2[%221, %c0_i32_138] : memref<129x128xf32, #tpu.memory_space<any>> -> memref<1x128xf32, #tpu.memory_space<any>>
      %223 = tpu.memref_squeeze %222 : memref<1x128xf32, #tpu.memory_space<any>> -> memref<128xf32, #tpu.memory_space<any>>
      %c0_i32_139 = arith.constant 0 : i32
      %224 = tpu.memref_slice %arg4[%118, %c11_i32_136, %c0_i32_139] : memref<2x16x128xf32, #tpu.memory_space<vmem>> -> memref<1x1x128xf32, #tpu.memory_space<vmem>>
      %225 = tpu.memref_squeeze %224 : memref<1x1x128xf32, #tpu.memory_space<vmem>> -> memref<128xf32, #tpu.memory_space<vmem>>
      %226 = tpu.memref_slice %arg5[%118, %c11_i32_137] : memref<2x16x!tpu.dma_semaphore, #tpu.memory_space<semaphore_mem>> -> memref<1x1x!tpu.dma_semaphore, #tpu.memory_space<semaphore_mem>>
      %227 = tpu.memref_squeeze %226 : memref<1x1x!tpu.dma_semaphore, #tpu.memory_space<semaphore_mem>> -> memref<!tpu.dma_semaphore, #tpu.memory_space<semaphore_mem>>
      tpu.enqueue_dma source(%223 : memref<128xf32, #tpu.memory_space<any>>) target(%225 : memref<128xf32, #tpu.memory_space<vmem>>) target_semaphore(%227 : memref<!tpu.dma_semaphore, #tpu.memory_space<semaphore_mem>>)
      %c12_i32_140 = arith.constant 12 : i32
      %228 = arith.addi %119, %c12_i32_140 : i32
      %229 = arith.index_cast %228 : i32 to index
      %230 = memref.load %arg1[%229] : memref<16xi32, #tpu.memory_space<smem>>
      %c12_i32_141 = arith.constant 12 : i32
      %c12_i32_142 = arith.constant 12 : i32
      %c0_i32_143 = arith.constant 0 : i32
      %231 = tpu.memref_slice %arg2[%230, %c0_i32_143] : memref<129x128xf32, #tpu.memory_space<any>> -> memref<1x128xf32, #tpu.memory_space<any>>
      %232 = tpu.memref_squeeze %231 : memref<1x128xf32, #tpu.memory_space<any>> -> memref<128xf32, #tpu.memory_space<any>>
      %c0_i32_144 = arith.constant 0 : i32
      %233 = tpu.memref_slice %arg4[%118, %c12_i32_141, %c0_i32_144] : memref<2x16x128xf32, #tpu.memory_space<vmem>> -> memref<1x1x128xf32, #tpu.memory_space<vmem>>
      %234 = tpu.memref_squeeze %233 : memref<1x1x128xf32, #tpu.memory_space<vmem>> -> memref<128xf32, #tpu.memory_space<vmem>>
      %235 = tpu.memref_slice %arg5[%118, %c12_i32_142] : memref<2x16x!tpu.dma_semaphore, #tpu.memory_space<semaphore_mem>> -> memref<1x1x!tpu.dma_semaphore, #tpu.memory_space<semaphore_mem>>
      %236 = tpu.memref_squeeze %235 : memref<1x1x!tpu.dma_semaphore, #tpu.memory_space<semaphore_mem>> -> memref<!tpu.dma_semaphore, #tpu.memory_space<semaphore_mem>>
      tpu.enqueue_dma source(%232 : memref<128xf32, #tpu.memory_space<any>>) target(%234 : memref<128xf32, #tpu.memory_space<vmem>>) target_semaphore(%236 : memref<!tpu.dma_semaphore, #tpu.memory_space<semaphore_mem>>)
      %c13_i32_145 = arith.constant 13 : i32
      %237 = arith.addi %119, %c13_i32_145 : i32
      %238 = arith.index_cast %237 : i32 to index
      %239 = memref.load %arg1[%238] : memref<16xi32, #tpu.memory_space<smem>>
      %c13_i32_146 = arith.constant 13 : i32
      %c13_i32_147 = arith.constant 13 : i32
      %c0_i32_148 = arith.constant 0 : i32
      %240 = tpu.memref_slice %arg2[%239, %c0_i32_148] : memref<129x128xf32, #tpu.memory_space<any>> -> memref<1x128xf32, #tpu.memory_space<any>>
      %241 = tpu.memref_squeeze %240 : memref<1x128xf32, #tpu.memory_space<any>> -> memref<128xf32, #tpu.memory_space<any>>
      %c0_i32_149 = arith.constant 0 : i32
      %242 = tpu.memref_slice %arg4[%118, %c13_i32_146, %c0_i32_149] : memref<2x16x128xf32, #tpu.memory_space<vmem>> -> memref<1x1x128xf32, #tpu.memory_space<vmem>>
      %243 = tpu.memref_squeeze %242 : memref<1x1x128xf32, #tpu.memory_space<vmem>> -> memref<128xf32, #tpu.memory_space<vmem>>
      %244 = tpu.memref_slice %arg5[%118, %c13_i32_147] : memref<2x16x!tpu.dma_semaphore, #tpu.memory_space<semaphore_mem>> -> memref<1x1x!tpu.dma_semaphore, #tpu.memory_space<semaphore_mem>>
      %245 = tpu.memref_squeeze %244 : memref<1x1x!tpu.dma_semaphore, #tpu.memory_space<semaphore_mem>> -> memref<!tpu.dma_semaphore, #tpu.memory_space<semaphore_mem>>
      tpu.enqueue_dma source(%241 : memref<128xf32, #tpu.memory_space<any>>) target(%243 : memref<128xf32, #tpu.memory_space<vmem>>) target_semaphore(%245 : memref<!tpu.dma_semaphore, #tpu.memory_space<semaphore_mem>>)
      %c14_i32_150 = arith.constant 14 : i32
      %246 = arith.addi %119, %c14_i32_150 : i32
      %247 = arith.index_cast %246 : i32 to index
      %248 = memref.load %arg1[%247] : memref<16xi32, #tpu.memory_space<smem>>
      %c14_i32_151 = arith.constant 14 : i32
      %c14_i32_152 = arith.constant 14 : i32
      %c0_i32_153 = arith.constant 0 : i32
      %249 = tpu.memref_slice %arg2[%248, %c0_i32_153] : memref<129x128xf32, #tpu.memory_space<any>> -> memref<1x128xf32, #tpu.memory_space<any>>
      %250 = tpu.memref_squeeze %249 : memref<1x128xf32, #tpu.memory_space<any>> -> memref<128xf32, #tpu.memory_space<any>>
      %c0_i32_154 = arith.constant 0 : i32
      %251 = tpu.memref_slice %arg4[%118, %c14_i32_151, %c0_i32_154] : memref<2x16x128xf32, #tpu.memory_space<vmem>> -> memref<1x1x128xf32, #tpu.memory_space<vmem>>
      %252 = tpu.memref_squeeze %251 : memref<1x1x128xf32, #tpu.memory_space<vmem>> -> memref<128xf32, #tpu.memory_space<vmem>>
      %253 = tpu.memref_slice %arg5[%118, %c14_i32_152] : memref<2x16x!tpu.dma_semaphore, #tpu.memory_space<semaphore_mem>> -> memref<1x1x!tpu.dma_semaphore, #tpu.memory_space<semaphore_mem>>
      %254 = tpu.memref_squeeze %253 : memref<1x1x!tpu.dma_semaphore, #tpu.memory_space<semaphore_mem>> -> memref<!tpu.dma_semaphore, #tpu.memory_space<semaphore_mem>>
      tpu.enqueue_dma source(%250 : memref<128xf32, #tpu.memory_space<any>>) target(%252 : memref<128xf32, #tpu.memory_space<vmem>>) target_semaphore(%254 : memref<!tpu.dma_semaphore, #tpu.memory_space<semaphore_mem>>)
      %c15_i32_155 = arith.constant 15 : i32
      %255 = arith.addi %119, %c15_i32_155 : i32
      %256 = arith.index_cast %255 : i32 to index
      %257 = memref.load %arg1[%256] : memref<16xi32, #tpu.memory_space<smem>>
      %c15_i32_156 = arith.constant 15 : i32
      %c15_i32_157 = arith.constant 15 : i32
      %c0_i32_158 = arith.constant 0 : i32
      %258 = tpu.memref_slice %arg2[%257, %c0_i32_158] : memref<129x128xf32, #tpu.memory_space<any>> -> memref<1x128xf32, #tpu.memory_space<any>>
      %259 = tpu.memref_squeeze %258 : memref<1x128xf32, #tpu.memory_space<any>> -> memref<128xf32, #tpu.memory_space<any>>
      %c0_i32_159 = arith.constant 0 : i32
      %260 = tpu.memref_slice %arg4[%118, %c15_i32_156, %c0_i32_159] : memref<2x16x128xf32, #tpu.memory_space<vmem>> -> memref<1x1x128xf32, #tpu.memory_space<vmem>>
      %261 = tpu.memref_squeeze %260 : memref<1x1x128xf32, #tpu.memory_space<vmem>> -> memref<128xf32, #tpu.memory_space<vmem>>
      %262 = tpu.memref_slice %arg5[%118, %c15_i32_157] : memref<2x16x!tpu.dma_semaphore, #tpu.memory_space<semaphore_mem>> -> memref<1x1x!tpu.dma_semaphore, #tpu.memory_space<semaphore_mem>>
      %263 = tpu.memref_squeeze %262 : memref<1x1x!tpu.dma_semaphore, #tpu.memory_space<semaphore_mem>> -> memref<!tpu.dma_semaphore, #tpu.memory_space<semaphore_mem>>
      tpu.enqueue_dma source(%259 : memref<128xf32, #tpu.memory_space<any>>) target(%261 : memref<128xf32, #tpu.memory_space<vmem>>) target_semaphore(%263 : memref<!tpu.dma_semaphore, #tpu.memory_space<semaphore_mem>>)
    } else {
    }
    %c0_i32_8 = arith.constant 0 : i32
    %c0_i32_9 = arith.constant 0 : i32
    %c0_i32_10 = arith.constant 0 : i32
    %c0_i32_11 = arith.constant 0 : i32
    %17 = tpu.memref_slice %arg2[%c0_i32_8, %c0_i32_11] : memref<129x128xf32, #tpu.memory_space<any>> -> memref<1x128xf32, #tpu.memory_space<any>>
    %18 = tpu.memref_squeeze %17 : memref<1x128xf32, #tpu.memory_space<any>> -> memref<128xf32, #tpu.memory_space<any>>
    %c0_i32_12 = arith.constant 0 : i32
    %19 = tpu.memref_slice %arg4[%9, %c0_i32_9, %c0_i32_12] : memref<2x16x128xf32, #tpu.memory_space<vmem>> -> memref<1x1x128xf32, #tpu.memory_space<vmem>>
    %20 = tpu.memref_squeeze %19 : memref<1x1x128xf32, #tpu.memory_space<vmem>> -> memref<128xf32, #tpu.memory_space<vmem>>
    %21 = tpu.memref_slice %arg5[%9, %c0_i32_10] : memref<2x16x!tpu.dma_semaphore, #tpu.memory_space<semaphore_mem>> -> memref<1x1x!tpu.dma_semaphore, #tpu.memory_space<semaphore_mem>>
    %22 = tpu.memref_squeeze %21 : memref<1x1x!tpu.dma_semaphore, #tpu.memory_space<semaphore_mem>> -> memref<!tpu.dma_semaphore, #tpu.memory_space<semaphore_mem>>
    tpu.wait_dma2 semaphore(%22 : memref<!tpu.dma_semaphore, #tpu.memory_space<semaphore_mem>>) src(%18 : memref<128xf32, #tpu.memory_space<any>>) dst(%20 : memref<128xf32, #tpu.memory_space<vmem>>)
    %c0_i32_13 = arith.constant 0 : i32
    %c1_i32_14 = arith.constant 1 : i32
    %c1_i32_15 = arith.constant 1 : i32
    %c0_i32_16 = arith.constant 0 : i32
    %23 = tpu.memref_slice %arg2[%c0_i32_13, %c0_i32_16] : memref<129x128xf32, #tpu.memory_space<any>> -> memref<1x128xf32, #tpu.memory_space<any>>
    %24 = tpu.memref_squeeze %23 : memref<1x128xf32, #tpu.memory_space<any>> -> memref<128xf32, #tpu.memory_space<any>>
    %c0_i32_17 = arith.constant 0 : i32
    %25 = tpu.memref_slice %arg4[%9, %c1_i32_14, %c0_i32_17] : memref<2x16x128xf32, #tpu.memory_space<vmem>> -> memref<1x1x128xf32, #tpu.memory_space<vmem>>
    %26 = tpu.memref_squeeze %25 : memref<1x1x128xf32, #tpu.memory_space<vmem>> -> memref<128xf32, #tpu.memory_space<vmem>>
    %27 = tpu.memref_slice %arg5[%9, %c1_i32_15] : memref<2x16x!tpu.dma_semaphore, #tpu.memory_space<semaphore_mem>> -> memref<1x1x!tpu.dma_semaphore, #tpu.memory_space<semaphore_mem>>
    %28 = tpu.memref_squeeze %27 : memref<1x1x!tpu.dma_semaphore, #tpu.memory_space<semaphore_mem>> -> memref<!tpu.dma_semaphore, #tpu.memory_space<semaphore_mem>>
    tpu.wait_dma2 semaphore(%28 : memref<!tpu.dma_semaphore, #tpu.memory_space<semaphore_mem>>) src(%24 : memref<128xf32, #tpu.memory_space<any>>) dst(%26 : memref<128xf32, #tpu.memory_space<vmem>>)
    %c0_i32_18 = arith.constant 0 : i32
    %c2_i32_19 = arith.constant 2 : i32
    %c2_i32_20 = arith.constant 2 : i32
    %c0_i32_21 = arith.constant 0 : i32
    %29 = tpu.memref_slice %arg2[%c0_i32_18, %c0_i32_21] : memref<129x128xf32, #tpu.memory_space<any>> -> memref<1x128xf32, #tpu.memory_space<any>>
    %30 = tpu.memref_squeeze %29 : memref<1x128xf32, #tpu.memory_space<any>> -> memref<128xf32, #tpu.memory_space<any>>
    %c0_i32_22 = arith.constant 0 : i32
    %31 = tpu.memref_slice %arg4[%9, %c2_i32_19, %c0_i32_22] : memref<2x16x128xf32, #tpu.memory_space<vmem>> -> memref<1x1x128xf32, #tpu.memory_space<vmem>>
    %32 = tpu.memref_squeeze %31 : memref<1x1x128xf32, #tpu.memory_space<vmem>> -> memref<128xf32, #tpu.memory_space<vmem>>
    %33 = tpu.memref_slice %arg5[%9, %c2_i32_20] : memref<2x16x!tpu.dma_semaphore, #tpu.memory_space<semaphore_mem>> -> memref<1x1x!tpu.dma_semaphore, #tpu.memory_space<semaphore_mem>>
    %34 = tpu.memref_squeeze %33 : memref<1x1x!tpu.dma_semaphore, #tpu.memory_space<semaphore_mem>> -> memref<!tpu.dma_semaphore, #tpu.memory_space<semaphore_mem>>
    tpu.wait_dma2 semaphore(%34 : memref<!tpu.dma_semaphore, #tpu.memory_space<semaphore_mem>>) src(%30 : memref<128xf32, #tpu.memory_space<any>>) dst(%32 : memref<128xf32, #tpu.memory_space<vmem>>)
    %c0_i32_23 = arith.constant 0 : i32
    %c3_i32 = arith.constant 3 : i32
    %c3_i32_24 = arith.constant 3 : i32
    %c0_i32_25 = arith.constant 0 : i32
    %35 = tpu.memref_slice %arg2[%c0_i32_23, %c0_i32_25] : memref<129x128xf32, #tpu.memory_space<any>> -> memref<1x128xf32, #tpu.memory_space<any>>
    %36 = tpu.memref_squeeze %35 : memref<1x128xf32, #tpu.memory_space<any>> -> memref<128xf32, #tpu.memory_space<any>>
    %c0_i32_26 = arith.constant 0 : i32
    %37 = tpu.memref_slice %arg4[%9, %c3_i32, %c0_i32_26] : memref<2x16x128xf32, #tpu.memory_space<vmem>> -> memref<1x1x128xf32, #tpu.memory_space<vmem>>
    %38 = tpu.memref_squeeze %37 : memref<1x1x128xf32, #tpu.memory_space<vmem>> -> memref<128xf32, #tpu.memory_space<vmem>>
    %39 = tpu.memref_slice %arg5[%9, %c3_i32_24] : memref<2x16x!tpu.dma_semaphore, #tpu.memory_space<semaphore_mem>> -> memref<1x1x!tpu.dma_semaphore, #tpu.memory_space<semaphore_mem>>
    %40 = tpu.memref_squeeze %39 : memref<1x1x!tpu.dma_semaphore, #tpu.memory_space<semaphore_mem>> -> memref<!tpu.dma_semaphore, #tpu.memory_space<semaphore_mem>>
    tpu.wait_dma2 semaphore(%40 : memref<!tpu.dma_semaphore, #tpu.memory_space<semaphore_mem>>) src(%36 : memref<128xf32, #tpu.memory_space<any>>) dst(%38 : memref<128xf32, #tpu.memory_space<vmem>>)
    %c0_i32_27 = arith.constant 0 : i32
    %c4_i32 = arith.constant 4 : i32
    %c4_i32_28 = arith.constant 4 : i32
    %c0_i32_29 = arith.constant 0 : i32
    %41 = tpu.memref_slice %arg2[%c0_i32_27, %c0_i32_29] : memref<129x128xf32, #tpu.memory_space<any>> -> memref<1x128xf32, #tpu.memory_space<any>>
    %42 = tpu.memref_squeeze %41 : memref<1x128xf32, #tpu.memory_space<any>> -> memref<128xf32, #tpu.memory_space<any>>
    %c0_i32_30 = arith.constant 0 : i32
    %43 = tpu.memref_slice %arg4[%9, %c4_i32, %c0_i32_30] : memref<2x16x128xf32, #tpu.memory_space<vmem>> -> memref<1x1x128xf32, #tpu.memory_space<vmem>>
    %44 = tpu.memref_squeeze %43 : memref<1x1x128xf32, #tpu.memory_space<vmem>> -> memref<128xf32, #tpu.memory_space<vmem>>
    %45 = tpu.memref_slice %arg5[%9, %c4_i32_28] : memref<2x16x!tpu.dma_semaphore, #tpu.memory_space<semaphore_mem>> -> memref<1x1x!tpu.dma_semaphore, #tpu.memory_space<semaphore_mem>>
    %46 = tpu.memref_squeeze %45 : memref<1x1x!tpu.dma_semaphore, #tpu.memory_space<semaphore_mem>> -> memref<!tpu.dma_semaphore, #tpu.memory_space<semaphore_mem>>
    tpu.wait_dma2 semaphore(%46 : memref<!tpu.dma_semaphore, #tpu.memory_space<semaphore_mem>>) src(%42 : memref<128xf32, #tpu.memory_space<any>>) dst(%44 : memref<128xf32, #tpu.memory_space<vmem>>)
    %c0_i32_31 = arith.constant 0 : i32
    %c5_i32 = arith.constant 5 : i32
    %c5_i32_32 = arith.constant 5 : i32
    %c0_i32_33 = arith.constant 0 : i32
    %47 = tpu.memref_slice %arg2[%c0_i32_31, %c0_i32_33] : memref<129x128xf32, #tpu.memory_space<any>> -> memref<1x128xf32, #tpu.memory_space<any>>
    %48 = tpu.memref_squeeze %47 : memref<1x128xf32, #tpu.memory_space<any>> -> memref<128xf32, #tpu.memory_space<any>>
    %c0_i32_34 = arith.constant 0 : i32
    %49 = tpu.memref_slice %arg4[%9, %c5_i32, %c0_i32_34] : memref<2x16x128xf32, #tpu.memory_space<vmem>> -> memref<1x1x128xf32, #tpu.memory_space<vmem>>
    %50 = tpu.memref_squeeze %49 : memref<1x1x128xf32, #tpu.memory_space<vmem>> -> memref<128xf32, #tpu.memory_space<vmem>>
    %51 = tpu.memref_slice %arg5[%9, %c5_i32_32] : memref<2x16x!tpu.dma_semaphore, #tpu.memory_space<semaphore_mem>> -> memref<1x1x!tpu.dma_semaphore, #tpu.memory_space<semaphore_mem>>
    %52 = tpu.memref_squeeze %51 : memref<1x1x!tpu.dma_semaphore, #tpu.memory_space<semaphore_mem>> -> memref<!tpu.dma_semaphore, #tpu.memory_space<semaphore_mem>>
    tpu.wait_dma2 semaphore(%52 : memref<!tpu.dma_semaphore, #tpu.memory_space<semaphore_mem>>) src(%48 : memref<128xf32, #tpu.memory_space<any>>) dst(%50 : memref<128xf32, #tpu.memory_space<vmem>>)
    %c0_i32_35 = arith.constant 0 : i32
    %c6_i32 = arith.constant 6 : i32
    %c6_i32_36 = arith.constant 6 : i32
    %c0_i32_37 = arith.constant 0 : i32
    %53 = tpu.memref_slice %arg2[%c0_i32_35, %c0_i32_37] : memref<129x128xf32, #tpu.memory_space<any>> -> memref<1x128xf32, #tpu.memory_space<any>>
    %54 = tpu.memref_squeeze %53 : memref<1x128xf32, #tpu.memory_space<any>> -> memref<128xf32, #tpu.memory_space<any>>
    %c0_i32_38 = arith.constant 0 : i32
    %55 = tpu.memref_slice %arg4[%9, %c6_i32, %c0_i32_38] : memref<2x16x128xf32, #tpu.memory_space<vmem>> -> memref<1x1x128xf32, #tpu.memory_space<vmem>>
    %56 = tpu.memref_squeeze %55 : memref<1x1x128xf32, #tpu.memory_space<vmem>> -> memref<128xf32, #tpu.memory_space<vmem>>
    %57 = tpu.memref_slice %arg5[%9, %c6_i32_36] : memref<2x16x!tpu.dma_semaphore, #tpu.memory_space<semaphore_mem>> -> memref<1x1x!tpu.dma_semaphore, #tpu.memory_space<semaphore_mem>>
    %58 = tpu.memref_squeeze %57 : memref<1x1x!tpu.dma_semaphore, #tpu.memory_space<semaphore_mem>> -> memref<!tpu.dma_semaphore, #tpu.memory_space<semaphore_mem>>
    tpu.wait_dma2 semaphore(%58 : memref<!tpu.dma_semaphore, #tpu.memory_space<semaphore_mem>>) src(%54 : memref<128xf32, #tpu.memory_space<any>>) dst(%56 : memref<128xf32, #tpu.memory_space<vmem>>)
    %c0_i32_39 = arith.constant 0 : i32
    %c7_i32 = arith.constant 7 : i32
    %c7_i32_40 = arith.constant 7 : i32
    %c0_i32_41 = arith.constant 0 : i32
    %59 = tpu.memref_slice %arg2[%c0_i32_39, %c0_i32_41] : memref<129x128xf32, #tpu.memory_space<any>> -> memref<1x128xf32, #tpu.memory_space<any>>
    %60 = tpu.memref_squeeze %59 : memref<1x128xf32, #tpu.memory_space<any>> -> memref<128xf32, #tpu.memory_space<any>>
    %c0_i32_42 = arith.constant 0 : i32
    %61 = tpu.memref_slice %arg4[%9, %c7_i32, %c0_i32_42] : memref<2x16x128xf32, #tpu.memory_space<vmem>> -> memref<1x1x128xf32, #tpu.memory_space<vmem>>
    %62 = tpu.memref_squeeze %61 : memref<1x1x128xf32, #tpu.memory_space<vmem>> -> memref<128xf32, #tpu.memory_space<vmem>>
    %63 = tpu.memref_slice %arg5[%9, %c7_i32_40] : memref<2x16x!tpu.dma_semaphore, #tpu.memory_space<semaphore_mem>> -> memref<1x1x!tpu.dma_semaphore, #tpu.memory_space<semaphore_mem>>
    %64 = tpu.memref_squeeze %63 : memref<1x1x!tpu.dma_semaphore, #tpu.memory_space<semaphore_mem>> -> memref<!tpu.dma_semaphore, #tpu.memory_space<semaphore_mem>>
    tpu.wait_dma2 semaphore(%64 : memref<!tpu.dma_semaphore, #tpu.memory_space<semaphore_mem>>) src(%60 : memref<128xf32, #tpu.memory_space<any>>) dst(%62 : memref<128xf32, #tpu.memory_space<vmem>>)
    %c0_i32_43 = arith.constant 0 : i32
    %c8_i32 = arith.constant 8 : i32
    %c8_i32_44 = arith.constant 8 : i32
    %c0_i32_45 = arith.constant 0 : i32
    %65 = tpu.memref_slice %arg2[%c0_i32_43, %c0_i32_45] : memref<129x128xf32, #tpu.memory_space<any>> -> memref<1x128xf32, #tpu.memory_space<any>>
    %66 = tpu.memref_squeeze %65 : memref<1x128xf32, #tpu.memory_space<any>> -> memref<128xf32, #tpu.memory_space<any>>
    %c0_i32_46 = arith.constant 0 : i32
    %67 = tpu.memref_slice %arg4[%9, %c8_i32, %c0_i32_46] : memref<2x16x128xf32, #tpu.memory_space<vmem>> -> memref<1x1x128xf32, #tpu.memory_space<vmem>>
    %68 = tpu.memref_squeeze %67 : memref<1x1x128xf32, #tpu.memory_space<vmem>> -> memref<128xf32, #tpu.memory_space<vmem>>
    %69 = tpu.memref_slice %arg5[%9, %c8_i32_44] : memref<2x16x!tpu.dma_semaphore, #tpu.memory_space<semaphore_mem>> -> memref<1x1x!tpu.dma_semaphore, #tpu.memory_space<semaphore_mem>>
    %70 = tpu.memref_squeeze %69 : memref<1x1x!tpu.dma_semaphore, #tpu.memory_space<semaphore_mem>> -> memref<!tpu.dma_semaphore, #tpu.memory_space<semaphore_mem>>
    tpu.wait_dma2 semaphore(%70 : memref<!tpu.dma_semaphore, #tpu.memory_space<semaphore_mem>>) src(%66 : memref<128xf32, #tpu.memory_space<any>>) dst(%68 : memref<128xf32, #tpu.memory_space<vmem>>)
    %c0_i32_47 = arith.constant 0 : i32
    %c9_i32 = arith.constant 9 : i32
    %c9_i32_48 = arith.constant 9 : i32
    %c0_i32_49 = arith.constant 0 : i32
    %71 = tpu.memref_slice %arg2[%c0_i32_47, %c0_i32_49] : memref<129x128xf32, #tpu.memory_space<any>> -> memref<1x128xf32, #tpu.memory_space<any>>
    %72 = tpu.memref_squeeze %71 : memref<1x128xf32, #tpu.memory_space<any>> -> memref<128xf32, #tpu.memory_space<any>>
    %c0_i32_50 = arith.constant 0 : i32
    %73 = tpu.memref_slice %arg4[%9, %c9_i32, %c0_i32_50] : memref<2x16x128xf32, #tpu.memory_space<vmem>> -> memref<1x1x128xf32, #tpu.memory_space<vmem>>
    %74 = tpu.memref_squeeze %73 : memref<1x1x128xf32, #tpu.memory_space<vmem>> -> memref<128xf32, #tpu.memory_space<vmem>>
    %75 = tpu.memref_slice %arg5[%9, %c9_i32_48] : memref<2x16x!tpu.dma_semaphore, #tpu.memory_space<semaphore_mem>> -> memref<1x1x!tpu.dma_semaphore, #tpu.memory_space<semaphore_mem>>
    %76 = tpu.memref_squeeze %75 : memref<1x1x!tpu.dma_semaphore, #tpu.memory_space<semaphore_mem>> -> memref<!tpu.dma_semaphore, #tpu.memory_space<semaphore_mem>>
    tpu.wait_dma2 semaphore(%76 : memref<!tpu.dma_semaphore, #tpu.memory_space<semaphore_mem>>) src(%72 : memref<128xf32, #tpu.memory_space<any>>) dst(%74 : memref<128xf32, #tpu.memory_space<vmem>>)
    %c0_i32_51 = arith.constant 0 : i32
    %c10_i32 = arith.constant 10 : i32
    %c10_i32_52 = arith.constant 10 : i32
    %c0_i32_53 = arith.constant 0 : i32
    %77 = tpu.memref_slice %arg2[%c0_i32_51, %c0_i32_53] : memref<129x128xf32, #tpu.memory_space<any>> -> memref<1x128xf32, #tpu.memory_space<any>>
    %78 = tpu.memref_squeeze %77 : memref<1x128xf32, #tpu.memory_space<any>> -> memref<128xf32, #tpu.memory_space<any>>
    %c0_i32_54 = arith.constant 0 : i32
    %79 = tpu.memref_slice %arg4[%9, %c10_i32, %c0_i32_54] : memref<2x16x128xf32, #tpu.memory_space<vmem>> -> memref<1x1x128xf32, #tpu.memory_space<vmem>>
    %80 = tpu.memref_squeeze %79 : memref<1x1x128xf32, #tpu.memory_space<vmem>> -> memref<128xf32, #tpu.memory_space<vmem>>
    %81 = tpu.memref_slice %arg5[%9, %c10_i32_52] : memref<2x16x!tpu.dma_semaphore, #tpu.memory_space<semaphore_mem>> -> memref<1x1x!tpu.dma_semaphore, #tpu.memory_space<semaphore_mem>>
    %82 = tpu.memref_squeeze %81 : memref<1x1x!tpu.dma_semaphore, #tpu.memory_space<semaphore_mem>> -> memref<!tpu.dma_semaphore, #tpu.memory_space<semaphore_mem>>
    tpu.wait_dma2 semaphore(%82 : memref<!tpu.dma_semaphore, #tpu.memory_space<semaphore_mem>>) src(%78 : memref<128xf32, #tpu.memory_space<any>>) dst(%80 : memref<128xf32, #tpu.memory_space<vmem>>)
    %c0_i32_55 = arith.constant 0 : i32
    %c11_i32 = arith.constant 11 : i32
    %c11_i32_56 = arith.constant 11 : i32
    %c0_i32_57 = arith.constant 0 : i32
    %83 = tpu.memref_slice %arg2[%c0_i32_55, %c0_i32_57] : memref<129x128xf32, #tpu.memory_space<any>> -> memref<1x128xf32, #tpu.memory_space<any>>
    %84 = tpu.memref_squeeze %83 : memref<1x128xf32, #tpu.memory_space<any>> -> memref<128xf32, #tpu.memory_space<any>>
    %c0_i32_58 = arith.constant 0 : i32
    %85 = tpu.memref_slice %arg4[%9, %c11_i32, %c0_i32_58] : memref<2x16x128xf32, #tpu.memory_space<vmem>> -> memref<1x1x128xf32, #tpu.memory_space<vmem>>
    %86 = tpu.memref_squeeze %85 : memref<1x1x128xf32, #tpu.memory_space<vmem>> -> memref<128xf32, #tpu.memory_space<vmem>>
    %87 = tpu.memref_slice %arg5[%9, %c11_i32_56] : memref<2x16x!tpu.dma_semaphore, #tpu.memory_space<semaphore_mem>> -> memref<1x1x!tpu.dma_semaphore, #tpu.memory_space<semaphore_mem>>
    %88 = tpu.memref_squeeze %87 : memref<1x1x!tpu.dma_semaphore, #tpu.memory_space<semaphore_mem>> -> memref<!tpu.dma_semaphore, #tpu.memory_space<semaphore_mem>>
    tpu.wait_dma2 semaphore(%88 : memref<!tpu.dma_semaphore, #tpu.memory_space<semaphore_mem>>) src(%84 : memref<128xf32, #tpu.memory_space<any>>) dst(%86 : memref<128xf32, #tpu.memory_space<vmem>>)
    %c0_i32_59 = arith.constant 0 : i32
    %c12_i32 = arith.constant 12 : i32
    %c12_i32_60 = arith.constant 12 : i32
    %c0_i32_61 = arith.constant 0 : i32
    %89 = tpu.memref_slice %arg2[%c0_i32_59, %c0_i32_61] : memref<129x128xf32, #tpu.memory_space<any>> -> memref<1x128xf32, #tpu.memory_space<any>>
    %90 = tpu.memref_squeeze %89 : memref<1x128xf32, #tpu.memory_space<any>> -> memref<128xf32, #tpu.memory_space<any>>
    %c0_i32_62 = arith.constant 0 : i32
    %91 = tpu.memref_slice %arg4[%9, %c12_i32, %c0_i32_62] : memref<2x16x128xf32, #tpu.memory_space<vmem>> -> memref<1x1x128xf32, #tpu.memory_space<vmem>>
    %92 = tpu.memref_squeeze %91 : memref<1x1x128xf32, #tpu.memory_space<vmem>> -> memref<128xf32, #tpu.memory_space<vmem>>
    %93 = tpu.memref_slice %arg5[%9, %c12_i32_60] : memref<2x16x!tpu.dma_semaphore, #tpu.memory_space<semaphore_mem>> -> memref<1x1x!tpu.dma_semaphore, #tpu.memory_space<semaphore_mem>>
    %94 = tpu.memref_squeeze %93 : memref<1x1x!tpu.dma_semaphore, #tpu.memory_space<semaphore_mem>> -> memref<!tpu.dma_semaphore, #tpu.memory_space<semaphore_mem>>
    tpu.wait_dma2 semaphore(%94 : memref<!tpu.dma_semaphore, #tpu.memory_space<semaphore_mem>>) src(%90 : memref<128xf32, #tpu.memory_space<any>>) dst(%92 : memref<128xf32, #tpu.memory_space<vmem>>)
    %c0_i32_63 = arith.constant 0 : i32
    %c13_i32 = arith.constant 13 : i32
    %c13_i32_64 = arith.constant 13 : i32
    %c0_i32_65 = arith.constant 0 : i32
    %95 = tpu.memref_slice %arg2[%c0_i32_63, %c0_i32_65] : memref<129x128xf32, #tpu.memory_space<any>> -> memref<1x128xf32, #tpu.memory_space<any>>
    %96 = tpu.memref_squeeze %95 : memref<1x128xf32, #tpu.memory_space<any>> -> memref<128xf32, #tpu.memory_space<any>>
    %c0_i32_66 = arith.constant 0 : i32
    %97 = tpu.memref_slice %arg4[%9, %c13_i32, %c0_i32_66] : memref<2x16x128xf32, #tpu.memory_space<vmem>> -> memref<1x1x128xf32, #tpu.memory_space<vmem>>
    %98 = tpu.memref_squeeze %97 : memref<1x1x128xf32, #tpu.memory_space<vmem>> -> memref<128xf32, #tpu.memory_space<vmem>>
    %99 = tpu.memref_slice %arg5[%9, %c13_i32_64] : memref<2x16x!tpu.dma_semaphore, #tpu.memory_space<semaphore_mem>> -> memref<1x1x!tpu.dma_semaphore, #tpu.memory_space<semaphore_mem>>
    %100 = tpu.memref_squeeze %99 : memref<1x1x!tpu.dma_semaphore, #tpu.memory_space<semaphore_mem>> -> memref<!tpu.dma_semaphore, #tpu.memory_space<semaphore_mem>>
    tpu.wait_dma2 semaphore(%100 : memref<!tpu.dma_semaphore, #tpu.memory_space<semaphore_mem>>) src(%96 : memref<128xf32, #tpu.memory_space<any>>) dst(%98 : memref<128xf32, #tpu.memory_space<vmem>>)
    %c0_i32_67 = arith.constant 0 : i32
    %c14_i32 = arith.constant 14 : i32
    %c14_i32_68 = arith.constant 14 : i32
    %c0_i32_69 = arith.constant 0 : i32
    %101 = tpu.memref_slice %arg2[%c0_i32_67, %c0_i32_69] : memref<129x128xf32, #tpu.memory_space<any>> -> memref<1x128xf32, #tpu.memory_space<any>>
    %102 = tpu.memref_squeeze %101 : memref<1x128xf32, #tpu.memory_space<any>> -> memref<128xf32, #tpu.memory_space<any>>
    %c0_i32_70 = arith.constant 0 : i32
    %103 = tpu.memref_slice %arg4[%9, %c14_i32, %c0_i32_70] : memref<2x16x128xf32, #tpu.memory_space<vmem>> -> memref<1x1x128xf32, #tpu.memory_space<vmem>>
    %104 = tpu.memref_squeeze %103 : memref<1x1x128xf32, #tpu.memory_space<vmem>> -> memref<128xf32, #tpu.memory_space<vmem>>
    %105 = tpu.memref_slice %arg5[%9, %c14_i32_68] : memref<2x16x!tpu.dma_semaphore, #tpu.memory_space<semaphore_mem>> -> memref<1x1x!tpu.dma_semaphore, #tpu.memory_space<semaphore_mem>>
    %106 = tpu.memref_squeeze %105 : memref<1x1x!tpu.dma_semaphore, #tpu.memory_space<semaphore_mem>> -> memref<!tpu.dma_semaphore, #tpu.memory_space<semaphore_mem>>
    tpu.wait_dma2 semaphore(%106 : memref<!tpu.dma_semaphore, #tpu.memory_space<semaphore_mem>>) src(%102 : memref<128xf32, #tpu.memory_space<any>>) dst(%104 : memref<128xf32, #tpu.memory_space<vmem>>)
    %c0_i32_71 = arith.constant 0 : i32
    %c15_i32 = arith.constant 15 : i32
    %c15_i32_72 = arith.constant 15 : i32
    %c0_i32_73 = arith.constant 0 : i32
    %107 = tpu.memref_slice %arg2[%c0_i32_71, %c0_i32_73] : memref<129x128xf32, #tpu.memory_space<any>> -> memref<1x128xf32, #tpu.memory_space<any>>
    %108 = tpu.memref_squeeze %107 : memref<1x128xf32, #tpu.memory_space<any>> -> memref<128xf32, #tpu.memory_space<any>>
    %c0_i32_74 = arith.constant 0 : i32
    %109 = tpu.memref_slice %arg4[%9, %c15_i32, %c0_i32_74] : memref<2x16x128xf32, #tpu.memory_space<vmem>> -> memref<1x1x128xf32, #tpu.memory_space<vmem>>
    %110 = tpu.memref_squeeze %109 : memref<1x1x128xf32, #tpu.memory_space<vmem>> -> memref<128xf32, #tpu.memory_space<vmem>>
    %111 = tpu.memref_slice %arg5[%9, %c15_i32_72] : memref<2x16x!tpu.dma_semaphore, #tpu.memory_space<semaphore_mem>> -> memref<1x1x!tpu.dma_semaphore, #tpu.memory_space<semaphore_mem>>
    %112 = tpu.memref_squeeze %111 : memref<1x1x!tpu.dma_semaphore, #tpu.memory_space<semaphore_mem>> -> memref<!tpu.dma_semaphore, #tpu.memory_space<semaphore_mem>>
    tpu.wait_dma2 semaphore(%112 : memref<!tpu.dma_semaphore, #tpu.memory_space<semaphore_mem>>) src(%108 : memref<128xf32, #tpu.memory_space<any>>) dst(%110 : memref<128xf32, #tpu.memory_space<vmem>>)
    %113 = arith.index_cast %9 : i32 to index
    %c0 = arith.constant 0 : index
    %c0_75 = arith.constant 0 : index
    %114 = vector.load %arg4[%113, %c0, %c0_75] : memref<2x16x128xf32, #tpu.memory_space<vmem>>, vector<1x16x128xf32>
    %115 = vector.shape_cast %114 : vector<1x16x128xf32> to vector<16x128xf32>
    %c0_76 = arith.constant 0 : index
    %c0_77 = arith.constant 0 : index
    %116 = vector.load %arg3[%c0_76, %c0_77] : memref<16x128xf32, #tpu.memory_space<vmem>>, vector<16x128xf32>
    tpu.vector_store %arg3[%c0_76, %c0_77], %115 {strides = array<i32>} : memref<16x128xf32, #tpu.memory_space<vmem>>, vector<16x128xf32>,
    return
  }
  func.func @transform_1(%arg0: i32, %arg1: memref<16xi32, #tpu.memory_space<smem>>) -> (i32, i32) {
    %c0_i32 = arith.constant 0 : i32
    %c0_i32_0 = arith.constant 0 : i32
    return %arg0, %c0_i32 : i32, i32
  }
}

</mosaic_0001>

<llo_original>
// kernel: vocab_parallel_embedding.1
$region0: #{vocab_parallel_embedding.1}
  #allocation0 [shape = 'u32[]', space=smem, size = 0x4, offset = 0x4, fixed_abs, tag = 'smem constant byte address 0x4 - core index']
  #allocation1 [shape = 'u32[72,128]{1,0:T(1,128)}', space=vmem, size = 0x9000, scoped, tag = 'internal scratch']
  #allocation2 [shape = 'f32[2,16,128]{2,1,0:T(8,128)}', space=vmem, size = 0x4000, scoped, tag = 'scratch operand']
  #allocation3 [shape = 's32[32]{0}', space=sflag, size = 0x80, scoped, tag = 'scratch operand']
  #allocation4 [shape = 's32[1]{0}', space=sflag, size = 0x4, scoped, tag = 'scoped memory for vocab_parallel_embedding.1']
  #allocation5 [shape = 'u8[512]{0}', space=smem, size = 0x200, scoped, tag = 'prefetched SMEM operand 0']
  #allocation8 [shape = 's32[]', space=sflag, size = 0x4, offset = 0, fixed_abs, tag = 'sflag constant byte address 0x0 - dummy sync flag']
  #allocation9 [shape = 's32[]', space=sflag, size = 0x4, offset = 0, fixed_abs, tag = 'sflag constant byte address 0x0 - dummy sync flag']
  #allocation10 [shape = 's32[]', space=sflag, size = 0x4, offset = 0, fixed_abs, tag = 'sflag constant byte address 0x0 - dummy sync flag']
  #allocation11 [shape = 's32[]', space=sflag, size = 0x4, offset = 0, fixed_abs, tag = 'sflag constant byte address 0x0 - dummy sync flag']
  #allocation12 [shape = 's32[]', space=sflag, size = 0x4, offset = 0, fixed_abs, tag = 'sflag constant byte address 0x0 - dummy sync flag']
  #allocation13 [shape = 's32[]', space=sflag, size = 0x4, offset = 0, fixed_abs, tag = 'sflag constant byte address 0x0 - dummy sync flag']
  #allocation14 [shape = 's32[]', space=sflag, size = 0x4, offset = 0, fixed_abs, tag = 'sflag constant byte address 0x0 - dummy sync flag']
  #allocation15 [shape = 's32[]', space=sflag, size = 0x4, offset = 0, fixed_abs, tag = 'sflag constant byte address 0x0 - dummy sync flag']
  #allocation16 [shape = 's32[]', space=sflag, size = 0x4, offset = 0, fixed_abs, tag = 'sflag constant byte address 0x0 - dummy sync flag']
  #allocation17 [shape = 's32[]', space=sflag, size = 0x4, offset = 0, fixed_abs, tag = 'sflag constant byte address 0x0 - dummy sync flag']
  #allocation18 [shape = 's32[]', space=sflag, size = 0x4, offset = 0, fixed_abs, tag = 'sflag constant byte address 0x0 - dummy sync flag']
  #allocation19 [shape = 's32[]', space=sflag, size = 0x4, offset = 0, fixed_abs, tag = 'sflag constant byte address 0x0 - dummy sync flag']
  #allocation20 [shape = 's32[]', space=sflag, size = 0x4, offset = 0, fixed_abs, tag = 'sflag constant byte address 0x0 - dummy sync flag']
  #allocation21 [shape = 's32[]', space=sflag, size = 0x4, offset = 0, fixed_abs, tag = 'sflag constant byte address 0x0 - dummy sync flag']
  #allocation22 [shape = 's32[]', space=sflag, size = 0x4, offset = 0, fixed_abs, tag = 'sflag constant byte address 0x0 - dummy sync flag']
  #allocation23 [shape = 's32[]', space=sflag, size = 0x4, offset = 0, fixed_abs, tag = 'sflag constant byte address 0x0 - dummy sync flag']
  #allocation24 [shape = 's32[]', space=sflag, size = 0x4, offset = 0, fixed_abs, tag = 'sflag constant byte address 0x0 - dummy sync flag']
  #allocation25 [shape = 's32[]', space=sflag, size = 0x4, offset = 0, fixed_abs, tag = 'sflag constant byte address 0x0 - dummy sync flag']
  #allocation26 [shape = 's32[]', space=sflag, size = 0x4, offset = 0, fixed_abs, tag = 'sflag constant byte address 0x0 - dummy sync flag']
  #allocation27 [shape = 's32[]', space=sflag, size = 0x4, offset = 0, fixed_abs, tag = 'sflag constant byte address 0x0 - dummy sync flag']
  #allocation28 [shape = 's32[]', space=sflag, size = 0x4, offset = 0, fixed_abs, tag = 'sflag constant byte address 0x0 - dummy sync flag']
  #allocation29 [shape = 's32[]', space=sflag, size = 0x4, offset = 0, fixed_abs, tag = 'sflag constant byte address 0x0 - dummy sync flag']
  #allocation30 [shape = 's32[]', space=sflag, size = 0x4, offset = 0, fixed_abs, tag = 'sflag constant byte address 0x0 - dummy sync flag']
  #allocation31 [shape = 's32[]', space=sflag, size = 0x4, offset = 0, fixed_abs, tag = 'sflag constant byte address 0x0 - dummy sync flag']
  #allocation32 [shape = 's32[]', space=sflag, size = 0x4, offset = 0, fixed_abs, tag = 'sflag constant byte address 0x0 - dummy sync flag']
  #allocation33 [shape = 's32[]', space=sflag, size = 0x4, offset = 0, fixed_abs, tag = 'sflag constant byte address 0x0 - dummy sync flag']
  #allocation34 [shape = 's32[]', space=sflag, size = 0x4, offset = 0, fixed_abs, tag = 'sflag constant byte address 0x0 - dummy sync flag']
  #allocation35 [shape = 's32[]', space=sflag, size = 0x4, offset = 0, fixed_abs, tag = 'sflag constant byte address 0x0 - dummy sync flag']
  #allocation36 [shape = 's32[]', space=sflag, size = 0x4, offset = 0, fixed_abs, tag = 'sflag constant byte address 0x0 - dummy sync flag']
  #allocation37 [shape = 's32[]', space=sflag, size = 0x4, offset = 0, fixed_abs, tag = 'sflag constant byte address 0x0 - dummy sync flag']
  #allocation38 [shape = 's32[]', space=sflag, size = 0x4, offset = 0, fixed_abs, tag = 'sflag constant byte address 0x0 - dummy sync flag']
  #allocation39 [shape = 's32[]', space=sflag, size = 0x4, offset = 0, fixed_abs, tag = 'sflag constant byte address 0x0 - dummy sync flag']
  %s0 = inlined_call_operand.vmem [shape: s32[16], index: 0, kind: input, shape index: {}]
  %s1 = inlined_call_operand.vmem [shape: f32[129,128], index: 1, kind: input, shape index: {}]
  %s2 = inlined_call_operand.hbm [shape: f32[16,128], index: 2, kind: output, shape index: {}]
  %s3 = sld [smem:[#allocation0]]
  $region978: #{vocab_parallel_embedding.1} parent=0
    _
  %s5 = ssub.s32 1, %s3
  %s6 = scalar_select 0, %s5, %s3
  %s8 = sshll.u32 %s0, 4
  %s9 = int_to_ptr.vmem [resolvable:$true] %s8
  %11 = dma.vmem_to_smem %s9, 16, [#allocation5], [#allocation4]
  %13 = dma.done [#allocation4], 16
  %14 = sfence
  $region1: #{vocab_parallel_embedding.1} parent=0
    #allocation6 [shape = 'u8[8192]{0}', space=vmem, size = 0x2000, scoped, tag = 'output window, operand 0, single buffered']
    #allocation7 [shape = 's32[1]{0}', space=sflag, size = 0x4, scoped, tag = 'scoped memory for vocab_parallel_embedding.1']
    %15 = vsyncpa [#allocation7], 0
    %s16 = ssub.s32 0, 0
    %s17 = ssub.s32 0, 0
    %p18 = scmp.ne.s32.totalorder 0, 0
    %p19 = scmp.lt.s32.totalorder 0, 0
    %p20 = pnand %p19, %p18
    %p21 = pneg %p20
    %s22 = sadd.s32 0, 2
    %s23 = scalar_select %p21, %s22, 0
    %p24 = scmp.eq.s32.totalorder 0, 0
    // Predicated region
    $region2: #{vocab_parallel_embedding.1} parent=1 // pred_check
      %p25 = pneg %p24
    $region3: #{vocab_parallel_embedding.1} parent=1 // pred_check_branch
      %27 = sbr.rel (%p25) target = $region5
    $region4: #{vocab_parallel_embedding.1} parent=1 // pred_region
      %s28 = sld [smem:[#allocation5]]
      %s29 = scalar_lea.vmem %s1, %s28
      // Predicated region
      $region6: #{vocab_parallel_embedding.1} parent=4 // pred_check
        _
      $region7: #{vocab_parallel_embedding.1} parent=4 // pred_check_branch
        %31 = sbr.rel target = $region9
      $region8: #{vocab_parallel_embedding.1} parent=4 // pred_region
        // Predicated region
        $region21: #{vocab_parallel_embedding.1} parent=8 // pred_check
          _
        $region22: #{vocab_parallel_embedding.1} parent=8 // pred_check_branch
          %47 = sbr.rel (0) target = $region24
        $region23: #{vocab_parallel_embedding.1} parent=8 // pred_region
          %s49 = ssub.s32 2, 1
          loop: start=0, step=1, limit=1
          $region25: #{vocab_parallel_embedding.1} parent=23 // loop_pre_header
            _
          $region26: #{vocab_parallel_embedding.1} parent=23 // loop_header
            %s51 = sphi 0, %s55
            %p52 = scmp.ge.s32.totalorder %s51, 1
            %s56 = sphi %s29, %s29
            %s57 = sphi [#allocation2], [#allocation2]
          $region27: #{vocab_parallel_embedding.1} parent=23 // loop_header_branch
            %54 = sbr.rel (%p52) target = $region31
          $region28: #{vocab_parallel_embedding.1} parent=23 // loop_body
            %v58 = vld [vmem:[%s56] sm:%s49]
            %59 = vst [vmem:[%s57] sm:%s49] %v58
          $region29: #{vocab_parallel_embedding.1} parent=23 // loop_footer
            %s55 = sadd.s32 1, %s51
          $region30: #{vocab_parallel_embedding.1} parent=23 // loop_footer_branch
            %50 = sbr.rel target = $region26
          $region31: #{vocab_parallel_embedding.1} parent=23 // loop_exit
            _
        $region24: #{vocab_parallel_embedding.1} parent=8 // pred_fallthru
          _
      $region9: #{vocab_parallel_embedding.1} parent=4 // pred_fallthru
        _
      // Predicated region
      $region10: #{vocab_parallel_embedding.1} parent=4 // pred_check
        _
      $region11: #{vocab_parallel_embedding.1} parent=4 // pred_check_branch
        %33 = sbr.rel (0) target = $region13
      $region12: #{vocab_parallel_embedding.1} parent=4 // pred_region
        %s35 = ssub.s32 2, 1
        loop: start=0, step=1, limit=1
        $region14: #{vocab_parallel_embedding.1} parent=12 // loop_pre_header
          _
        $region15: #{vocab_parallel_embedding.1} parent=12 // loop_header
          %s37 = sphi 0, %s41
          %p38 = scmp.ge.s32.totalorder %s37, 1
          %s42 = sphi %s29, %s29
          %s43 = sphi [#allocation2], [#allocation2]
        $region16: #{vocab_parallel_embedding.1} parent=12 // loop_header_branch
          %40 = sbr.rel (%p38) target = $region20
        $region17: #{vocab_parallel_embedding.1} parent=12 // loop_body
          %v44 = vld [vmem:[%s42] sm:%s35]
          %45 = vst [vmem:[%s43] sm:%s35] %v44
        $region18: #{vocab_parallel_embedding.1} parent=12 // loop_footer
          %s41 = sadd.s32 1, %s37
        $region19: #{vocab_parallel_embedding.1} parent=12 // loop_footer_branch
          %36 = sbr.rel target = $region15
        $region20: #{vocab_parallel_embedding.1} parent=12 // loop_exit
          _
      $region13: #{vocab_parallel_embedding.1} parent=4 // pred_fallthru
        _
      // Predicated region
      $region32: #{vocab_parallel_embedding.1} parent=4 // pred_check
        _
      $region33: #{vocab_parallel_embedding.1} parent=4 // pred_check_branch
        %62 = sbr.rel (0) target = $region35
      $region34: #{vocab_parallel_embedding.1} parent=4 // pred_region
        %63 = vsyncadd [#allocation3], 16
      $region35: #{vocab_parallel_embedding.1} parent=4 // pred_fallthru
        _
      %s64 = sld [smem:[#allocation5 + $0x1]]
      %s65 = scalar_lea.vmem %s1, %s64
      %s66 = scalar_lea.vmem [#allocation2], 1
      %s67 = scalar_lea.sflag [#allocation3], 1
      // Predicated region
      $region36: #{vocab_parallel_embedding.1} parent=4 // pred_check
        _
      $region37: #{vocab_parallel_embedding.1} parent=4 // pred_check_branch
        %69 = sbr.rel target = $region39
      $region38: #{vocab_parallel_embedding.1} parent=4 // pred_region
        // Predicated region
        $region51: #{vocab_parallel_embedding.1} parent=38 // pred_check
          _
        $region52: #{vocab_parallel_embedding.1} parent=38 // pred_check_branch
          %85 = sbr.rel (0) target = $region54
        $region53: #{vocab_parallel_embedding.1} parent=38 // pred_region
          %s87 = ssub.s32 2, 1
          loop: start=0, step=1, limit=1
          $region55: #{vocab_parallel_embedding.1} parent=53 // loop_pre_header
            _
          $region56: #{vocab_parallel_embedding.1} parent=53 // loop_header
            %s89 = sphi 0, %s93
            %p90 = scmp.ge.s32.totalorder %s89, 1
            %s94 = sphi %s65, %s65
            %s95 = sphi %s66, %s66
          $region57: #{vocab_parallel_embedding.1} parent=53 // loop_header_branch
            %92 = sbr.rel (%p90) target = $region61
          $region58: #{vocab_parallel_embedding.1} parent=53 // loop_body
            %v96 = vld [vmem:[%s94] sm:%s87]
            %97 = vst [vmem:[%s95] sm:%s87] %v96
          $region59: #{vocab_parallel_embedding.1} parent=53 // loop_footer
            %s93 = sadd.s32 1, %s89
          $region60: #{vocab_parallel_embedding.1} parent=53 // loop_footer_branch
            %88 = sbr.rel target = $region56
          $region61: #{vocab_parallel_embedding.1} parent=53 // loop_exit
            _
        $region54: #{vocab_parallel_embedding.1} parent=38 // pred_fallthru
          _
      $region39: #{vocab_parallel_embedding.1} parent=4 // pred_fallthru
        _
      // Predicated region
      $region40: #{vocab_parallel_embedding.1} parent=4 // pred_check
        _
      $region41: #{vocab_parallel_embedding.1} parent=4 // pred_check_branch
        %71 = sbr.rel (0) target = $region43
      $region42: #{vocab_parallel_embedding.1} parent=4 // pred_region
        %s73 = ssub.s32 2, 1
        loop: start=0, step=1, limit=1
        $region44: #{vocab_parallel_embedding.1} parent=42 // loop_pre_header
          _
        $region45: #{vocab_parallel_embedding.1} parent=42 // loop_header
          %s75 = sphi 0, %s79
          %p76 = scmp.ge.s32.totalorder %s75, 1
          %s80 = sphi %s65, %s65
          %s81 = sphi %s66, %s66
        $region46: #{vocab_parallel_embedding.1} parent=42 // loop_header_branch
          %78 = sbr.rel (%p76) target = $region50
        $region47: #{vocab_parallel_embedding.1} parent=42 // loop_body
          %v82 = vld [vmem:[%s80] sm:%s73]
          %83 = vst [vmem:[%s81] sm:%s73] %v82
        $region48: #{vocab_parallel_embedding.1} parent=42 // loop_footer
          %s79 = sadd.s32 1, %s75
        $region49: #{vocab_parallel_embedding.1} parent=42 // loop_footer_branch
          %74 = sbr.rel target = $region45
        $region50: #{vocab_parallel_embedding.1} parent=42 // loop_exit
          _
      $region43: #{vocab_parallel_embedding.1} parent=4 // pred_fallthru
        _
      // Predicated region
      $region62: #{vocab_parallel_embedding.1} parent=4 // pred_check
        _
      $region63: #{vocab_parallel_embedding.1} parent=4 // pred_check_branch
        %100 = sbr.rel (0) target = $region65
      $region64: #{vocab_parallel_embedding.1} parent=4 // pred_region
        %101 = vsyncadd %s67, 16
      $region65: #{vocab_parallel_embedding.1} parent=4 // pred_fallthru
        _
      %s102 = sld [smem:[#allocation5 + $0x2]]
      %s103 = scalar_lea.vmem %s1, %s102
      %s104 = scalar_lea.vmem [#allocation2], 2
      %s105 = scalar_lea.sflag [#allocation3], 2
      // Predicated region
      $region66: #{vocab_parallel_embedding.1} parent=4 // pred_check
        _
      $region67: #{vocab_parallel_embedding.1} parent=4 // pred_check_branch
        %107 = sbr.rel target = $region69
      $region68: #{vocab_parallel_embedding.1} parent=4 // pred_region
        // Predicated region
        $region81: #{vocab_parallel_embedding.1} parent=68 // pred_check
          _
        $region82: #{vocab_parallel_embedding.1} parent=68 // pred_check_branch
          %123 = sbr.rel (0) target = $region84
        $region83: #{vocab_parallel_embedding.1} parent=68 // pred_region
          %s125 = ssub.s32 2, 1
          loop: start=0, step=1, limit=1
          $region85: #{vocab_parallel_embedding.1} parent=83 // loop_pre_header
            _
          $region86: #{vocab_parallel_embedding.1} parent=83 // loop_header
            %s127 = sphi 0, %s131
            %p128 = scmp.ge.s32.totalorder %s127, 1
            %s132 = sphi %s103, %s103
            %s133 = sphi %s104, %s104
          $region87: #{vocab_parallel_embedding.1} parent=83 // loop_header_branch
            %130 = sbr.rel (%p128) target = $region91
          $region88: #{vocab_parallel_embedding.1} parent=83 // loop_body
            %v134 = vld [vmem:[%s132] sm:%s125]
            %135 = vst [vmem:[%s133] sm:%s125] %v134
          $region89: #{vocab_parallel_embedding.1} parent=83 // loop_footer
            %s131 = sadd.s32 1, %s127
          $region90: #{vocab_parallel_embedding.1} parent=83 // loop_footer_branch
            %126 = sbr.rel target = $region86
          $region91: #{vocab_parallel_embedding.1} parent=83 // loop_exit
            _
        $region84: #{vocab_parallel_embedding.1} parent=68 // pred_fallthru
          _
      $region69: #{vocab_parallel_embedding.1} parent=4 // pred_fallthru
        _
      // Predicated region
      $region70: #{vocab_parallel_embedding.1} parent=4 // pred_check
        _
      $region71: #{vocab_parallel_embedding.1} parent=4 // pred_check_branch
        %109 = sbr.rel (0) target = $region73
      $region72: #{vocab_parallel_embedding.1} parent=4 // pred_region
        %s111 = ssub.s32 2, 1
        loop: start=0, step=1, limit=1
        $region74: #{vocab_parallel_embedding.1} parent=72 // loop_pre_header
          _
        $region75: #{vocab_parallel_embedding.1} parent=72 // loop_header
          %s113 = sphi 0, %s117
          %p114 = scmp.ge.s32.totalorder %s113, 1
          %s118 = sphi %s103, %s103
          %s119 = sphi %s104, %s104
        $region76: #{vocab_parallel_embedding.1} parent=72 // loop_header_branch
          %116 = sbr.rel (%p114) target = $region80
        $region77: #{vocab_parallel_embedding.1} parent=72 // loop_body
          %v120 = vld [vmem:[%s118] sm:%s111]
          %121 = vst [vmem:[%s119] sm:%s111] %v120
        $region78: #{vocab_parallel_embedding.1} parent=72 // loop_footer
          %s117 = sadd.s32 1, %s113
        $region79: #{vocab_parallel_embedding.1} parent=72 // loop_footer_branch
          %112 = sbr.rel target = $region75
        $region80: #{vocab_parallel_embedding.1} parent=72 // loop_exit
          _
      $region73: #{vocab_parallel_embedding.1} parent=4 // pred_fallthru
        _
      // Predicated region
      $region92: #{vocab_parallel_embedding.1} parent=4 // pred_check
        _
      $region93: #{vocab_parallel_embedding.1} parent=4 // pred_check_branch
        %138 = sbr.rel (0) target = $region95
      $region94: #{vocab_parallel_embedding.1} parent=4 // pred_region
        %139 = vsyncadd %s105, 16
      $region95: #{vocab_parallel_embedding.1} parent=4 // pred_fallthru
        _
      %s140 = sld [smem:[#allocation5 + $0x3]]
      %s141 = scalar_lea.vmem %s1, %s140
      %s142 = scalar_lea.vmem [#allocation2], 3
      %s143 = scalar_lea.sflag [#allocation3], 3
      // Predicated region
      $region96: #{vocab_parallel_embedding.1} parent=4 // pred_check
        _
      $region97: #{vocab_parallel_embedding.1} parent=4 // pred_check_branch
        %145 = sbr.rel target = $region99
      $region98: #{vocab_parallel_embedding.1} parent=4 // pred_region
        // Predicated region
        $region111: #{vocab_parallel_embedding.1} parent=98 // pred_check
          _
        $region112: #{vocab_parallel_embedding.1} parent=98 // pred_check_branch
          %161 = sbr.rel (0) target = $region114
        $region113: #{vocab_parallel_embedding.1} parent=98 // pred_region
          %s163 = ssub.s32 2, 1
          loop: start=0, step=1, limit=1
          $region115: #{vocab_parallel_embedding.1} parent=113 // loop_pre_header
            _
          $region116: #{vocab_parallel_embedding.1} parent=113 // loop_header
            %s165 = sphi 0, %s169
            %p166 = scmp.ge.s32.totalorder %s165, 1
            %s170 = sphi %s141, %s141
            %s171 = sphi %s142, %s142
          $region117: #{vocab_parallel_embedding.1} parent=113 // loop_header_branch
            %168 = sbr.rel (%p166) target = $region121
          $region118: #{vocab_parallel_embedding.1} parent=113 // loop_body
            %v172 = vld [vmem:[%s170] sm:%s163]
            %173 = vst [vmem:[%s171] sm:%s163] %v172
          $region119: #{vocab_parallel_embedding.1} parent=113 // loop_footer
            %s169 = sadd.s32 1, %s165
          $region120: #{vocab_parallel_embedding.1} parent=113 // loop_footer_branch
            %164 = sbr.rel target = $region116
          $region121: #{vocab_parallel_embedding.1} parent=113 // loop_exit
            _
        $region114: #{vocab_parallel_embedding.1} parent=98 // pred_fallthru
          _
      $region99: #{vocab_parallel_embedding.1} parent=4 // pred_fallthru
        _
      // Predicated region
      $region100: #{vocab_parallel_embedding.1} parent=4 // pred_check
        _
      $region101: #{vocab_parallel_embedding.1} parent=4 // pred_check_branch
        %147 = sbr.rel (0) target = $region103
      $region102: #{vocab_parallel_embedding.1} parent=4 // pred_region
        %s149 = ssub.s32 2, 1
        loop: start=0, step=1, limit=1
        $region104: #{vocab_parallel_embedding.1} parent=102 // loop_pre_header
          _
        $region105: #{vocab_parallel_embedding.1} parent=102 // loop_header
          %s151 = sphi 0, %s155
          %p152 = scmp.ge.s32.totalorder %s151, 1
          %s156 = sphi %s141, %s141
          %s157 = sphi %s142, %s142
        $region106: #{vocab_parallel_embedding.1} parent=102 // loop_header_branch
          %154 = sbr.rel (%p152) target = $region110
        $region107: #{vocab_parallel_embedding.1} parent=102 // loop_body
          %v158 = vld [vmem:[%s156] sm:%s149]
          %159 = vst [vmem:[%s157] sm:%s149] %v158
        $region108: #{vocab_parallel_embedding.1} parent=102 // loop_footer
          %s155 = sadd.s32 1, %s151
        $region109: #{vocab_parallel_embedding.1} parent=102 // loop_footer_branch
          %150 = sbr.rel target = $region105
        $region110: #{vocab_parallel_embedding.1} parent=102 // loop_exit
          _
      $region103: #{vocab_parallel_embedding.1} parent=4 // pred_fallthru
        _
      // Predicated region
      $region122: #{vocab_parallel_embedding.1} parent=4 // pred_check
        _
      $region123: #{vocab_parallel_embedding.1} parent=4 // pred_check_branch
        %176 = sbr.rel (0) target = $region125
      $region124: #{vocab_parallel_embedding.1} parent=4 // pred_region
        %177 = vsyncadd %s143, 16
      $region125: #{vocab_parallel_embedding.1} parent=4 // pred_fallthru
        _
      %s178 = sld [smem:[#allocation5 + $0x4]]
      %s179 = scalar_lea.vmem %s1, %s178
      %s180 = scalar_lea.vmem [#allocation2], 4
      %s181 = scalar_lea.sflag [#allocation3], 4
      // Predicated region
      $region126: #{vocab_parallel_embedding.1} parent=4 // pred_check
        _
      $region127: #{vocab_parallel_embedding.1} parent=4 // pred_check_branch
        %183 = sbr.rel target = $region129
      $region128: #{vocab_parallel_embedding.1} parent=4 // pred_region
        // Predicated region
        $region141: #{vocab_parallel_embedding.1} parent=128 // pred_check
          _
        $region142: #{vocab_parallel_embedding.1} parent=128 // pred_check_branch
          %199 = sbr.rel (0) target = $region144
        $region143: #{vocab_parallel_embedding.1} parent=128 // pred_region
          %s201 = ssub.s32 2, 1
          loop: start=0, step=1, limit=1
          $region145: #{vocab_parallel_embedding.1} parent=143 // loop_pre_header
            _
          $region146: #{vocab_parallel_embedding.1} parent=143 // loop_header
            %s203 = sphi 0, %s207
            %p204 = scmp.ge.s32.totalorder %s203, 1
            %s208 = sphi %s179, %s179
            %s209 = sphi %s180, %s180
          $region147: #{vocab_parallel_embedding.1} parent=143 // loop_header_branch
            %206 = sbr.rel (%p204) target = $region151
          $region148: #{vocab_parallel_embedding.1} parent=143 // loop_body
            %v210 = vld [vmem:[%s208] sm:%s201]
            %211 = vst [vmem:[%s209] sm:%s201] %v210
          $region149: #{vocab_parallel_embedding.1} parent=143 // loop_footer
            %s207 = sadd.s32 1, %s203
          $region150: #{vocab_parallel_embedding.1} parent=143 // loop_footer_branch
            %202 = sbr.rel target = $region146
          $region151: #{vocab_parallel_embedding.1} parent=143 // loop_exit
            _
        $region144: #{vocab_parallel_embedding.1} parent=128 // pred_fallthru
          _
      $region129: #{vocab_parallel_embedding.1} parent=4 // pred_fallthru
        _
      // Predicated region
      $region130: #{vocab_parallel_embedding.1} parent=4 // pred_check
        _
      $region131: #{vocab_parallel_embedding.1} parent=4 // pred_check_branch
        %185 = sbr.rel (0) target = $region133
      $region132: #{vocab_parallel_embedding.1} parent=4 // pred_region
        %s187 = ssub.s32 2, 1
        loop: start=0, step=1, limit=1
        $region134: #{vocab_parallel_embedding.1} parent=132 // loop_pre_header
          _
        $region135: #{vocab_parallel_embedding.1} parent=132 // loop_header
          %s189 = sphi 0, %s193
          %p190 = scmp.ge.s32.totalorder %s189, 1
          %s194 = sphi %s179, %s179
          %s195 = sphi %s180, %s180
        $region136: #{vocab_parallel_embedding.1} parent=132 // loop_header_branch
          %192 = sbr.rel (%p190) target = $region140
        $region137: #{vocab_parallel_embedding.1} parent=132 // loop_body
          %v196 = vld [vmem:[%s194] sm:%s187]
          %197 = vst [vmem:[%s195] sm:%s187] %v196
        $region138: #{vocab_parallel_embedding.1} parent=132 // loop_footer
          %s193 = sadd.s32 1, %s189
        $region139: #{vocab_parallel_embedding.1} parent=132 // loop_footer_branch
          %188 = sbr.rel target = $region135
        $region140: #{vocab_parallel_embedding.1} parent=132 // loop_exit
          _
      $region133: #{vocab_parallel_embedding.1} parent=4 // pred_fallthru
        _
      // Predicated region
      $region152: #{vocab_parallel_embedding.1} parent=4 // pred_check
        _
      $region153: #{vocab_parallel_embedding.1} parent=4 // pred_check_branch
        %214 = sbr.rel (0) target = $region155
      $region154: #{vocab_parallel_embedding.1} parent=4 // pred_region
        %215 = vsyncadd %s181, 16
      $region155: #{vocab_parallel_embedding.1} parent=4 // pred_fallthru
        _
      %s216 = sld [smem:[#allocation5 + $0x5]]
      %s217 = scalar_lea.vmem %s1, %s216
      %s218 = scalar_lea.vmem [#allocation2], 5
      %s219 = scalar_lea.sflag [#allocation3], 5
      // Predicated region
      $region156: #{vocab_parallel_embedding.1} parent=4 // pred_check
        _
      $region157: #{vocab_parallel_embedding.1} parent=4 // pred_check_branch
        %221 = sbr.rel target = $region159
      $region158: #{vocab_parallel_embedding.1} parent=4 // pred_region
        // Predicated region
        $region171: #{vocab_parallel_embedding.1} parent=158 // pred_check
          _
        $region172: #{vocab_parallel_embedding.1} parent=158 // pred_check_branch
          %237 = sbr.rel (0) target = $region174
        $region173: #{vocab_parallel_embedding.1} parent=158 // pred_region
          %s239 = ssub.s32 2, 1
          loop: start=0, step=1, limit=1
          $region175: #{vocab_parallel_embedding.1} parent=173 // loop_pre_header
            _
          $region176: #{vocab_parallel_embedding.1} parent=173 // loop_header
            %s241 = sphi 0, %s245
            %p242 = scmp.ge.s32.totalorder %s241, 1
            %s246 = sphi %s217, %s217
            %s247 = sphi %s218, %s218
          $region177: #{vocab_parallel_embedding.1} parent=173 // loop_header_branch
            %244 = sbr.rel (%p242) target = $region181
          $region178: #{vocab_parallel_embedding.1} parent=173 // loop_body
            %v248 = vld [vmem:[%s246] sm:%s239]
            %249 = vst [vmem:[%s247] sm:%s239] %v248
          $region179: #{vocab_parallel_embedding.1} parent=173 // loop_footer
            %s245 = sadd.s32 1, %s241
          $region180: #{vocab_parallel_embedding.1} parent=173 // loop_footer_branch
            %240 = sbr.rel target = $region176
          $region181: #{vocab_parallel_embedding.1} parent=173 // loop_exit
            _
        $region174: #{vocab_parallel_embedding.1} parent=158 // pred_fallthru
          _
      $region159: #{vocab_parallel_embedding.1} parent=4 // pred_fallthru
        _
      // Predicated region
      $region160: #{vocab_parallel_embedding.1} parent=4 // pred_check
        _
      $region161: #{vocab_parallel_embedding.1} parent=4 // pred_check_branch
        %223 = sbr.rel (0) target = $region163
      $region162: #{vocab_parallel_embedding.1} parent=4 // pred_region
        %s225 = ssub.s32 2, 1
        loop: start=0, step=1, limit=1
        $region164: #{vocab_parallel_embedding.1} parent=162 // loop_pre_header
          _
        $region165: #{vocab_parallel_embedding.1} parent=162 // loop_header
          %s227 = sphi 0, %s231
          %p228 = scmp.ge.s32.totalorder %s227, 1
          %s232 = sphi %s217, %s217
          %s233 = sphi %s218, %s218
        $region166: #{vocab_parallel_embedding.1} parent=162 // loop_header_branch
          %230 = sbr.rel (%p228) target = $region170
        $region167: #{vocab_parallel_embedding.1} parent=162 // loop_body
          %v234 = vld [vmem:[%s232] sm:%s225]
          %235 = vst [vmem:[%s233] sm:%s225] %v234
        $region168: #{vocab_parallel_embedding.1} parent=162 // loop_footer
          %s231 = sadd.s32 1, %s227
        $region169: #{vocab_parallel_embedding.1} parent=162 // loop_footer_branch
          %226 = sbr.rel target = $region165
        $region170: #{vocab_parallel_embedding.1} parent=162 // loop_exit
          _
      $region163: #{vocab_parallel_embedding.1} parent=4 // pred_fallthru
        _
      // Predicated region
      $region182: #{vocab_parallel_embedding.1} parent=4 // pred_check
        _
      $region183: #{vocab_parallel_embedding.1} parent=4 // pred_check_branch
        %252 = sbr.rel (0) target = $region185
      $region184: #{vocab_parallel_embedding.1} parent=4 // pred_region
        %253 = vsyncadd %s219, 16
      $region185: #{vocab_parallel_embedding.1} parent=4 // pred_fallthru
        _
      %s254 = sld [smem:[#allocation5 + $0x6]]
      %s255 = scalar_lea.vmem %s1, %s254
      %s256 = scalar_lea.vmem [#allocation2], 6
      %s257 = scalar_lea.sflag [#allocation3], 6
      // Predicated region
      $region186: #{vocab_parallel_embedding.1} parent=4 // pred_check
        _
      $region187: #{vocab_parallel_embedding.1} parent=4 // pred_check_branch
        %259 = sbr.rel target = $region189
      $region188: #{vocab_parallel_embedding.1} parent=4 // pred_region
        // Predicated region
        $region201: #{vocab_parallel_embedding.1} parent=188 // pred_check
          _
        $region202: #{vocab_parallel_embedding.1} parent=188 // pred_check_branch
          %275 = sbr.rel (0) target = $region204
        $region203: #{vocab_parallel_embedding.1} parent=188 // pred_region
          %s277 = ssub.s32 2, 1
          loop: start=0, step=1, limit=1
          $region205: #{vocab_parallel_embedding.1} parent=203 // loop_pre_header
            _
          $region206: #{vocab_parallel_embedding.1} parent=203 // loop_header
            %s279 = sphi 0, %s283
            %p280 = scmp.ge.s32.totalorder %s279, 1
            %s284 = sphi %s255, %s255
            %s285 = sphi %s256, %s256
          $region207: #{vocab_parallel_embedding.1} parent=203 // loop_header_branch
            %282 = sbr.rel (%p280) target = $region211
          $region208: #{vocab_parallel_embedding.1} parent=203 // loop_body
            %v286 = vld [vmem:[%s284] sm:%s277]
            %287 = vst [vmem:[%s285] sm:%s277] %v286
          $region209: #{vocab_parallel_embedding.1} parent=203 // loop_footer
            %s283 = sadd.s32 1, %s279
          $region210: #{vocab_parallel_embedding.1} parent=203 // loop_footer_branch
            %278 = sbr.rel target = $region206
          $region211: #{vocab_parallel_embedding.1} parent=203 // loop_exit
            _
        $region204: #{vocab_parallel_embedding.1} parent=188 // pred_fallthru
          _
      $region189: #{vocab_parallel_embedding.1} parent=4 // pred_fallthru
        _
      // Predicated region
      $region190: #{vocab_parallel_embedding.1} parent=4 // pred_check
        _
      $region191: #{vocab_parallel_embedding.1} parent=4 // pred_check_branch
        %261 = sbr.rel (0) target = $region193
      $region192: #{vocab_parallel_embedding.1} parent=4 // pred_region
        %s263 = ssub.s32 2, 1
        loop: start=0, step=1, limit=1
        $region194: #{vocab_parallel_embedding.1} parent=192 // loop_pre_header
          _
        $region195: #{vocab_parallel_embedding.1} parent=192 // loop_header
          %s265 = sphi 0, %s269
          %p266 = scmp.ge.s32.totalorder %s265, 1
          %s270 = sphi %s255, %s255
          %s271 = sphi %s256, %s256
        $region196: #{vocab_parallel_embedding.1} parent=192 // loop_header_branch
          %268 = sbr.rel (%p266) target = $region200
        $region197: #{vocab_parallel_embedding.1} parent=192 // loop_body
          %v272 = vld [vmem:[%s270] sm:%s263]
          %273 = vst [vmem:[%s271] sm:%s263] %v272
        $region198: #{vocab_parallel_embedding.1} parent=192 // loop_footer
          %s269 = sadd.s32 1, %s265
        $region199: #{vocab_parallel_embedding.1} parent=192 // loop_footer_branch
          %264 = sbr.rel target = $region195
        $region200: #{vocab_parallel_embedding.1} parent=192 // loop_exit
          _
      $region193: #{vocab_parallel_embedding.1} parent=4 // pred_fallthru
        _
      // Predicated region
      $region212: #{vocab_parallel_embedding.1} parent=4 // pred_check
        _
      $region213: #{vocab_parallel_embedding.1} parent=4 // pred_check_branch
        %290 = sbr.rel (0) target = $region215
      $region214: #{vocab_parallel_embedding.1} parent=4 // pred_region
        %291 = vsyncadd %s257, 16
      $region215: #{vocab_parallel_embedding.1} parent=4 // pred_fallthru
        _
      %s292 = sld [smem:[#allocation5 + $0x7]]
      %s293 = scalar_lea.vmem %s1, %s292
      %s294 = scalar_lea.vmem [#allocation2], 7
      %s295 = scalar_lea.sflag [#allocation3], 7
      // Predicated region
      $region216: #{vocab_parallel_embedding.1} parent=4 // pred_check
        _
      $region217: #{vocab_parallel_embedding.1} parent=4 // pred_check_branch
        %297 = sbr.rel target = $region219
      $region218: #{vocab_parallel_embedding.1} parent=4 // pred_region
        // Predicated region
        $region231: #{vocab_parallel_embedding.1} parent=218 // pred_check
          _
        $region232: #{vocab_parallel_embedding.1} parent=218 // pred_check_branch
          %313 = sbr.rel (0) target = $region234
        $region233: #{vocab_parallel_embedding.1} parent=218 // pred_region
          %s315 = ssub.s32 2, 1
          loop: start=0, step=1, limit=1
          $region235: #{vocab_parallel_embedding.1} parent=233 // loop_pre_header
            _
          $region236: #{vocab_parallel_embedding.1} parent=233 // loop_header
            %s317 = sphi 0, %s321
            %p318 = scmp.ge.s32.totalorder %s317, 1
            %s322 = sphi %s293, %s293
            %s323 = sphi %s294, %s294
          $region237: #{vocab_parallel_embedding.1} parent=233 // loop_header_branch
            %320 = sbr.rel (%p318) target = $region241
          $region238: #{vocab_parallel_embedding.1} parent=233 // loop_body
            %v324 = vld [vmem:[%s322] sm:%s315]
            %325 = vst [vmem:[%s323] sm:%s315] %v324
          $region239: #{vocab_parallel_embedding.1} parent=233 // loop_footer
            %s321 = sadd.s32 1, %s317
          $region240: #{vocab_parallel_embedding.1} parent=233 // loop_footer_branch
            %316 = sbr.rel target = $region236
          $region241: #{vocab_parallel_embedding.1} parent=233 // loop_exit
            _
        $region234: #{vocab_parallel_embedding.1} parent=218 // pred_fallthru
          _
      $region219: #{vocab_parallel_embedding.1} parent=4 // pred_fallthru
        _
      // Predicated region
      $region220: #{vocab_parallel_embedding.1} parent=4 // pred_check
        _
      $region221: #{vocab_parallel_embedding.1} parent=4 // pred_check_branch
        %299 = sbr.rel (0) target = $region223
      $region222: #{vocab_parallel_embedding.1} parent=4 // pred_region
        %s301 = ssub.s32 2, 1
        loop: start=0, step=1, limit=1
        $region224: #{vocab_parallel_embedding.1} parent=222 // loop_pre_header
          _
        $region225: #{vocab_parallel_embedding.1} parent=222 // loop_header
          %s303 = sphi 0, %s307
          %p304 = scmp.ge.s32.totalorder %s303, 1
          %s308 = sphi %s293, %s293
          %s309 = sphi %s294, %s294
        $region226: #{vocab_parallel_embedding.1} parent=222 // loop_header_branch
          %306 = sbr.rel (%p304) target = $region230
        $region227: #{vocab_parallel_embedding.1} parent=222 // loop_body
          %v310 = vld [vmem:[%s308] sm:%s301]
          %311 = vst [vmem:[%s309] sm:%s301] %v310
        $region228: #{vocab_parallel_embedding.1} parent=222 // loop_footer
          %s307 = sadd.s32 1, %s303
        $region229: #{vocab_parallel_embedding.1} parent=222 // loop_footer_branch
          %302 = sbr.rel target = $region225
        $region230: #{vocab_parallel_embedding.1} parent=222 // loop_exit
          _
      $region223: #{vocab_parallel_embedding.1} parent=4 // pred_fallthru
        _
      // Predicated region
      $region242: #{vocab_parallel_embedding.1} parent=4 // pred_check
        _
      $region243: #{vocab_parallel_embedding.1} parent=4 // pred_check_branch
        %328 = sbr.rel (0) target = $region245
      $region244: #{vocab_parallel_embedding.1} parent=4 // pred_region
        %329 = vsyncadd %s295, 16
      $region245: #{vocab_parallel_embedding.1} parent=4 // pred_fallthru
        _
      %s330 = sld [smem:[#allocation5 + $0x8]]
      %s331 = scalar_lea.vmem %s1, %s330
      %s332 = scalar_lea.vmem [#allocation2], 8
      %s333 = scalar_lea.sflag [#allocation3], 8
      // Predicated region
      $region246: #{vocab_parallel_embedding.1} parent=4 // pred_check
        _
      $region247: #{vocab_parallel_embedding.1} parent=4 // pred_check_branch
        %335 = sbr.rel target = $region249
      $region248: #{vocab_parallel_embedding.1} parent=4 // pred_region
        // Predicated region
        $region261: #{vocab_parallel_embedding.1} parent=248 // pred_check
          _
        $region262: #{vocab_parallel_embedding.1} parent=248 // pred_check_branch
          %351 = sbr.rel (0) target = $region264
        $region263: #{vocab_parallel_embedding.1} parent=248 // pred_region
          %s353 = ssub.s32 2, 1
          loop: start=0, step=1, limit=1
          $region265: #{vocab_parallel_embedding.1} parent=263 // loop_pre_header
            _
          $region266: #{vocab_parallel_embedding.1} parent=263 // loop_header
            %s355 = sphi 0, %s359
            %p356 = scmp.ge.s32.totalorder %s355, 1
            %s360 = sphi %s331, %s331
            %s361 = sphi %s332, %s332
          $region267: #{vocab_parallel_embedding.1} parent=263 // loop_header_branch
            %358 = sbr.rel (%p356) target = $region271
          $region268: #{vocab_parallel_embedding.1} parent=263 // loop_body
            %v362 = vld [vmem:[%s360] sm:%s353]
            %363 = vst [vmem:[%s361] sm:%s353] %v362
          $region269: #{vocab_parallel_embedding.1} parent=263 // loop_footer
            %s359 = sadd.s32 1, %s355
          $region270: #{vocab_parallel_embedding.1} parent=263 // loop_footer_branch
            %354 = sbr.rel target = $region266
          $region271: #{vocab_parallel_embedding.1} parent=263 // loop_exit
            _
        $region264: #{vocab_parallel_embedding.1} parent=248 // pred_fallthru
          _
      $region249: #{vocab_parallel_embedding.1} parent=4 // pred_fallthru
        _
      // Predicated region
      $region250: #{vocab_parallel_embedding.1} parent=4 // pred_check
        _
      $region251: #{vocab_parallel_embedding.1} parent=4 // pred_check_branch
        %337 = sbr.rel (0) target = $region253
      $region252: #{vocab_parallel_embedding.1} parent=4 // pred_region
        %s339 = ssub.s32 2, 1
        loop: start=0, step=1, limit=1
        $region254: #{vocab_parallel_embedding.1} parent=252 // loop_pre_header
          _
        $region255: #{vocab_parallel_embedding.1} parent=252 // loop_header
          %s341 = sphi 0, %s345
          %p342 = scmp.ge.s32.totalorder %s341, 1
          %s346 = sphi %s331, %s331
          %s347 = sphi %s332, %s332
        $region256: #{vocab_parallel_embedding.1} parent=252 // loop_header_branch
          %344 = sbr.rel (%p342) target = $region260
        $region257: #{vocab_parallel_embedding.1} parent=252 // loop_body
          %v348 = vld [vmem:[%s346] sm:%s339]
          %349 = vst [vmem:[%s347] sm:%s339] %v348
        $region258: #{vocab_parallel_embedding.1} parent=252 // loop_footer
          %s345 = sadd.s32 1, %s341
        $region259: #{vocab_parallel_embedding.1} parent=252 // loop_footer_branch
          %340 = sbr.rel target = $region255
        $region260: #{vocab_parallel_embedding.1} parent=252 // loop_exit
          _
      $region253: #{vocab_parallel_embedding.1} parent=4 // pred_fallthru
        _
      // Predicated region
      $region272: #{vocab_parallel_embedding.1} parent=4 // pred_check
        _
      $region273: #{vocab_parallel_embedding.1} parent=4 // pred_check_branch
        %366 = sbr.rel (0) target = $region275
      $region274: #{vocab_parallel_embedding.1} parent=4 // pred_region
        %367 = vsyncadd %s333, 16
      $region275: #{vocab_parallel_embedding.1} parent=4 // pred_fallthru
        _
      %s368 = sld [smem:[#allocation5 + $0x9]]
      %s369 = scalar_lea.vmem %s1, %s368
      %s370 = scalar_lea.vmem [#allocation2], 9
      %s371 = scalar_lea.sflag [#allocation3], 9
      // Predicated region
      $region276: #{vocab_parallel_embedding.1} parent=4 // pred_check
        _
      $region277: #{vocab_parallel_embedding.1} parent=4 // pred_check_branch
        %373 = sbr.rel target = $region279
      $region278: #{vocab_parallel_embedding.1} parent=4 // pred_region
        // Predicated region
        $region291: #{vocab_parallel_embedding.1} parent=278 // pred_check
          _
        $region292: #{vocab_parallel_embedding.1} parent=278 // pred_check_branch
          %389 = sbr.rel (0) target = $region294
        $region293: #{vocab_parallel_embedding.1} parent=278 // pred_region
          %s391 = ssub.s32 2, 1
          loop: start=0, step=1, limit=1
          $region295: #{vocab_parallel_embedding.1} parent=293 // loop_pre_header
            _
          $region296: #{vocab_parallel_embedding.1} parent=293 // loop_header
            %s393 = sphi 0, %s397
            %p394 = scmp.ge.s32.totalorder %s393, 1
            %s398 = sphi %s369, %s369
            %s399 = sphi %s370, %s370
          $region297: #{vocab_parallel_embedding.1} parent=293 // loop_header_branch
            %396 = sbr.rel (%p394) target = $region301
          $region298: #{vocab_parallel_embedding.1} parent=293 // loop_body
            %v400 = vld [vmem:[%s398] sm:%s391]
            %401 = vst [vmem:[%s399] sm:%s391] %v400
          $region299: #{vocab_parallel_embedding.1} parent=293 // loop_footer
            %s397 = sadd.s32 1, %s393
          $region300: #{vocab_parallel_embedding.1} parent=293 // loop_footer_branch
            %392 = sbr.rel target = $region296
          $region301: #{vocab_parallel_embedding.1} parent=293 // loop_exit
            _
        $region294: #{vocab_parallel_embedding.1} parent=278 // pred_fallthru
          _
      $region279: #{vocab_parallel_embedding.1} parent=4 // pred_fallthru
        _
      // Predicated region
      $region280: #{vocab_parallel_embedding.1} parent=4 // pred_check
        _
      $region281: #{vocab_parallel_embedding.1} parent=4 // pred_check_branch
        %375 = sbr.rel (0) target = $region283
      $region282: #{vocab_parallel_embedding.1} parent=4 // pred_region
        %s377 = ssub.s32 2, 1
        loop: start=0, step=1, limit=1
        $region284: #{vocab_parallel_embedding.1} parent=282 // loop_pre_header
          _
        $region285: #{vocab_parallel_embedding.1} parent=282 // loop_header
          %s379 = sphi 0, %s383
          %p380 = scmp.ge.s32.totalorder %s379, 1
          %s384 = sphi %s369, %s369
          %s385 = sphi %s370, %s370
        $region286: #{vocab_parallel_embedding.1} parent=282 // loop_header_branch
          %382 = sbr.rel (%p380) target = $region290
        $region287: #{vocab_parallel_embedding.1} parent=282 // loop_body
          %v386 = vld [vmem:[%s384] sm:%s377]
          %387 = vst [vmem:[%s385] sm:%s377] %v386
        $region288: #{vocab_parallel_embedding.1} parent=282 // loop_footer
          %s383 = sadd.s32 1, %s379
        $region289: #{vocab_parallel_embedding.1} parent=282 // loop_footer_branch
          %378 = sbr.rel target = $region285
        $region290: #{vocab_parallel_embedding.1} parent=282 // loop_exit
          _
      $region283: #{vocab_parallel_embedding.1} parent=4 // pred_fallthru
        _
      // Predicated region
      $region302: #{vocab_parallel_embedding.1} parent=4 // pred_check
        _
      $region303: #{vocab_parallel_embedding.1} parent=4 // pred_check_branch
        %404 = sbr.rel (0) target = $region305
      $region304: #{vocab_parallel_embedding.1} parent=4 // pred_region
        %405 = vsyncadd %s371, 16
      $region305: #{vocab_parallel_embedding.1} parent=4 // pred_fallthru
        _
      %s406 = sld [smem:[#allocation5 + $0xa]]
      %s407 = scalar_lea.vmem %s1, %s406
      %s408 = scalar_lea.vmem [#allocation2], 10
      %s409 = scalar_lea.sflag [#allocation3], 10
      // Predicated region
      $region306: #{vocab_parallel_embedding.1} parent=4 // pred_check
        _
      $region307: #{vocab_parallel_embedding.1} parent=4 // pred_check_branch
        %411 = sbr.rel target = $region309
      $region308: #{vocab_parallel_embedding.1} parent=4 // pred_region
        // Predicated region
        $region321: #{vocab_parallel_embedding.1} parent=308 // pred_check
          _
        $region322: #{vocab_parallel_embedding.1} parent=308 // pred_check_branch
          %427 = sbr.rel (0) target = $region324
        $region323: #{vocab_parallel_embedding.1} parent=308 // pred_region
          %s429 = ssub.s32 2, 1
          loop: start=0, step=1, limit=1
          $region325: #{vocab_parallel_embedding.1} parent=323 // loop_pre_header
            _
          $region326: #{vocab_parallel_embedding.1} parent=323 // loop_header
            %s431 = sphi 0, %s435
            %p432 = scmp.ge.s32.totalorder %s431, 1
            %s436 = sphi %s407, %s407
            %s437 = sphi %s408, %s408
          $region327: #{vocab_parallel_embedding.1} parent=323 // loop_header_branch
            %434 = sbr.rel (%p432) target = $region331
          $region328: #{vocab_parallel_embedding.1} parent=323 // loop_body
            %v438 = vld [vmem:[%s436] sm:%s429]
            %439 = vst [vmem:[%s437] sm:%s429] %v438
          $region329: #{vocab_parallel_embedding.1} parent=323 // loop_footer
            %s435 = sadd.s32 1, %s431
          $region330: #{vocab_parallel_embedding.1} parent=323 // loop_footer_branch
            %430 = sbr.rel target = $region326
          $region331: #{vocab_parallel_embedding.1} parent=323 // loop_exit
            _
        $region324: #{vocab_parallel_embedding.1} parent=308 // pred_fallthru
          _
      $region309: #{vocab_parallel_embedding.1} parent=4 // pred_fallthru
        _
      // Predicated region
      $region310: #{vocab_parallel_embedding.1} parent=4 // pred_check
        _
      $region311: #{vocab_parallel_embedding.1} parent=4 // pred_check_branch
        %413 = sbr.rel (0) target = $region313
      $region312: #{vocab_parallel_embedding.1} parent=4 // pred_region
        %s415 = ssub.s32 2, 1
        loop: start=0, step=1, limit=1
        $region314: #{vocab_parallel_embedding.1} parent=312 // loop_pre_header
          _
        $region315: #{vocab_parallel_embedding.1} parent=312 // loop_header
          %s417 = sphi 0, %s421
          %p418 = scmp.ge.s32.totalorder %s417, 1
          %s422 = sphi %s407, %s407
          %s423 = sphi %s408, %s408
        $region316: #{vocab_parallel_embedding.1} parent=312 // loop_header_branch
          %420 = sbr.rel (%p418) target = $region320
        $region317: #{vocab_parallel_embedding.1} parent=312 // loop_body
          %v424 = vld [vmem:[%s422] sm:%s415]
          %425 = vst [vmem:[%s423] sm:%s415] %v424
        $region318: #{vocab_parallel_embedding.1} parent=312 // loop_footer
          %s421 = sadd.s32 1, %s417
        $region319: #{vocab_parallel_embedding.1} parent=312 // loop_footer_branch
          %416 = sbr.rel target = $region315
        $region320: #{vocab_parallel_embedding.1} parent=312 // loop_exit
          _
      $region313: #{vocab_parallel_embedding.1} parent=4 // pred_fallthru
        _
      // Predicated region
      $region332: #{vocab_parallel_embedding.1} parent=4 // pred_check
        _
      $region333: #{vocab_parallel_embedding.1} parent=4 // pred_check_branch
        %442 = sbr.rel (0) target = $region335
      $region334: #{vocab_parallel_embedding.1} parent=4 // pred_region
        %443 = vsyncadd %s409, 16
      $region335: #{vocab_parallel_embedding.1} parent=4 // pred_fallthru
        _
      %s444 = sld [smem:[#allocation5 + $0xb]]
      %s445 = scalar_lea.vmem %s1, %s444
      %s446 = scalar_lea.vmem [#allocation2], 11
      %s447 = scalar_lea.sflag [#allocation3], 11
      // Predicated region
      $region336: #{vocab_parallel_embedding.1} parent=4 // pred_check
        _
      $region337: #{vocab_parallel_embedding.1} parent=4 // pred_check_branch
        %449 = sbr.rel target = $region339
      $region338: #{vocab_parallel_embedding.1} parent=4 // pred_region
        // Predicated region
        $region351: #{vocab_parallel_embedding.1} parent=338 // pred_check
          _
        $region352: #{vocab_parallel_embedding.1} parent=338 // pred_check_branch
          %465 = sbr.rel (0) target = $region354
        $region353: #{vocab_parallel_embedding.1} parent=338 // pred_region
          %s467 = ssub.s32 2, 1
          loop: start=0, step=1, limit=1
          $region355: #{vocab_parallel_embedding.1} parent=353 // loop_pre_header
            _
          $region356: #{vocab_parallel_embedding.1} parent=353 // loop_header
            %s469 = sphi 0, %s473
            %p470 = scmp.ge.s32.totalorder %s469, 1
            %s474 = sphi %s445, %s445
            %s475 = sphi %s446, %s446
          $region357: #{vocab_parallel_embedding.1} parent=353 // loop_header_branch
            %472 = sbr.rel (%p470) target = $region361
          $region358: #{vocab_parallel_embedding.1} parent=353 // loop_body
            %v476 = vld [vmem:[%s474] sm:%s467]
            %477 = vst [vmem:[%s475] sm:%s467] %v476
          $region359: #{vocab_parallel_embedding.1} parent=353 // loop_footer
            %s473 = sadd.s32 1, %s469
          $region360: #{vocab_parallel_embedding.1} parent=353 // loop_footer_branch
            %468 = sbr.rel target = $region356
          $region361: #{vocab_parallel_embedding.1} parent=353 // loop_exit
            _
        $region354: #{vocab_parallel_embedding.1} parent=338 // pred_fallthru
          _
      $region339: #{vocab_parallel_embedding.1} parent=4 // pred_fallthru
        _
      // Predicated region
      $region340: #{vocab_parallel_embedding.1} parent=4 // pred_check
        _
      $region341: #{vocab_parallel_embedding.1} parent=4 // pred_check_branch
        %451 = sbr.rel (0) target = $region343
      $region342: #{vocab_parallel_embedding.1} parent=4 // pred_region
        %s453 = ssub.s32 2, 1
        loop: start=0, step=1, limit=1
        $region344: #{vocab_parallel_embedding.1} parent=342 // loop_pre_header
          _
        $region345: #{vocab_parallel_embedding.1} parent=342 // loop_header
          %s455 = sphi 0, %s459
          %p456 = scmp.ge.s32.totalorder %s455, 1
          %s460 = sphi %s445, %s445
          %s461 = sphi %s446, %s446
        $region346: #{vocab_parallel_embedding.1} parent=342 // loop_header_branch
          %458 = sbr.rel (%p456) target = $region350
        $region347: #{vocab_parallel_embedding.1} parent=342 // loop_body
          %v462 = vld [vmem:[%s460] sm:%s453]
          %463 = vst [vmem:[%s461] sm:%s453] %v462
        $region348: #{vocab_parallel_embedding.1} parent=342 // loop_footer
          %s459 = sadd.s32 1, %s455
        $region349: #{vocab_parallel_embedding.1} parent=342 // loop_footer_branch
          %454 = sbr.rel target = $region345
        $region350: #{vocab_parallel_embedding.1} parent=342 // loop_exit
          _
      $region343: #{vocab_parallel_embedding.1} parent=4 // pred_fallthru
        _
      // Predicated region
      $region362: #{vocab_parallel_embedding.1} parent=4 // pred_check
        _
      $region363: #{vocab_parallel_embedding.1} parent=4 // pred_check_branch
        %480 = sbr.rel (0) target = $region365
      $region364: #{vocab_parallel_embedding.1} parent=4 // pred_region
        %481 = vsyncadd %s447, 16
      $region365: #{vocab_parallel_embedding.1} parent=4 // pred_fallthru
        _
      %s482 = sld [smem:[#allocation5 + $0xc]]
      %s483 = scalar_lea.vmem %s1, %s482
      %s484 = scalar_lea.vmem [#allocation2], 12
      %s485 = scalar_lea.sflag [#allocation3], 12
      // Predicated region
      $region366: #{vocab_parallel_embedding.1} parent=4 // pred_check
        _
      $region367: #{vocab_parallel_embedding.1} parent=4 // pred_check_branch
        %487 = sbr.rel target = $region369
      $region368: #{vocab_parallel_embedding.1} parent=4 // pred_region
        // Predicated region
        $region381: #{vocab_parallel_embedding.1} parent=368 // pred_check
          _
        $region382: #{vocab_parallel_embedding.1} parent=368 // pred_check_branch
          %503 = sbr.rel (0) target = $region384
        $region383: #{vocab_parallel_embedding.1} parent=368 // pred_region
          %s505 = ssub.s32 2, 1
          loop: start=0, step=1, limit=1
          $region385: #{vocab_parallel_embedding.1} parent=383 // loop_pre_header
            _
          $region386: #{vocab_parallel_embedding.1} parent=383 // loop_header
            %s507 = sphi 0, %s511
            %p508 = scmp.ge.s32.totalorder %s507, 1
            %s512 = sphi %s483, %s483
            %s513 = sphi %s484, %s484
          $region387: #{vocab_parallel_embedding.1} parent=383 // loop_header_branch
            %510 = sbr.rel (%p508) target = $region391
          $region388: #{vocab_parallel_embedding.1} parent=383 // loop_body
            %v514 = vld [vmem:[%s512] sm:%s505]
            %515 = vst [vmem:[%s513] sm:%s505] %v514
          $region389: #{vocab_parallel_embedding.1} parent=383 // loop_footer
            %s511 = sadd.s32 1, %s507
          $region390: #{vocab_parallel_embedding.1} parent=383 // loop_footer_branch
            %506 = sbr.rel target = $region386
          $region391: #{vocab_parallel_embedding.1} parent=383 // loop_exit
            _
        $region384: #{vocab_parallel_embedding.1} parent=368 // pred_fallthru
          _
      $region369: #{vocab_parallel_embedding.1} parent=4 // pred_fallthru
        _
      // Predicated region
      $region370: #{vocab_parallel_embedding.1} parent=4 // pred_check
        _
      $region371: #{vocab_parallel_embedding.1} parent=4 // pred_check_branch
        %489 = sbr.rel (0) target = $region373
      $region372: #{vocab_parallel_embedding.1} parent=4 // pred_region
        %s491 = ssub.s32 2, 1
        loop: start=0, step=1, limit=1
        $region374: #{vocab_parallel_embedding.1} parent=372 // loop_pre_header
          _
        $region375: #{vocab_parallel_embedding.1} parent=372 // loop_header
          %s493 = sphi 0, %s497
          %p494 = scmp.ge.s32.totalorder %s493, 1
          %s498 = sphi %s483, %s483
          %s499 = sphi %s484, %s484
        $region376: #{vocab_parallel_embedding.1} parent=372 // loop_header_branch
          %496 = sbr.rel (%p494) target = $region380
        $region377: #{vocab_parallel_embedding.1} parent=372 // loop_body
          %v500 = vld [vmem:[%s498] sm:%s491]
          %501 = vst [vmem:[%s499] sm:%s491] %v500
        $region378: #{vocab_parallel_embedding.1} parent=372 // loop_footer
          %s497 = sadd.s32 1, %s493
        $region379: #{vocab_parallel_embedding.1} parent=372 // loop_footer_branch
          %492 = sbr.rel target = $region375
        $region380: #{vocab_parallel_embedding.1} parent=372 // loop_exit
          _
      $region373: #{vocab_parallel_embedding.1} parent=4 // pred_fallthru
        _
      // Predicated region
      $region392: #{vocab_parallel_embedding.1} parent=4 // pred_check
        _
      $region393: #{vocab_parallel_embedding.1} parent=4 // pred_check_branch
        %518 = sbr.rel (0) target = $region395
      $region394: #{vocab_parallel_embedding.1} parent=4 // pred_region
        %519 = vsyncadd %s485, 16
      $region395: #{vocab_parallel_embedding.1} parent=4 // pred_fallthru
        _
      %s520 = sld [smem:[#allocation5 + $0xd]]
      %s521 = scalar_lea.vmem %s1, %s520
      %s522 = scalar_lea.vmem [#allocation2], 13
      %s523 = scalar_lea.sflag [#allocation3], 13
      // Predicated region
      $region396: #{vocab_parallel_embedding.1} parent=4 // pred_check
        _
      $region397: #{vocab_parallel_embedding.1} parent=4 // pred_check_branch
        %525 = sbr.rel target = $region399
      $region398: #{vocab_parallel_embedding.1} parent=4 // pred_region
        // Predicated region
        $region411: #{vocab_parallel_embedding.1} parent=398 // pred_check
          _
        $region412: #{vocab_parallel_embedding.1} parent=398 // pred_check_branch
          %541 = sbr.rel (0) target = $region414
        $region413: #{vocab_parallel_embedding.1} parent=398 // pred_region
          %s543 = ssub.s32 2, 1
          loop: start=0, step=1, limit=1
          $region415: #{vocab_parallel_embedding.1} parent=413 // loop_pre_header
            _
          $region416: #{vocab_parallel_embedding.1} parent=413 // loop_header
            %s545 = sphi 0, %s549
            %p546 = scmp.ge.s32.totalorder %s545, 1
            %s550 = sphi %s521, %s521
            %s551 = sphi %s522, %s522
          $region417: #{vocab_parallel_embedding.1} parent=413 // loop_header_branch
            %548 = sbr.rel (%p546) target = $region421
          $region418: #{vocab_parallel_embedding.1} parent=413 // loop_body
            %v552 = vld [vmem:[%s550] sm:%s543]
            %553 = vst [vmem:[%s551] sm:%s543] %v552
          $region419: #{vocab_parallel_embedding.1} parent=413 // loop_footer
            %s549 = sadd.s32 1, %s545
          $region420: #{vocab_parallel_embedding.1} parent=413 // loop_footer_branch
            %544 = sbr.rel target = $region416
          $region421: #{vocab_parallel_embedding.1} parent=413 // loop_exit
            _
        $region414: #{vocab_parallel_embedding.1} parent=398 // pred_fallthru
          _
      $region399: #{vocab_parallel_embedding.1} parent=4 // pred_fallthru
        _
      // Predicated region
      $region400: #{vocab_parallel_embedding.1} parent=4 // pred_check
        _
      $region401: #{vocab_parallel_embedding.1} parent=4 // pred_check_branch
        %527 = sbr.rel (0) target = $region403
      $region402: #{vocab_parallel_embedding.1} parent=4 // pred_region
        %s529 = ssub.s32 2, 1
        loop: start=0, step=1, limit=1
        $region404: #{vocab_parallel_embedding.1} parent=402 // loop_pre_header
          _
        $region405: #{vocab_parallel_embedding.1} parent=402 // loop_header
          %s531 = sphi 0, %s535
          %p532 = scmp.ge.s32.totalorder %s531, 1
          %s536 = sphi %s521, %s521
          %s537 = sphi %s522, %s522
        $region406: #{vocab_parallel_embedding.1} parent=402 // loop_header_branch
          %534 = sbr.rel (%p532) target = $region410
        $region407: #{vocab_parallel_embedding.1} parent=402 // loop_body
          %v538 = vld [vmem:[%s536] sm:%s529]
          %539 = vst [vmem:[%s537] sm:%s529] %v538
        $region408: #{vocab_parallel_embedding.1} parent=402 // loop_footer
          %s535 = sadd.s32 1, %s531
        $region409: #{vocab_parallel_embedding.1} parent=402 // loop_footer_branch
          %530 = sbr.rel target = $region405
        $region410: #{vocab_parallel_embedding.1} parent=402 // loop_exit
          _
      $region403: #{vocab_parallel_embedding.1} parent=4 // pred_fallthru
        _
      // Predicated region
      $region422: #{vocab_parallel_embedding.1} parent=4 // pred_check
        _
      $region423: #{vocab_parallel_embedding.1} parent=4 // pred_check_branch
        %556 = sbr.rel (0) target = $region425
      $region424: #{vocab_parallel_embedding.1} parent=4 // pred_region
        %557 = vsyncadd %s523, 16
      $region425: #{vocab_parallel_embedding.1} parent=4 // pred_fallthru
        _
      %s558 = sld [smem:[#allocation5 + $0xe]]
      %s559 = scalar_lea.vmem %s1, %s558
      %s560 = scalar_lea.vmem [#allocation2], 14
      %s561 = scalar_lea.sflag [#allocation3], 14
      // Predicated region
      $region426: #{vocab_parallel_embedding.1} parent=4 // pred_check
        _
      $region427: #{vocab_parallel_embedding.1} parent=4 // pred_check_branch
        %563 = sbr.rel target = $region429
      $region428: #{vocab_parallel_embedding.1} parent=4 // pred_region
        // Predicated region
        $region441: #{vocab_parallel_embedding.1} parent=428 // pred_check
          _
        $region442: #{vocab_parallel_embedding.1} parent=428 // pred_check_branch
          %579 = sbr.rel (0) target = $region444
        $region443: #{vocab_parallel_embedding.1} parent=428 // pred_region
          %s581 = ssub.s32 2, 1
          loop: start=0, step=1, limit=1
          $region445: #{vocab_parallel_embedding.1} parent=443 // loop_pre_header
            _
          $region446: #{vocab_parallel_embedding.1} parent=443 // loop_header
            %s583 = sphi 0, %s587
            %p584 = scmp.ge.s32.totalorder %s583, 1
            %s588 = sphi %s559, %s559
            %s589 = sphi %s560, %s560
          $region447: #{vocab_parallel_embedding.1} parent=443 // loop_header_branch
            %586 = sbr.rel (%p584) target = $region451
          $region448: #{vocab_parallel_embedding.1} parent=443 // loop_body
            %v590 = vld [vmem:[%s588] sm:%s581]
            %591 = vst [vmem:[%s589] sm:%s581] %v590
          $region449: #{vocab_parallel_embedding.1} parent=443 // loop_footer
            %s587 = sadd.s32 1, %s583
          $region450: #{vocab_parallel_embedding.1} parent=443 // loop_footer_branch
            %582 = sbr.rel target = $region446
          $region451: #{vocab_parallel_embedding.1} parent=443 // loop_exit
            _
        $region444: #{vocab_parallel_embedding.1} parent=428 // pred_fallthru
          _
      $region429: #{vocab_parallel_embedding.1} parent=4 // pred_fallthru
        _
      // Predicated region
      $region430: #{vocab_parallel_embedding.1} parent=4 // pred_check
        _
      $region431: #{vocab_parallel_embedding.1} parent=4 // pred_check_branch
        %565 = sbr.rel (0) target = $region433
      $region432: #{vocab_parallel_embedding.1} parent=4 // pred_region
        %s567 = ssub.s32 2, 1
        loop: start=0, step=1, limit=1
        $region434: #{vocab_parallel_embedding.1} parent=432 // loop_pre_header
          _
        $region435: #{vocab_parallel_embedding.1} parent=432 // loop_header
          %s569 = sphi 0, %s573
          %p570 = scmp.ge.s32.totalorder %s569, 1
          %s574 = sphi %s559, %s559
          %s575 = sphi %s560, %s560
        $region436: #{vocab_parallel_embedding.1} parent=432 // loop_header_branch
          %572 = sbr.rel (%p570) target = $region440
        $region437: #{vocab_parallel_embedding.1} parent=432 // loop_body
          %v576 = vld [vmem:[%s574] sm:%s567]
          %577 = vst [vmem:[%s575] sm:%s567] %v576
        $region438: #{vocab_parallel_embedding.1} parent=432 // loop_footer
          %s573 = sadd.s32 1, %s569
        $region439: #{vocab_parallel_embedding.1} parent=432 // loop_footer_branch
          %568 = sbr.rel target = $region435
        $region440: #{vocab_parallel_embedding.1} parent=432 // loop_exit
          _
      $region433: #{vocab_parallel_embedding.1} parent=4 // pred_fallthru
        _
      // Predicated region
      $region452: #{vocab_parallel_embedding.1} parent=4 // pred_check
        _
      $region453: #{vocab_parallel_embedding.1} parent=4 // pred_check_branch
        %594 = sbr.rel (0) target = $region455
      $region454: #{vocab_parallel_embedding.1} parent=4 // pred_region
        %595 = vsyncadd %s561, 16
      $region455: #{vocab_parallel_embedding.1} parent=4 // pred_fallthru
        _
      %s596 = sld [smem:[#allocation5 + $0xf]]
      %s597 = scalar_lea.vmem %s1, %s596
      %s598 = scalar_lea.vmem [#allocation2], 15
      %s599 = scalar_lea.sflag [#allocation3], 15
      // Predicated region
      $region456: #{vocab_parallel_embedding.1} parent=4 // pred_check
        _
      $region457: #{vocab_parallel_embedding.1} parent=4 // pred_check_branch
        %601 = sbr.rel target = $region459
      $region458: #{vocab_parallel_embedding.1} parent=4 // pred_region
        // Predicated region
        $region471: #{vocab_parallel_embedding.1} parent=458 // pred_check
          _
        $region472: #{vocab_parallel_embedding.1} parent=458 // pred_check_branch
          %617 = sbr.rel (0) target = $region474
        $region473: #{vocab_parallel_embedding.1} parent=458 // pred_region
          %s619 = ssub.s32 2, 1
          loop: start=0, step=1, limit=1
          $region475: #{vocab_parallel_embedding.1} parent=473 // loop_pre_header
            _
          $region476: #{vocab_parallel_embedding.1} parent=473 // loop_header
            %s621 = sphi 0, %s625
            %p622 = scmp.ge.s32.totalorder %s621, 1
            %s626 = sphi %s597, %s597
            %s627 = sphi %s598, %s598
          $region477: #{vocab_parallel_embedding.1} parent=473 // loop_header_branch
            %624 = sbr.rel (%p622) target = $region481
          $region478: #{vocab_parallel_embedding.1} parent=473 // loop_body
            %v628 = vld [vmem:[%s626] sm:%s619]
            %629 = vst [vmem:[%s627] sm:%s619] %v628
          $region479: #{vocab_parallel_embedding.1} parent=473 // loop_footer
            %s625 = sadd.s32 1, %s621
          $region480: #{vocab_parallel_embedding.1} parent=473 // loop_footer_branch
            %620 = sbr.rel target = $region476
          $region481: #{vocab_parallel_embedding.1} parent=473 // loop_exit
            _
        $region474: #{vocab_parallel_embedding.1} parent=458 // pred_fallthru
          _
      $region459: #{vocab_parallel_embedding.1} parent=4 // pred_fallthru
        _
      // Predicated region
      $region460: #{vocab_parallel_embedding.1} parent=4 // pred_check
        _
      $region461: #{vocab_parallel_embedding.1} parent=4 // pred_check_branch
        %603 = sbr.rel (0) target = $region463
      $region462: #{vocab_parallel_embedding.1} parent=4 // pred_region
        %s605 = ssub.s32 2, 1
        loop: start=0, step=1, limit=1
        $region464: #{vocab_parallel_embedding.1} parent=462 // loop_pre_header
          _
        $region465: #{vocab_parallel_embedding.1} parent=462 // loop_header
          %s607 = sphi 0, %s611
          %p608 = scmp.ge.s32.totalorder %s607, 1
          %s612 = sphi %s597, %s597
          %s613 = sphi %s598, %s598
        $region466: #{vocab_parallel_embedding.1} parent=462 // loop_header_branch
          %610 = sbr.rel (%p608) target = $region470
        $region467: #{vocab_parallel_embedding.1} parent=462 // loop_body
          %v614 = vld [vmem:[%s612] sm:%s605]
          %615 = vst [vmem:[%s613] sm:%s605] %v614
        $region468: #{vocab_parallel_embedding.1} parent=462 // loop_footer
          %s611 = sadd.s32 1, %s607
        $region469: #{vocab_parallel_embedding.1} parent=462 // loop_footer_branch
          %606 = sbr.rel target = $region465
        $region470: #{vocab_parallel_embedding.1} parent=462 // loop_exit
          _
      $region463: #{vocab_parallel_embedding.1} parent=4 // pred_fallthru
        _
      // Predicated region
      $region482: #{vocab_parallel_embedding.1} parent=4 // pred_check
        _
      $region483: #{vocab_parallel_embedding.1} parent=4 // pred_check_branch
        %632 = sbr.rel (0) target = $region485
      $region484: #{vocab_parallel_embedding.1} parent=4 // pred_region
        %633 = vsyncadd %s599, 16
      $region485: #{vocab_parallel_embedding.1} parent=4 // pred_fallthru
        _
    $region5: #{vocab_parallel_embedding.1} parent=1 // pred_fallthru
      _
    %s634 = sadd.s32 0, 1
    %p635 = scmp.lt.s32.totalorder %s634, 1
    // Predicated region
    $region486: #{vocab_parallel_embedding.1} parent=1 // pred_check
      %p636 = pneg %p635
    $region487: #{vocab_parallel_embedding.1} parent=1 // pred_check_branch
      %638 = sbr.rel (%p636) target = $region489
    $region488: #{vocab_parallel_embedding.1} parent=1 // pred_region
      %s639 = ssub.s32 1, %s23
      %s640 = smul.u32 %s634, 16
      %s641 = sld [smem:[#allocation5 + %s640]]
      %s642 = scalar_lea.vmem %s1, %s641
      %s643 = smul.u32 %s639, 16
      %s644 = scalar_lea.vmem [#allocation2], %s643
      %s645 = scalar_lea.sflag [#allocation3], %s643
      // Predicated region
      $region490: #{vocab_parallel_embedding.1} parent=488 // pred_check
        _
      $region491: #{vocab_parallel_embedding.1} parent=488 // pred_check_branch
        %647 = sbr.rel target = $region493
      $region492: #{vocab_parallel_embedding.1} parent=488 // pred_region
        // Predicated region
        $region505: #{vocab_parallel_embedding.1} parent=492 // pred_check
          _
        $region506: #{vocab_parallel_embedding.1} parent=492 // pred_check_branch
          %663 = sbr.rel (0) target = $region508
        $region507: #{vocab_parallel_embedding.1} parent=492 // pred_region
          %s665 = ssub.s32 2, 1
          loop: start=0, step=1, limit=1
          $region509: #{vocab_parallel_embedding.1} parent=507 // loop_pre_header
            _
          $region510: #{vocab_parallel_embedding.1} parent=507 // loop_header
            %s667 = sphi 0, %s671
            %p668 = scmp.ge.s32.totalorder %s667, 1
            %s672 = sphi %s642, %s642
            %s673 = sphi %s644, %s644
          $region511: #{vocab_parallel_embedding.1} parent=507 // loop_header_branch
            %670 = sbr.rel (%p668) target = $region515
          $region512: #{vocab_parallel_embedding.1} parent=507 // loop_body
            %v674 = vld [vmem:[%s672] sm:%s665]
            %675 = vst [vmem:[%s673] sm:%s665] %v674
          $region513: #{vocab_parallel_embedding.1} parent=507 // loop_footer
            %s671 = sadd.s32 1, %s667
          $region514: #{vocab_parallel_embedding.1} parent=507 // loop_footer_branch
            %666 = sbr.rel target = $region510
          $region515: #{vocab_parallel_embedding.1} parent=507 // loop_exit
            _
        $region508: #{vocab_parallel_embedding.1} parent=492 // pred_fallthru
          _
      $region493: #{vocab_parallel_embedding.1} parent=488 // pred_fallthru
        _
      // Predicated region
      $region494: #{vocab_parallel_embedding.1} parent=488 // pred_check
        _
      $region495: #{vocab_parallel_embedding.1} parent=488 // pred_check_branch
        %649 = sbr.rel (0) target = $region497
      $region496: #{vocab_parallel_embedding.1} parent=488 // pred_region
        %s651 = ssub.s32 2, 1
        loop: start=0, step=1, limit=1
        $region498: #{vocab_parallel_embedding.1} parent=496 // loop_pre_header
          _
        $region499: #{vocab_parallel_embedding.1} parent=496 // loop_header
          %s653 = sphi 0, %s657
          %p654 = scmp.ge.s32.totalorder %s653, 1
          %s658 = sphi %s642, %s642
          %s659 = sphi %s644, %s644
        $region500: #{vocab_parallel_embedding.1} parent=496 // loop_header_branch
          %656 = sbr.rel (%p654) target = $region504
        $region501: #{vocab_parallel_embedding.1} parent=496 // loop_body
          %v660 = vld [vmem:[%s658] sm:%s651]
          %661 = vst [vmem:[%s659] sm:%s651] %v660
        $region502: #{vocab_parallel_embedding.1} parent=496 // loop_footer
          %s657 = sadd.s32 1, %s653
        $region503: #{vocab_parallel_embedding.1} parent=496 // loop_footer_branch
          %652 = sbr.rel target = $region499
        $region504: #{vocab_parallel_embedding.1} parent=496 // loop_exit
          _
      $region497: #{vocab_parallel_embedding.1} parent=488 // pred_fallthru
        _
      // Predicated region
      $region516: #{vocab_parallel_embedding.1} parent=488 // pred_check
        _
      $region517: #{vocab_parallel_embedding.1} parent=488 // pred_check_branch
        %678 = sbr.rel (0) target = $region519
      $region518: #{vocab_parallel_embedding.1} parent=488 // pred_region
        %679 = vsyncadd %s645, 16
      $region519: #{vocab_parallel_embedding.1} parent=488 // pred_fallthru
        _
      %s680 = sadd.s32 %s640, 1
      %s681 = sld [smem:[#allocation5 + %s680]]
      %s682 = scalar_lea.vmem %s1, %s681
      %s683 = sadd.s32 1, %s643
      %s684 = scalar_lea.vmem [#allocation2], %s683
      %s685 = scalar_lea.sflag [#allocation3], %s683
      // Predicated region
      $region520: #{vocab_parallel_embedding.1} parent=488 // pred_check
        _
      $region521: #{vocab_parallel_embedding.1} parent=488 // pred_check_branch
        %687 = sbr.rel target = $region523
      $region522: #{vocab_parallel_embedding.1} parent=488 // pred_region
        // Predicated region
        $region535: #{vocab_parallel_embedding.1} parent=522 // pred_check
          _
        $region536: #{vocab_parallel_embedding.1} parent=522 // pred_check_branch
          %703 = sbr.rel (0) target = $region538
        $region537: #{vocab_parallel_embedding.1} parent=522 // pred_region
          %s705 = ssub.s32 2, 1
          loop: start=0, step=1, limit=1
          $region539: #{vocab_parallel_embedding.1} parent=537 // loop_pre_header
            _
          $region540: #{vocab_parallel_embedding.1} parent=537 // loop_header
            %s707 = sphi 0, %s711
            %p708 = scmp.ge.s32.totalorder %s707, 1
            %s712 = sphi %s682, %s682
            %s713 = sphi %s684, %s684
          $region541: #{vocab_parallel_embedding.1} parent=537 // loop_header_branch
            %710 = sbr.rel (%p708) target = $region545
          $region542: #{vocab_parallel_embedding.1} parent=537 // loop_body
            %v714 = vld [vmem:[%s712] sm:%s705]
            %715 = vst [vmem:[%s713] sm:%s705] %v714
          $region543: #{vocab_parallel_embedding.1} parent=537 // loop_footer
            %s711 = sadd.s32 1, %s707
          $region544: #{vocab_parallel_embedding.1} parent=537 // loop_footer_branch
            %706 = sbr.rel target = $region540
          $region545: #{vocab_parallel_embedding.1} parent=537 // loop_exit
            _
        $region538: #{vocab_parallel_embedding.1} parent=522 // pred_fallthru
          _
      $region523: #{vocab_parallel_embedding.1} parent=488 // pred_fallthru
        _
      // Predicated region
      $region524: #{vocab_parallel_embedding.1} parent=488 // pred_check
        _
      $region525: #{vocab_parallel_embedding.1} parent=488 // pred_check_branch
        %689 = sbr.rel (0) target = $region527
      $region526: #{vocab_parallel_embedding.1} parent=488 // pred_region
        %s691 = ssub.s32 2, 1
        loop: start=0, step=1, limit=1
        $region528: #{vocab_parallel_embedding.1} parent=526 // loop_pre_header
          _
        $region529: #{vocab_parallel_embedding.1} parent=526 // loop_header
          %s693 = sphi 0, %s697
          %p694 = scmp.ge.s32.totalorder %s693, 1
          %s698 = sphi %s682, %s682
          %s699 = sphi %s684, %s684
        $region530: #{vocab_parallel_embedding.1} parent=526 // loop_header_branch
          %696 = sbr.rel (%p694) target = $region534
        $region531: #{vocab_parallel_embedding.1} parent=526 // loop_body
          %v700 = vld [vmem:[%s698] sm:%s691]
          %701 = vst [vmem:[%s699] sm:%s691] %v700
        $region532: #{vocab_parallel_embedding.1} parent=526 // loop_footer
          %s697 = sadd.s32 1, %s693
        $region533: #{vocab_parallel_embedding.1} parent=526 // loop_footer_branch
          %692 = sbr.rel target = $region529
        $region534: #{vocab_parallel_embedding.1} parent=526 // loop_exit
          _
      $region527: #{vocab_parallel_embedding.1} parent=488 // pred_fallthru
        _
      // Predicated region
      $region546: #{vocab_parallel_embedding.1} parent=488 // pred_check
        _
      $region547: #{vocab_parallel_embedding.1} parent=488 // pred_check_branch
        %718 = sbr.rel (0) target = $region549
      $region548: #{vocab_parallel_embedding.1} parent=488 // pred_region
        %719 = vsyncadd %s685, 16
      $region549: #{vocab_parallel_embedding.1} parent=488 // pred_fallthru
        _
      %s720 = sadd.s32 %s640, 2
      %s721 = sld [smem:[#allocation5 + %s720]]
      %s722 = scalar_lea.vmem %s1, %s721
      %s723 = sadd.s32 2, %s643
      %s724 = scalar_lea.vmem [#allocation2], %s723
      %s725 = scalar_lea.sflag [#allocation3], %s723
      // Predicated region
      $region550: #{vocab_parallel_embedding.1} parent=488 // pred_check
        _
      $region551: #{vocab_parallel_embedding.1} parent=488 // pred_check_branch
        %727 = sbr.rel target = $region553
      $region552: #{vocab_parallel_embedding.1} parent=488 // pred_region
        // Predicated region
        $region565: #{vocab_parallel_embedding.1} parent=552 // pred_check
          _
        $region566: #{vocab_parallel_embedding.1} parent=552 // pred_check_branch
          %743 = sbr.rel (0) target = $region568
        $region567: #{vocab_parallel_embedding.1} parent=552 // pred_region
          %s745 = ssub.s32 2, 1
          loop: start=0, step=1, limit=1
          $region569: #{vocab_parallel_embedding.1} parent=567 // loop_pre_header
            _
          $region570: #{vocab_parallel_embedding.1} parent=567 // loop_header
            %s747 = sphi 0, %s751
            %p748 = scmp.ge.s32.totalorder %s747, 1
            %s752 = sphi %s722, %s722
            %s753 = sphi %s724, %s724
          $region571: #{vocab_parallel_embedding.1} parent=567 // loop_header_branch
            %750 = sbr.rel (%p748) target = $region575
          $region572: #{vocab_parallel_embedding.1} parent=567 // loop_body
            %v754 = vld [vmem:[%s752] sm:%s745]
            %755 = vst [vmem:[%s753] sm:%s745] %v754
          $region573: #{vocab_parallel_embedding.1} parent=567 // loop_footer
            %s751 = sadd.s32 1, %s747
          $region574: #{vocab_parallel_embedding.1} parent=567 // loop_footer_branch
            %746 = sbr.rel target = $region570
          $region575: #{vocab_parallel_embedding.1} parent=567 // loop_exit
            _
        $region568: #{vocab_parallel_embedding.1} parent=552 // pred_fallthru
          _
      $region553: #{vocab_parallel_embedding.1} parent=488 // pred_fallthru
        _
      // Predicated region
      $region554: #{vocab_parallel_embedding.1} parent=488 // pred_check
        _
      $region555: #{vocab_parallel_embedding.1} parent=488 // pred_check_branch
        %729 = sbr.rel (0) target = $region557
      $region556: #{vocab_parallel_embedding.1} parent=488 // pred_region
        %s731 = ssub.s32 2, 1
        loop: start=0, step=1, limit=1
        $region558: #{vocab_parallel_embedding.1} parent=556 // loop_pre_header
          _
        $region559: #{vocab_parallel_embedding.1} parent=556 // loop_header
          %s733 = sphi 0, %s737
          %p734 = scmp.ge.s32.totalorder %s733, 1
          %s738 = sphi %s722, %s722
          %s739 = sphi %s724, %s724
        $region560: #{vocab_parallel_embedding.1} parent=556 // loop_header_branch
          %736 = sbr.rel (%p734) target = $region564
        $region561: #{vocab_parallel_embedding.1} parent=556 // loop_body
          %v740 = vld [vmem:[%s738] sm:%s731]
          %741 = vst [vmem:[%s739] sm:%s731] %v740
        $region562: #{vocab_parallel_embedding.1} parent=556 // loop_footer
          %s737 = sadd.s32 1, %s733
        $region563: #{vocab_parallel_embedding.1} parent=556 // loop_footer_branch
          %732 = sbr.rel target = $region559
        $region564: #{vocab_parallel_embedding.1} parent=556 // loop_exit
          _
      $region557: #{vocab_parallel_embedding.1} parent=488 // pred_fallthru
        _
      // Predicated region
      $region576: #{vocab_parallel_embedding.1} parent=488 // pred_check
        _
      $region577: #{vocab_parallel_embedding.1} parent=488 // pred_check_branch
        %758 = sbr.rel (0) target = $region579
      $region578: #{vocab_parallel_embedding.1} parent=488 // pred_region
        %759 = vsyncadd %s725, 16
      $region579: #{vocab_parallel_embedding.1} parent=488 // pred_fallthru
        _
      %s760 = sadd.s32 %s640, 3
      %s761 = sld [smem:[#allocation5 + %s760]]
      %s762 = scalar_lea.vmem %s1, %s761
      %s763 = sadd.s32 3, %s643
      %s764 = scalar_lea.vmem [#allocation2], %s763
      %s765 = scalar_lea.sflag [#allocation3], %s763
      // Predicated region
      $region580: #{vocab_parallel_embedding.1} parent=488 // pred_check
        _
      $region581: #{vocab_parallel_embedding.1} parent=488 // pred_check_branch
        %767 = sbr.rel target = $region583
      $region582: #{vocab_parallel_embedding.1} parent=488 // pred_region
        // Predicated region
        $region595: #{vocab_parallel_embedding.1} parent=582 // pred_check
          _
        $region596: #{vocab_parallel_embedding.1} parent=582 // pred_check_branch
          %783 = sbr.rel (0) target = $region598
        $region597: #{vocab_parallel_embedding.1} parent=582 // pred_region
          %s785 = ssub.s32 2, 1
          loop: start=0, step=1, limit=1
          $region599: #{vocab_parallel_embedding.1} parent=597 // loop_pre_header
            _
          $region600: #{vocab_parallel_embedding.1} parent=597 // loop_header
            %s787 = sphi 0, %s791
            %p788 = scmp.ge.s32.totalorder %s787, 1
            %s792 = sphi %s762, %s762
            %s793 = sphi %s764, %s764
          $region601: #{vocab_parallel_embedding.1} parent=597 // loop_header_branch
            %790 = sbr.rel (%p788) target = $region605
          $region602: #{vocab_parallel_embedding.1} parent=597 // loop_body
            %v794 = vld [vmem:[%s792] sm:%s785]
            %795 = vst [vmem:[%s793] sm:%s785] %v794
          $region603: #{vocab_parallel_embedding.1} parent=597 // loop_footer
            %s791 = sadd.s32 1, %s787
          $region604: #{vocab_parallel_embedding.1} parent=597 // loop_footer_branch
            %786 = sbr.rel target = $region600
          $region605: #{vocab_parallel_embedding.1} parent=597 // loop_exit
            _
        $region598: #{vocab_parallel_embedding.1} parent=582 // pred_fallthru
          _
      $region583: #{vocab_parallel_embedding.1} parent=488 // pred_fallthru
        _
      // Predicated region
      $region584: #{vocab_parallel_embedding.1} parent=488 // pred_check
        _
      $region585: #{vocab_parallel_embedding.1} parent=488 // pred_check_branch
        %769 = sbr.rel (0) target = $region587
      $region586: #{vocab_parallel_embedding.1} parent=488 // pred_region
        %s771 = ssub.s32 2, 1
        loop: start=0, step=1, limit=1
        $region588: #{vocab_parallel_embedding.1} parent=586 // loop_pre_header
          _
        $region589: #{vocab_parallel_embedding.1} parent=586 // loop_header
          %s773 = sphi 0, %s777
          %p774 = scmp.ge.s32.totalorder %s773, 1
          %s778 = sphi %s762, %s762
          %s779 = sphi %s764, %s764
        $region590: #{vocab_parallel_embedding.1} parent=586 // loop_header_branch
          %776 = sbr.rel (%p774) target = $region594
        $region591: #{vocab_parallel_embedding.1} parent=586 // loop_body
          %v780 = vld [vmem:[%s778] sm:%s771]
          %781 = vst [vmem:[%s779] sm:%s771] %v780
        $region592: #{vocab_parallel_embedding.1} parent=586 // loop_footer
          %s777 = sadd.s32 1, %s773
        $region593: #{vocab_parallel_embedding.1} parent=586 // loop_footer_branch
          %772 = sbr.rel target = $region589
        $region594: #{vocab_parallel_embedding.1} parent=586 // loop_exit
          _
      $region587: #{vocab_parallel_embedding.1} parent=488 // pred_fallthru
        _
      // Predicated region
      $region606: #{vocab_parallel_embedding.1} parent=488 // pred_check
        _
      $region607: #{vocab_parallel_embedding.1} parent=488 // pred_check_branch
        %798 = sbr.rel (0) target = $region609
      $region608: #{vocab_parallel_embedding.1} parent=488 // pred_region
        %799 = vsyncadd %s765, 16
      $region609: #{vocab_parallel_embedding.1} parent=488 // pred_fallthru
        _
      %s800 = sadd.s32 %s640, 4
      %s801 = sld [smem:[#allocation5 + %s800]]
      %s802 = scalar_lea.vmem %s1, %s801
      %s803 = sadd.s32 4, %s643
      %s804 = scalar_lea.vmem [#allocation2], %s803
      %s805 = scalar_lea.sflag [#allocation3], %s803
      // Predicated region
      $region610: #{vocab_parallel_embedding.1} parent=488 // pred_check
        _
      $region611: #{vocab_parallel_embedding.1} parent=488 // pred_check_branch
        %807 = sbr.rel target = $region613
      $region612: #{vocab_parallel_embedding.1} parent=488 // pred_region
        // Predicated region
        $region625: #{vocab_parallel_embedding.1} parent=612 // pred_check
          _
        $region626: #{vocab_parallel_embedding.1} parent=612 // pred_check_branch
          %823 = sbr.rel (0) target = $region628
        $region627: #{vocab_parallel_embedding.1} parent=612 // pred_region
          %s825 = ssub.s32 2, 1
          loop: start=0, step=1, limit=1
          $region629: #{vocab_parallel_embedding.1} parent=627 // loop_pre_header
            _
          $region630: #{vocab_parallel_embedding.1} parent=627 // loop_header
            %s827 = sphi 0, %s831
            %p828 = scmp.ge.s32.totalorder %s827, 1
            %s832 = sphi %s802, %s802
            %s833 = sphi %s804, %s804
          $region631: #{vocab_parallel_embedding.1} parent=627 // loop_header_branch
            %830 = sbr.rel (%p828) target = $region635
          $region632: #{vocab_parallel_embedding.1} parent=627 // loop_body
            %v834 = vld [vmem:[%s832] sm:%s825]
            %835 = vst [vmem:[%s833] sm:%s825] %v834
          $region633: #{vocab_parallel_embedding.1} parent=627 // loop_footer
            %s831 = sadd.s32 1, %s827
          $region634: #{vocab_parallel_embedding.1} parent=627 // loop_footer_branch
            %826 = sbr.rel target = $region630
          $region635: #{vocab_parallel_embedding.1} parent=627 // loop_exit
            _
        $region628: #{vocab_parallel_embedding.1} parent=612 // pred_fallthru
          _
      $region613: #{vocab_parallel_embedding.1} parent=488 // pred_fallthru
        _
      // Predicated region
      $region614: #{vocab_parallel_embedding.1} parent=488 // pred_check
        _
      $region615: #{vocab_parallel_embedding.1} parent=488 // pred_check_branch
        %809 = sbr.rel (0) target = $region617
      $region616: #{vocab_parallel_embedding.1} parent=488 // pred_region
        %s811 = ssub.s32 2, 1
        loop: start=0, step=1, limit=1
        $region618: #{vocab_parallel_embedding.1} parent=616 // loop_pre_header
          _
        $region619: #{vocab_parallel_embedding.1} parent=616 // loop_header
          %s813 = sphi 0, %s817
          %p814 = scmp.ge.s32.totalorder %s813, 1
          %s818 = sphi %s802, %s802
          %s819 = sphi %s804, %s804
        $region620: #{vocab_parallel_embedding.1} parent=616 // loop_header_branch
          %816 = sbr.rel (%p814) target = $region624
        $region621: #{vocab_parallel_embedding.1} parent=616 // loop_body
          %v820 = vld [vmem:[%s818] sm:%s811]
          %821 = vst [vmem:[%s819] sm:%s811] %v820
        $region622: #{vocab_parallel_embedding.1} parent=616 // loop_footer
          %s817 = sadd.s32 1, %s813
        $region623: #{vocab_parallel_embedding.1} parent=616 // loop_footer_branch
          %812 = sbr.rel target = $region619
        $region624: #{vocab_parallel_embedding.1} parent=616 // loop_exit
          _
      $region617: #{vocab_parallel_embedding.1} parent=488 // pred_fallthru
        _
      // Predicated region
      $region636: #{vocab_parallel_embedding.1} parent=488 // pred_check
        _
      $region637: #{vocab_parallel_embedding.1} parent=488 // pred_check_branch
        %838 = sbr.rel (0) target = $region639
      $region638: #{vocab_parallel_embedding.1} parent=488 // pred_region
        %839 = vsyncadd %s805, 16
      $region639: #{vocab_parallel_embedding.1} parent=488 // pred_fallthru
        _
      %s840 = sadd.s32 %s640, 5
      %s841 = sld [smem:[#allocation5 + %s840]]
      %s842 = scalar_lea.vmem %s1, %s841
      %s843 = sadd.s32 5, %s643
      %s844 = scalar_lea.vmem [#allocation2], %s843
      %s845 = scalar_lea.sflag [#allocation3], %s843
      // Predicated region
      $region640: #{vocab_parallel_embedding.1} parent=488 // pred_check
        _
      $region641: #{vocab_parallel_embedding.1} parent=488 // pred_check_branch
        %847 = sbr.rel target = $region643
      $region642: #{vocab_parallel_embedding.1} parent=488 // pred_region
        // Predicated region
        $region655: #{vocab_parallel_embedding.1} parent=642 // pred_check
          _
        $region656: #{vocab_parallel_embedding.1} parent=642 // pred_check_branch
          %863 = sbr.rel (0) target = $region658
        $region657: #{vocab_parallel_embedding.1} parent=642 // pred_region
          %s865 = ssub.s32 2, 1
          loop: start=0, step=1, limit=1
          $region659: #{vocab_parallel_embedding.1} parent=657 // loop_pre_header
            _
          $region660: #{vocab_parallel_embedding.1} parent=657 // loop_header
            %s867 = sphi 0, %s871
            %p868 = scmp.ge.s32.totalorder %s867, 1
            %s872 = sphi %s842, %s842
            %s873 = sphi %s844, %s844
          $region661: #{vocab_parallel_embedding.1} parent=657 // loop_header_branch
            %870 = sbr.rel (%p868) target = $region665
          $region662: #{vocab_parallel_embedding.1} parent=657 // loop_body
            %v874 = vld [vmem:[%s872] sm:%s865]
            %875 = vst [vmem:[%s873] sm:%s865] %v874
          $region663: #{vocab_parallel_embedding.1} parent=657 // loop_footer
            %s871 = sadd.s32 1, %s867
          $region664: #{vocab_parallel_embedding.1} parent=657 // loop_footer_branch
            %866 = sbr.rel target = $region660
          $region665: #{vocab_parallel_embedding.1} parent=657 // loop_exit
            _
        $region658: #{vocab_parallel_embedding.1} parent=642 // pred_fallthru
          _
      $region643: #{vocab_parallel_embedding.1} parent=488 // pred_fallthru
        _
      // Predicated region
      $region644: #{vocab_parallel_embedding.1} parent=488 // pred_check
        _
      $region645: #{vocab_parallel_embedding.1} parent=488 // pred_check_branch
        %849 = sbr.rel (0) target = $region647
      $region646: #{vocab_parallel_embedding.1} parent=488 // pred_region
        %s851 = ssub.s32 2, 1
        loop: start=0, step=1, limit=1
        $region648: #{vocab_parallel_embedding.1} parent=646 // loop_pre_header
          _
        $region649: #{vocab_parallel_embedding.1} parent=646 // loop_header
          %s853 = sphi 0, %s857
          %p854 = scmp.ge.s32.totalorder %s853, 1
          %s858 = sphi %s842, %s842
          %s859 = sphi %s844, %s844
        $region650: #{vocab_parallel_embedding.1} parent=646 // loop_header_branch
          %856 = sbr.rel (%p854) target = $region654
        $region651: #{vocab_parallel_embedding.1} parent=646 // loop_body
          %v860 = vld [vmem:[%s858] sm:%s851]
          %861 = vst [vmem:[%s859] sm:%s851] %v860
        $region652: #{vocab_parallel_embedding.1} parent=646 // loop_footer
          %s857 = sadd.s32 1, %s853
        $region653: #{vocab_parallel_embedding.1} parent=646 // loop_footer_branch
          %852 = sbr.rel target = $region649
        $region654: #{vocab_parallel_embedding.1} parent=646 // loop_exit
          _
      $region647: #{vocab_parallel_embedding.1} parent=488 // pred_fallthru
        _
      // Predicated region
      $region666: #{vocab_parallel_embedding.1} parent=488 // pred_check
        _
      $region667: #{vocab_parallel_embedding.1} parent=488 // pred_check_branch
        %878 = sbr.rel (0) target = $region669
      $region668: #{vocab_parallel_embedding.1} parent=488 // pred_region
        %879 = vsyncadd %s845, 16
      $region669: #{vocab_parallel_embedding.1} parent=488 // pred_fallthru
        _
      %s880 = sadd.s32 %s640, 6
      %s881 = sld [smem:[#allocation5 + %s880]]
      %s882 = scalar_lea.vmem %s1, %s881
      %s883 = sadd.s32 6, %s643
      %s884 = scalar_lea.vmem [#allocation2], %s883
      %s885 = scalar_lea.sflag [#allocation3], %s883
      // Predicated region
      $region670: #{vocab_parallel_embedding.1} parent=488 // pred_check
        _
      $region671: #{vocab_parallel_embedding.1} parent=488 // pred_check_branch
        %887 = sbr.rel target = $region673
      $region672: #{vocab_parallel_embedding.1} parent=488 // pred_region
        // Predicated region
        $region685: #{vocab_parallel_embedding.1} parent=672 // pred_check
          _
        $region686: #{vocab_parallel_embedding.1} parent=672 // pred_check_branch
          %903 = sbr.rel (0) target = $region688
        $region687: #{vocab_parallel_embedding.1} parent=672 // pred_region
          %s905 = ssub.s32 2, 1
          loop: start=0, step=1, limit=1
          $region689: #{vocab_parallel_embedding.1} parent=687 // loop_pre_header
            _
          $region690: #{vocab_parallel_embedding.1} parent=687 // loop_header
            %s907 = sphi 0, %s911
            %p908 = scmp.ge.s32.totalorder %s907, 1
            %s912 = sphi %s882, %s882
            %s913 = sphi %s884, %s884
          $region691: #{vocab_parallel_embedding.1} parent=687 // loop_header_branch
            %910 = sbr.rel (%p908) target = $region695
          $region692: #{vocab_parallel_embedding.1} parent=687 // loop_body
            %v914 = vld [vmem:[%s912] sm:%s905]
            %915 = vst [vmem:[%s913] sm:%s905] %v914
          $region693: #{vocab_parallel_embedding.1} parent=687 // loop_footer
            %s911 = sadd.s32 1, %s907
          $region694: #{vocab_parallel_embedding.1} parent=687 // loop_footer_branch
            %906 = sbr.rel target = $region690
          $region695: #{vocab_parallel_embedding.1} parent=687 // loop_exit
            _
        $region688: #{vocab_parallel_embedding.1} parent=672 // pred_fallthru
          _
      $region673: #{vocab_parallel_embedding.1} parent=488 // pred_fallthru
        _
      // Predicated region
      $region674: #{vocab_parallel_embedding.1} parent=488 // pred_check
        _
      $region675: #{vocab_parallel_embedding.1} parent=488 // pred_check_branch
        %889 = sbr.rel (0) target = $region677
      $region676: #{vocab_parallel_embedding.1} parent=488 // pred_region
        %s891 = ssub.s32 2, 1
        loop: start=0, step=1, limit=1
        $region678: #{vocab_parallel_embedding.1} parent=676 // loop_pre_header
          _
        $region679: #{vocab_parallel_embedding.1} parent=676 // loop_header
          %s893 = sphi 0, %s897
          %p894 = scmp.ge.s32.totalorder %s893, 1
          %s898 = sphi %s882, %s882
          %s899 = sphi %s884, %s884
        $region680: #{vocab_parallel_embedding.1} parent=676 // loop_header_branch
          %896 = sbr.rel (%p894) target = $region684
        $region681: #{vocab_parallel_embedding.1} parent=676 // loop_body
          %v900 = vld [vmem:[%s898] sm:%s891]
          %901 = vst [vmem:[%s899] sm:%s891] %v900
        $region682: #{vocab_parallel_embedding.1} parent=676 // loop_footer
          %s897 = sadd.s32 1, %s893
        $region683: #{vocab_parallel_embedding.1} parent=676 // loop_footer_branch
          %892 = sbr.rel target = $region679
        $region684: #{vocab_parallel_embedding.1} parent=676 // loop_exit
          _
      $region677: #{vocab_parallel_embedding.1} parent=488 // pred_fallthru
        _
      // Predicated region
      $region696: #{vocab_parallel_embedding.1} parent=488 // pred_check
        _
      $region697: #{vocab_parallel_embedding.1} parent=488 // pred_check_branch
        %918 = sbr.rel (0) target = $region699
      $region698: #{vocab_parallel_embedding.1} parent=488 // pred_region
        %919 = vsyncadd %s885, 16
      $region699: #{vocab_parallel_embedding.1} parent=488 // pred_fallthru
        _
      %s920 = sadd.s32 %s640, 7
      %s921 = sld [smem:[#allocation5 + %s920]]
      %s922 = scalar_lea.vmem %s1, %s921
      %s923 = sadd.s32 7, %s643
      %s924 = scalar_lea.vmem [#allocation2], %s923
      %s925 = scalar_lea.sflag [#allocation3], %s923
      // Predicated region
      $region700: #{vocab_parallel_embedding.1} parent=488 // pred_check
        _
      $region701: #{vocab_parallel_embedding.1} parent=488 // pred_check_branch
        %927 = sbr.rel target = $region703
      $region702: #{vocab_parallel_embedding.1} parent=488 // pred_region
        // Predicated region
        $region715: #{vocab_parallel_embedding.1} parent=702 // pred_check
          _
        $region716: #{vocab_parallel_embedding.1} parent=702 // pred_check_branch
          %943 = sbr.rel (0) target = $region718
        $region717: #{vocab_parallel_embedding.1} parent=702 // pred_region
          %s945 = ssub.s32 2, 1
          loop: start=0, step=1, limit=1
          $region719: #{vocab_parallel_embedding.1} parent=717 // loop_pre_header
            _
          $region720: #{vocab_parallel_embedding.1} parent=717 // loop_header
            %s947 = sphi 0, %s951
            %p948 = scmp.ge.s32.totalorder %s947, 1
            %s952 = sphi %s922, %s922
            %s953 = sphi %s924, %s924
          $region721: #{vocab_parallel_embedding.1} parent=717 // loop_header_branch
            %950 = sbr.rel (%p948) target = $region725
          $region722: #{vocab_parallel_embedding.1} parent=717 // loop_body
            %v954 = vld [vmem:[%s952] sm:%s945]
            %955 = vst [vmem:[%s953] sm:%s945] %v954
          $region723: #{vocab_parallel_embedding.1} parent=717 // loop_footer
            %s951 = sadd.s32 1, %s947
          $region724: #{vocab_parallel_embedding.1} parent=717 // loop_footer_branch
            %946 = sbr.rel target = $region720
          $region725: #{vocab_parallel_embedding.1} parent=717 // loop_exit
            _
        $region718: #{vocab_parallel_embedding.1} parent=702 // pred_fallthru
          _
      $region703: #{vocab_parallel_embedding.1} parent=488 // pred_fallthru
        _
      // Predicated region
      $region704: #{vocab_parallel_embedding.1} parent=488 // pred_check
        _
      $region705: #{vocab_parallel_embedding.1} parent=488 // pred_check_branch
        %929 = sbr.rel (0) target = $region707
      $region706: #{vocab_parallel_embedding.1} parent=488 // pred_region
        %s931 = ssub.s32 2, 1
        loop: start=0, step=1, limit=1
        $region708: #{vocab_parallel_embedding.1} parent=706 // loop_pre_header
          _
        $region709: #{vocab_parallel_embedding.1} parent=706 // loop_header
          %s933 = sphi 0, %s937
          %p934 = scmp.ge.s32.totalorder %s933, 1
          %s938 = sphi %s922, %s922
          %s939 = sphi %s924, %s924
        $region710: #{vocab_parallel_embedding.1} parent=706 // loop_header_branch
          %936 = sbr.rel (%p934) target = $region714
        $region711: #{vocab_parallel_embedding.1} parent=706 // loop_body
          %v940 = vld [vmem:[%s938] sm:%s931]
          %941 = vst [vmem:[%s939] sm:%s931] %v940
        $region712: #{vocab_parallel_embedding.1} parent=706 // loop_footer
          %s937 = sadd.s32 1, %s933
        $region713: #{vocab_parallel_embedding.1} parent=706 // loop_footer_branch
          %932 = sbr.rel target = $region709
        $region714: #{vocab_parallel_embedding.1} parent=706 // loop_exit
          _
      $region707: #{vocab_parallel_embedding.1} parent=488 // pred_fallthru
        _
      // Predicated region
      $region726: #{vocab_parallel_embedding.1} parent=488 // pred_check
        _
      $region727: #{vocab_parallel_embedding.1} parent=488 // pred_check_branch
        %958 = sbr.rel (0) target = $region729
      $region728: #{vocab_parallel_embedding.1} parent=488 // pred_region
        %959 = vsyncadd %s925, 16
      $region729: #{vocab_parallel_embedding.1} parent=488 // pred_fallthru
        _
      %s960 = sadd.s32 %s640, 8
      %s961 = sld [smem:[#allocation5 + %s960]]
      %s962 = scalar_lea.vmem %s1, %s961
      %s963 = sadd.s32 8, %s643
      %s964 = scalar_lea.vmem [#allocation2], %s963
      %s965 = scalar_lea.sflag [#allocation3], %s963
      // Predicated region
      $region730: #{vocab_parallel_embedding.1} parent=488 // pred_check
        _
      $region731: #{vocab_parallel_embedding.1} parent=488 // pred_check_branch
        %967 = sbr.rel target = $region733
      $region732: #{vocab_parallel_embedding.1} parent=488 // pred_region
        // Predicated region
        $region745: #{vocab_parallel_embedding.1} parent=732 // pred_check
          _
        $region746: #{vocab_parallel_embedding.1} parent=732 // pred_check_branch
          %983 = sbr.rel (0) target = $region748
        $region747: #{vocab_parallel_embedding.1} parent=732 // pred_region
          %s985 = ssub.s32 2, 1
          loop: start=0, step=1, limit=1
          $region749: #{vocab_parallel_embedding.1} parent=747 // loop_pre_header
            _
          $region750: #{vocab_parallel_embedding.1} parent=747 // loop_header
            %s987 = sphi 0, %s991
            %p988 = scmp.ge.s32.totalorder %s987, 1
            %s992 = sphi %s962, %s962
            %s993 = sphi %s964, %s964
          $region751: #{vocab_parallel_embedding.1} parent=747 // loop_header_branch
            %990 = sbr.rel (%p988) target = $region755
          $region752: #{vocab_parallel_embedding.1} parent=747 // loop_body
            %v994 = vld [vmem:[%s992] sm:%s985]
            %995 = vst [vmem:[%s993] sm:%s985] %v994
          $region753: #{vocab_parallel_embedding.1} parent=747 // loop_footer
            %s991 = sadd.s32 1, %s987
          $region754: #{vocab_parallel_embedding.1} parent=747 // loop_footer_branch
            %986 = sbr.rel target = $region750
          $region755: #{vocab_parallel_embedding.1} parent=747 // loop_exit
            _
        $region748: #{vocab_parallel_embedding.1} parent=732 // pred_fallthru
          _
      $region733: #{vocab_parallel_embedding.1} parent=488 // pred_fallthru
        _
      // Predicated region
      $region734: #{vocab_parallel_embedding.1} parent=488 // pred_check
        _
      $region735: #{vocab_parallel_embedding.1} parent=488 // pred_check_branch
        %969 = sbr.rel (0) target = $region737
      $region736: #{vocab_parallel_embedding.1} parent=488 // pred_region
        %s971 = ssub.s32 2, 1
        loop: start=0, step=1, limit=1
        $region738: #{vocab_parallel_embedding.1} parent=736 // loop_pre_header
          _
        $region739: #{vocab_parallel_embedding.1} parent=736 // loop_header
          %s973 = sphi 0, %s977
          %p974 = scmp.ge.s32.totalorder %s973, 1
          %s978 = sphi %s962, %s962
          %s979 = sphi %s964, %s964
        $region740: #{vocab_parallel_embedding.1} parent=736 // loop_header_branch
          %976 = sbr.rel (%p974) target = $region744
        $region741: #{vocab_parallel_embedding.1} parent=736 // loop_body
          %v980 = vld [vmem:[%s978] sm:%s971]
          %981 = vst [vmem:[%s979] sm:%s971] %v980
        $region742: #{vocab_parallel_embedding.1} parent=736 // loop_footer
          %s977 = sadd.s32 1, %s973
        $region743: #{vocab_parallel_embedding.1} parent=736 // loop_footer_branch
          %972 = sbr.rel target = $region739
        $region744: #{vocab_parallel_embedding.1} parent=736 // loop_exit
          _
      $region737: #{vocab_parallel_embedding.1} parent=488 // pred_fallthru
        _
      // Predicated region
      $region756: #{vocab_parallel_embedding.1} parent=488 // pred_check
        _
      $region757: #{vocab_parallel_embedding.1} parent=488 // pred_check_branch
        %998 = sbr.rel (0) target = $region759
      $region758: #{vocab_parallel_embedding.1} parent=488 // pred_region
        %999 = vsyncadd %s965, 16
      $region759: #{vocab_parallel_embedding.1} parent=488 // pred_fallthru
        _
      %s1000 = sadd.s32 %s640, 9
      %s1001 = sld [smem:[#allocation5 + %s1000]]
      %s1002 = scalar_lea.vmem %s1, %s1001
      %s1003 = sadd.s32 9, %s643
      %s1004 = scalar_lea.vmem [#allocation2], %s1003
      %s1005 = scalar_lea.sflag [#allocation3], %s1003
      // Predicated region
      $region760: #{vocab_parallel_embedding.1} parent=488 // pred_check
        _
      $region761: #{vocab_parallel_embedding.1} parent=488 // pred_check_branch
        %1007 = sbr.rel target = $region763
      $region762: #{vocab_parallel_embedding.1} parent=488 // pred_region
        // Predicated region
        $region775: #{vocab_parallel_embedding.1} parent=762 // pred_check
          _
        $region776: #{vocab_parallel_embedding.1} parent=762 // pred_check_branch
          %1023 = sbr.rel (0) target = $region778
        $region777: #{vocab_parallel_embedding.1} parent=762 // pred_region
          %s1025 = ssub.s32 2, 1
          loop: start=0, step=1, limit=1
          $region779: #{vocab_parallel_embedding.1} parent=777 // loop_pre_header
            _
          $region780: #{vocab_parallel_embedding.1} parent=777 // loop_header
            %s1027 = sphi 0, %s1031
            %p1028 = scmp.ge.s32.totalorder %s1027, 1
            %s1032 = sphi %s1002, %s1002
            %s1033 = sphi %s1004, %s1004
          $region781: #{vocab_parallel_embedding.1} parent=777 // loop_header_branch
            %1030 = sbr.rel (%p1028) target = $region785
          $region782: #{vocab_parallel_embedding.1} parent=777 // loop_body
            %v1034 = vld [vmem:[%s1032] sm:%s1025]
            %1035 = vst [vmem:[%s1033] sm:%s1025] %v1034
          $region783: #{vocab_parallel_embedding.1} parent=777 // loop_footer
            %s1031 = sadd.s32 1, %s1027
          $region784: #{vocab_parallel_embedding.1} parent=777 // loop_footer_branch
            %1026 = sbr.rel target = $region780
          $region785: #{vocab_parallel_embedding.1} parent=777 // loop_exit
            _
        $region778: #{vocab_parallel_embedding.1} parent=762 // pred_fallthru
          _
      $region763: #{vocab_parallel_embedding.1} parent=488 // pred_fallthru
        _
      // Predicated region
      $region764: #{vocab_parallel_embedding.1} parent=488 // pred_check
        _
      $region765: #{vocab_parallel_embedding.1} parent=488 // pred_check_branch
        %1009 = sbr.rel (0) target = $region767
      $region766: #{vocab_parallel_embedding.1} parent=488 // pred_region
        %s1011 = ssub.s32 2, 1
        loop: start=0, step=1, limit=1
        $region768: #{vocab_parallel_embedding.1} parent=766 // loop_pre_header
          _
        $region769: #{vocab_parallel_embedding.1} parent=766 // loop_header
          %s1013 = sphi 0, %s1017
          %p1014 = scmp.ge.s32.totalorder %s1013, 1
          %s1018 = sphi %s1002, %s1002
          %s1019 = sphi %s1004, %s1004
        $region770: #{vocab_parallel_embedding.1} parent=766 // loop_header_branch
          %1016 = sbr.rel (%p1014) target = $region774
        $region771: #{vocab_parallel_embedding.1} parent=766 // loop_body
          %v1020 = vld [vmem:[%s1018] sm:%s1011]
          %1021 = vst [vmem:[%s1019] sm:%s1011] %v1020
        $region772: #{vocab_parallel_embedding.1} parent=766 // loop_footer
          %s1017 = sadd.s32 1, %s1013
        $region773: #{vocab_parallel_embedding.1} parent=766 // loop_footer_branch
          %1012 = sbr.rel target = $region769
        $region774: #{vocab_parallel_embedding.1} parent=766 // loop_exit
          _
      $region767: #{vocab_parallel_embedding.1} parent=488 // pred_fallthru
        _
      // Predicated region
      $region786: #{vocab_parallel_embedding.1} parent=488 // pred_check
        _
      $region787: #{vocab_parallel_embedding.1} parent=488 // pred_check_branch
        %1038 = sbr.rel (0) target = $region789
      $region788: #{vocab_parallel_embedding.1} parent=488 // pred_region
        %1039 = vsyncadd %s1005, 16
      $region789: #{vocab_parallel_embedding.1} parent=488 // pred_fallthru
        _
      %s1040 = sadd.s32 %s640, 10
      %s1041 = sld [smem:[#allocation5 + %s1040]]
      %s1042 = scalar_lea.vmem %s1, %s1041
      %s1043 = sadd.s32 10, %s643
      %s1044 = scalar_lea.vmem [#allocation2], %s1043
      %s1045 = scalar_lea.sflag [#allocation3], %s1043
      // Predicated region
      $region790: #{vocab_parallel_embedding.1} parent=488 // pred_check
        _
      $region791: #{vocab_parallel_embedding.1} parent=488 // pred_check_branch
        %1047 = sbr.rel target = $region793
      $region792: #{vocab_parallel_embedding.1} parent=488 // pred_region
        // Predicated region
        $region805: #{vocab_parallel_embedding.1} parent=792 // pred_check
          _
        $region806: #{vocab_parallel_embedding.1} parent=792 // pred_check_branch
          %1063 = sbr.rel (0) target = $region808
        $region807: #{vocab_parallel_embedding.1} parent=792 // pred_region
          %s1065 = ssub.s32 2, 1
          loop: start=0, step=1, limit=1
          $region809: #{vocab_parallel_embedding.1} parent=807 // loop_pre_header
            _
          $region810: #{vocab_parallel_embedding.1} parent=807 // loop_header
            %s1067 = sphi 0, %s1071
            %p1068 = scmp.ge.s32.totalorder %s1067, 1
            %s1072 = sphi %s1042, %s1042
            %s1073 = sphi %s1044, %s1044
          $region811: #{vocab_parallel_embedding.1} parent=807 // loop_header_branch
            %1070 = sbr.rel (%p1068) target = $region815
          $region812: #{vocab_parallel_embedding.1} parent=807 // loop_body
            %v1074 = vld [vmem:[%s1072] sm:%s1065]
            %1075 = vst [vmem:[%s1073] sm:%s1065] %v1074
          $region813: #{vocab_parallel_embedding.1} parent=807 // loop_footer
            %s1071 = sadd.s32 1, %s1067
          $region814: #{vocab_parallel_embedding.1} parent=807 // loop_footer_branch
            %1066 = sbr.rel target = $region810
          $region815: #{vocab_parallel_embedding.1} parent=807 // loop_exit
            _
        $region808: #{vocab_parallel_embedding.1} parent=792 // pred_fallthru
          _
      $region793: #{vocab_parallel_embedding.1} parent=488 // pred_fallthru
        _
      // Predicated region
      $region794: #{vocab_parallel_embedding.1} parent=488 // pred_check
        _
      $region795: #{vocab_parallel_embedding.1} parent=488 // pred_check_branch
        %1049 = sbr.rel (0) target = $region797
      $region796: #{vocab_parallel_embedding.1} parent=488 // pred_region
        %s1051 = ssub.s32 2, 1
        loop: start=0, step=1, limit=1
        $region798: #{vocab_parallel_embedding.1} parent=796 // loop_pre_header
          _
        $region799: #{vocab_parallel_embedding.1} parent=796 // loop_header
          %s1053 = sphi 0, %s1057
          %p1054 = scmp.ge.s32.totalorder %s1053, 1
          %s1058 = sphi %s1042, %s1042
          %s1059 = sphi %s1044, %s1044
        $region800: #{vocab_parallel_embedding.1} parent=796 // loop_header_branch
          %1056 = sbr.rel (%p1054) target = $region804
        $region801: #{vocab_parallel_embedding.1} parent=796 // loop_body
          %v1060 = vld [vmem:[%s1058] sm:%s1051]
          %1061 = vst [vmem:[%s1059] sm:%s1051] %v1060
        $region802: #{vocab_parallel_embedding.1} parent=796 // loop_footer
          %s1057 = sadd.s32 1, %s1053
        $region803: #{vocab_parallel_embedding.1} parent=796 // loop_footer_branch
          %1052 = sbr.rel target = $region799
        $region804: #{vocab_parallel_embedding.1} parent=796 // loop_exit
          _
      $region797: #{vocab_parallel_embedding.1} parent=488 // pred_fallthru
        _
      // Predicated region
      $region816: #{vocab_parallel_embedding.1} parent=488 // pred_check
        _
      $region817: #{vocab_parallel_embedding.1} parent=488 // pred_check_branch
        %1078 = sbr.rel (0) target = $region819
      $region818: #{vocab_parallel_embedding.1} parent=488 // pred_region
        %1079 = vsyncadd %s1045, 16
      $region819: #{vocab_parallel_embedding.1} parent=488 // pred_fallthru
        _
      %s1080 = sadd.s32 %s640, 11
      %s1081 = sld [smem:[#allocation5 + %s1080]]
      %s1082 = scalar_lea.vmem %s1, %s1081
      %s1083 = sadd.s32 11, %s643
      %s1084 = scalar_lea.vmem [#allocation2], %s1083
      %s1085 = scalar_lea.sflag [#allocation3], %s1083
      // Predicated region
      $region820: #{vocab_parallel_embedding.1} parent=488 // pred_check
        _
      $region821: #{vocab_parallel_embedding.1} parent=488 // pred_check_branch
        %1087 = sbr.rel target = $region823
      $region822: #{vocab_parallel_embedding.1} parent=488 // pred_region
        // Predicated region
        $region835: #{vocab_parallel_embedding.1} parent=822 // pred_check
          _
        $region836: #{vocab_parallel_embedding.1} parent=822 // pred_check_branch
          %1103 = sbr.rel (0) target = $region838
        $region837: #{vocab_parallel_embedding.1} parent=822 // pred_region
          %s1105 = ssub.s32 2, 1
          loop: start=0, step=1, limit=1
          $region839: #{vocab_parallel_embedding.1} parent=837 // loop_pre_header
            _
          $region840: #{vocab_parallel_embedding.1} parent=837 // loop_header
            %s1107 = sphi 0, %s1111
            %p1108 = scmp.ge.s32.totalorder %s1107, 1
            %s1112 = sphi %s1082, %s1082
            %s1113 = sphi %s1084, %s1084
          $region841: #{vocab_parallel_embedding.1} parent=837 // loop_header_branch
            %1110 = sbr.rel (%p1108) target = $region845
          $region842: #{vocab_parallel_embedding.1} parent=837 // loop_body
            %v1114 = vld [vmem:[%s1112] sm:%s1105]
            %1115 = vst [vmem:[%s1113] sm:%s1105] %v1114
          $region843: #{vocab_parallel_embedding.1} parent=837 // loop_footer
            %s1111 = sadd.s32 1, %s1107
          $region844: #{vocab_parallel_embedding.1} parent=837 // loop_footer_branch
            %1106 = sbr.rel target = $region840
          $region845: #{vocab_parallel_embedding.1} parent=837 // loop_exit
            _
        $region838: #{vocab_parallel_embedding.1} parent=822 // pred_fallthru
          _
      $region823: #{vocab_parallel_embedding.1} parent=488 // pred_fallthru
        _
      // Predicated region
      $region824: #{vocab_parallel_embedding.1} parent=488 // pred_check
        _
      $region825: #{vocab_parallel_embedding.1} parent=488 // pred_check_branch
        %1089 = sbr.rel (0) target = $region827
      $region826: #{vocab_parallel_embedding.1} parent=488 // pred_region
        %s1091 = ssub.s32 2, 1
        loop: start=0, step=1, limit=1
        $region828: #{vocab_parallel_embedding.1} parent=826 // loop_pre_header
          _
        $region829: #{vocab_parallel_embedding.1} parent=826 // loop_header
          %s1093 = sphi 0, %s1097
          %p1094 = scmp.ge.s32.totalorder %s1093, 1
          %s1098 = sphi %s1082, %s1082
          %s1099 = sphi %s1084, %s1084
        $region830: #{vocab_parallel_embedding.1} parent=826 // loop_header_branch
          %1096 = sbr.rel (%p1094) target = $region834
        $region831: #{vocab_parallel_embedding.1} parent=826 // loop_body
          %v1100 = vld [vmem:[%s1098] sm:%s1091]
          %1101 = vst [vmem:[%s1099] sm:%s1091] %v1100
        $region832: #{vocab_parallel_embedding.1} parent=826 // loop_footer
          %s1097 = sadd.s32 1, %s1093
        $region833: #{vocab_parallel_embedding.1} parent=826 // loop_footer_branch
          %1092 = sbr.rel target = $region829
        $region834: #{vocab_parallel_embedding.1} parent=826 // loop_exit
          _
      $region827: #{vocab_parallel_embedding.1} parent=488 // pred_fallthru
        _
      // Predicated region
      $region846: #{vocab_parallel_embedding.1} parent=488 // pred_check
        _
      $region847: #{vocab_parallel_embedding.1} parent=488 // pred_check_branch
        %1118 = sbr.rel (0) target = $region849
      $region848: #{vocab_parallel_embedding.1} parent=488 // pred_region
        %1119 = vsyncadd %s1085, 16
      $region849: #{vocab_parallel_embedding.1} parent=488 // pred_fallthru
        _
      %s1120 = sadd.s32 %s640, 12
      %s1121 = sld [smem:[#allocation5 + %s1120]]
      %s1122 = scalar_lea.vmem %s1, %s1121
      %s1123 = sadd.s32 12, %s643
      %s1124 = scalar_lea.vmem [#allocation2], %s1123
      %s1125 = scalar_lea.sflag [#allocation3], %s1123
      // Predicated region
      $region850: #{vocab_parallel_embedding.1} parent=488 // pred_check
        _
      $region851: #{vocab_parallel_embedding.1} parent=488 // pred_check_branch
        %1127 = sbr.rel target = $region853
      $region852: #{vocab_parallel_embedding.1} parent=488 // pred_region
        // Predicated region
        $region865: #{vocab_parallel_embedding.1} parent=852 // pred_check
          _
        $region866: #{vocab_parallel_embedding.1} parent=852 // pred_check_branch
          %1143 = sbr.rel (0) target = $region868
        $region867: #{vocab_parallel_embedding.1} parent=852 // pred_region
          %s1145 = ssub.s32 2, 1
          loop: start=0, step=1, limit=1
          $region869: #{vocab_parallel_embedding.1} parent=867 // loop_pre_header
            _
          $region870: #{vocab_parallel_embedding.1} parent=867 // loop_header
            %s1147 = sphi 0, %s1151
            %p1148 = scmp.ge.s32.totalorder %s1147, 1
            %s1152 = sphi %s1122, %s1122
            %s1153 = sphi %s1124, %s1124
          $region871: #{vocab_parallel_embedding.1} parent=867 // loop_header_branch
            %1150 = sbr.rel (%p1148) target = $region875
          $region872: #{vocab_parallel_embedding.1} parent=867 // loop_body
            %v1154 = vld [vmem:[%s1152] sm:%s1145]
            %1155 = vst [vmem:[%s1153] sm:%s1145] %v1154
          $region873: #{vocab_parallel_embedding.1} parent=867 // loop_footer
            %s1151 = sadd.s32 1, %s1147
          $region874: #{vocab_parallel_embedding.1} parent=867 // loop_footer_branch
            %1146 = sbr.rel target = $region870
          $region875: #{vocab_parallel_embedding.1} parent=867 // loop_exit
            _
        $region868: #{vocab_parallel_embedding.1} parent=852 // pred_fallthru
          _
      $region853: #{vocab_parallel_embedding.1} parent=488 // pred_fallthru
        _
      // Predicated region
      $region854: #{vocab_parallel_embedding.1} parent=488 // pred_check
        _
      $region855: #{vocab_parallel_embedding.1} parent=488 // pred_check_branch
        %1129 = sbr.rel (0) target = $region857
      $region856: #{vocab_parallel_embedding.1} parent=488 // pred_region
        %s1131 = ssub.s32 2, 1
        loop: start=0, step=1, limit=1
        $region858: #{vocab_parallel_embedding.1} parent=856 // loop_pre_header
          _
        $region859: #{vocab_parallel_embedding.1} parent=856 // loop_header
          %s1133 = sphi 0, %s1137
          %p1134 = scmp.ge.s32.totalorder %s1133, 1
          %s1138 = sphi %s1122, %s1122
          %s1139 = sphi %s1124, %s1124
        $region860: #{vocab_parallel_embedding.1} parent=856 // loop_header_branch
          %1136 = sbr.rel (%p1134) target = $region864
        $region861: #{vocab_parallel_embedding.1} parent=856 // loop_body
          %v1140 = vld [vmem:[%s1138] sm:%s1131]
          %1141 = vst [vmem:[%s1139] sm:%s1131] %v1140
        $region862: #{vocab_parallel_embedding.1} parent=856 // loop_footer
          %s1137 = sadd.s32 1, %s1133
        $region863: #{vocab_parallel_embedding.1} parent=856 // loop_footer_branch
          %1132 = sbr.rel target = $region859
        $region864: #{vocab_parallel_embedding.1} parent=856 // loop_exit
          _
      $region857: #{vocab_parallel_embedding.1} parent=488 // pred_fallthru
        _
      // Predicated region
      $region876: #{vocab_parallel_embedding.1} parent=488 // pred_check
        _
      $region877: #{vocab_parallel_embedding.1} parent=488 // pred_check_branch
        %1158 = sbr.rel (0) target = $region879
      $region878: #{vocab_parallel_embedding.1} parent=488 // pred_region
        %1159 = vsyncadd %s1125, 16
      $region879: #{vocab_parallel_embedding.1} parent=488 // pred_fallthru
        _
      %s1160 = sadd.s32 %s640, 13
      %s1161 = sld [smem:[#allocation5 + %s1160]]
      %s1162 = scalar_lea.vmem %s1, %s1161
      %s1163 = sadd.s32 13, %s643
      %s1164 = scalar_lea.vmem [#allocation2], %s1163
      %s1165 = scalar_lea.sflag [#allocation3], %s1163
      // Predicated region
      $region880: #{vocab_parallel_embedding.1} parent=488 // pred_check
        _
      $region881: #{vocab_parallel_embedding.1} parent=488 // pred_check_branch
        %1167 = sbr.rel target = $region883
      $region882: #{vocab_parallel_embedding.1} parent=488 // pred_region
        // Predicated region
        $region895: #{vocab_parallel_embedding.1} parent=882 // pred_check
          _
        $region896: #{vocab_parallel_embedding.1} parent=882 // pred_check_branch
          %1183 = sbr.rel (0) target = $region898
        $region897: #{vocab_parallel_embedding.1} parent=882 // pred_region
          %s1185 = ssub.s32 2, 1
          loop: start=0, step=1, limit=1
          $region899: #{vocab_parallel_embedding.1} parent=897 // loop_pre_header
            _
          $region900: #{vocab_parallel_embedding.1} parent=897 // loop_header
            %s1187 = sphi 0, %s1191
            %p1188 = scmp.ge.s32.totalorder %s1187, 1
            %s1192 = sphi %s1162, %s1162
            %s1193 = sphi %s1164, %s1164
          $region901: #{vocab_parallel_embedding.1} parent=897 // loop_header_branch
            %1190 = sbr.rel (%p1188) target = $region905
          $region902: #{vocab_parallel_embedding.1} parent=897 // loop_body
            %v1194 = vld [vmem:[%s1192] sm:%s1185]
            %1195 = vst [vmem:[%s1193] sm:%s1185] %v1194
          $region903: #{vocab_parallel_embedding.1} parent=897 // loop_footer
            %s1191 = sadd.s32 1, %s1187
          $region904: #{vocab_parallel_embedding.1} parent=897 // loop_footer_branch
            %1186 = sbr.rel target = $region900
          $region905: #{vocab_parallel_embedding.1} parent=897 // loop_exit
            _
        $region898: #{vocab_parallel_embedding.1} parent=882 // pred_fallthru
          _
      $region883: #{vocab_parallel_embedding.1} parent=488 // pred_fallthru
        _
      // Predicated region
      $region884: #{vocab_parallel_embedding.1} parent=488 // pred_check
        _
      $region885: #{vocab_parallel_embedding.1} parent=488 // pred_check_branch
        %1169 = sbr.rel (0) target = $region887
      $region886: #{vocab_parallel_embedding.1} parent=488 // pred_region
        %s1171 = ssub.s32 2, 1
        loop: start=0, step=1, limit=1
        $region888: #{vocab_parallel_embedding.1} parent=886 // loop_pre_header
          _
        $region889: #{vocab_parallel_embedding.1} parent=886 // loop_header
          %s1173 = sphi 0, %s1177
          %p1174 = scmp.ge.s32.totalorder %s1173, 1
          %s1178 = sphi %s1162, %s1162
          %s1179 = sphi %s1164, %s1164
        $region890: #{vocab_parallel_embedding.1} parent=886 // loop_header_branch
          %1176 = sbr.rel (%p1174) target = $region894
        $region891: #{vocab_parallel_embedding.1} parent=886 // loop_body
          %v1180 = vld [vmem:[%s1178] sm:%s1171]
          %1181 = vst [vmem:[%s1179] sm:%s1171] %v1180
        $region892: #{vocab_parallel_embedding.1} parent=886 // loop_footer
          %s1177 = sadd.s32 1, %s1173
        $region893: #{vocab_parallel_embedding.1} parent=886 // loop_footer_branch
          %1172 = sbr.rel target = $region889
        $region894: #{vocab_parallel_embedding.1} parent=886 // loop_exit
          _
      $region887: #{vocab_parallel_embedding.1} parent=488 // pred_fallthru
        _
      // Predicated region
      $region906: #{vocab_parallel_embedding.1} parent=488 // pred_check
        _
      $region907: #{vocab_parallel_embedding.1} parent=488 // pred_check_branch
        %1198 = sbr.rel (0) target = $region909
      $region908: #{vocab_parallel_embedding.1} parent=488 // pred_region
        %1199 = vsyncadd %s1165, 16
      $region909: #{vocab_parallel_embedding.1} parent=488 // pred_fallthru
        _
      %s1200 = sadd.s32 %s640, 14
      %s1201 = sld [smem:[#allocation5 + %s1200]]
      %s1202 = scalar_lea.vmem %s1, %s1201
      %s1203 = sadd.s32 14, %s643
      %s1204 = scalar_lea.vmem [#allocation2], %s1203
      %s1205 = scalar_lea.sflag [#allocation3], %s1203
      // Predicated region
      $region910: #{vocab_parallel_embedding.1} parent=488 // pred_check
        _
      $region911: #{vocab_parallel_embedding.1} parent=488 // pred_check_branch
        %1207 = sbr.rel target = $region913
      $region912: #{vocab_parallel_embedding.1} parent=488 // pred_region
        // Predicated region
        $region925: #{vocab_parallel_embedding.1} parent=912 // pred_check
          _
        $region926: #{vocab_parallel_embedding.1} parent=912 // pred_check_branch
          %1223 = sbr.rel (0) target = $region928
        $region927: #{vocab_parallel_embedding.1} parent=912 // pred_region
          %s1225 = ssub.s32 2, 1
          loop: start=0, step=1, limit=1
          $region929: #{vocab_parallel_embedding.1} parent=927 // loop_pre_header
            _
          $region930: #{vocab_parallel_embedding.1} parent=927 // loop_header
            %s1227 = sphi 0, %s1231
            %p1228 = scmp.ge.s32.totalorder %s1227, 1
            %s1232 = sphi %s1202, %s1202
            %s1233 = sphi %s1204, %s1204
          $region931: #{vocab_parallel_embedding.1} parent=927 // loop_header_branch
            %1230 = sbr.rel (%p1228) target = $region935
          $region932: #{vocab_parallel_embedding.1} parent=927 // loop_body
            %v1234 = vld [vmem:[%s1232] sm:%s1225]
            %1235 = vst [vmem:[%s1233] sm:%s1225] %v1234
          $region933: #{vocab_parallel_embedding.1} parent=927 // loop_footer
            %s1231 = sadd.s32 1, %s1227
          $region934: #{vocab_parallel_embedding.1} parent=927 // loop_footer_branch
            %1226 = sbr.rel target = $region930
          $region935: #{vocab_parallel_embedding.1} parent=927 // loop_exit
            _
        $region928: #{vocab_parallel_embedding.1} parent=912 // pred_fallthru
          _
      $region913: #{vocab_parallel_embedding.1} parent=488 // pred_fallthru
        _
      // Predicated region
      $region914: #{vocab_parallel_embedding.1} parent=488 // pred_check
        _
      $region915: #{vocab_parallel_embedding.1} parent=488 // pred_check_branch
        %1209 = sbr.rel (0) target = $region917
      $region916: #{vocab_parallel_embedding.1} parent=488 // pred_region
        %s1211 = ssub.s32 2, 1
        loop: start=0, step=1, limit=1
        $region918: #{vocab_parallel_embedding.1} parent=916 // loop_pre_header
          _
        $region919: #{vocab_parallel_embedding.1} parent=916 // loop_header
          %s1213 = sphi 0, %s1217
          %p1214 = scmp.ge.s32.totalorder %s1213, 1
          %s1218 = sphi %s1202, %s1202
          %s1219 = sphi %s1204, %s1204
        $region920: #{vocab_parallel_embedding.1} parent=916 // loop_header_branch
          %1216 = sbr.rel (%p1214) target = $region924
        $region921: #{vocab_parallel_embedding.1} parent=916 // loop_body
          %v1220 = vld [vmem:[%s1218] sm:%s1211]
          %1221 = vst [vmem:[%s1219] sm:%s1211] %v1220
        $region922: #{vocab_parallel_embedding.1} parent=916 // loop_footer
          %s1217 = sadd.s32 1, %s1213
        $region923: #{vocab_parallel_embedding.1} parent=916 // loop_footer_branch
          %1212 = sbr.rel target = $region919
        $region924: #{vocab_parallel_embedding.1} parent=916 // loop_exit
          _
      $region917: #{vocab_parallel_embedding.1} parent=488 // pred_fallthru
        _
      // Predicated region
      $region936: #{vocab_parallel_embedding.1} parent=488 // pred_check
        _
      $region937: #{vocab_parallel_embedding.1} parent=488 // pred_check_branch
        %1238 = sbr.rel (0) target = $region939
      $region938: #{vocab_parallel_embedding.1} parent=488 // pred_region
        %1239 = vsyncadd %s1205, 16
      $region939: #{vocab_parallel_embedding.1} parent=488 // pred_fallthru
        _
      %s1240 = sadd.s32 %s640, 15
      %s1241 = sld [smem:[#allocation5 + %s1240]]
      %s1242 = scalar_lea.vmem %s1, %s1241
      %s1243 = sadd.s32 15, %s643
      %s1244 = scalar_lea.vmem [#allocation2], %s1243
      %s1245 = scalar_lea.sflag [#allocation3], %s1243
      // Predicated region
      $region940: #{vocab_parallel_embedding.1} parent=488 // pred_check
        _
      $region941: #{vocab_parallel_embedding.1} parent=488 // pred_check_branch
        %1247 = sbr.rel target = $region943
      $region942: #{vocab_parallel_embedding.1} parent=488 // pred_region
        // Predicated region
        $region955: #{vocab_parallel_embedding.1} parent=942 // pred_check
          _
        $region956: #{vocab_parallel_embedding.1} parent=942 // pred_check_branch
          %1263 = sbr.rel (0) target = $region958
        $region957: #{vocab_parallel_embedding.1} parent=942 // pred_region
          %s1265 = ssub.s32 2, 1
          loop: start=0, step=1, limit=1
          $region959: #{vocab_parallel_embedding.1} parent=957 // loop_pre_header
            _
          $region960: #{vocab_parallel_embedding.1} parent=957 // loop_header
            %s1267 = sphi 0, %s1271
            %p1268 = scmp.ge.s32.totalorder %s1267, 1
            %s1272 = sphi %s1242, %s1242
            %s1273 = sphi %s1244, %s1244
          $region961: #{vocab_parallel_embedding.1} parent=957 // loop_header_branch
            %1270 = sbr.rel (%p1268) target = $region965
          $region962: #{vocab_parallel_embedding.1} parent=957 // loop_body
            %v1274 = vld [vmem:[%s1272] sm:%s1265]
            %1275 = vst [vmem:[%s1273] sm:%s1265] %v1274
          $region963: #{vocab_parallel_embedding.1} parent=957 // loop_footer
            %s1271 = sadd.s32 1, %s1267
          $region964: #{vocab_parallel_embedding.1} parent=957 // loop_footer_branch
            %1266 = sbr.rel target = $region960
          $region965: #{vocab_parallel_embedding.1} parent=957 // loop_exit
            _
        $region958: #{vocab_parallel_embedding.1} parent=942 // pred_fallthru
          _
      $region943: #{vocab_parallel_embedding.1} parent=488 // pred_fallthru
        _
      // Predicated region
      $region944: #{vocab_parallel_embedding.1} parent=488 // pred_check
        _
      $region945: #{vocab_parallel_embedding.1} parent=488 // pred_check_branch
        %1249 = sbr.rel (0) target = $region947
      $region946: #{vocab_parallel_embedding.1} parent=488 // pred_region
        %s1251 = ssub.s32 2, 1
        loop: start=0, step=1, limit=1
        $region948: #{vocab_parallel_embedding.1} parent=946 // loop_pre_header
          _
        $region949: #{vocab_parallel_embedding.1} parent=946 // loop_header
          %s1253 = sphi 0, %s1257
          %p1254 = scmp.ge.s32.totalorder %s1253, 1
          %s1258 = sphi %s1242, %s1242
          %s1259 = sphi %s1244, %s1244
        $region950: #{vocab_parallel_embedding.1} parent=946 // loop_header_branch
          %1256 = sbr.rel (%p1254) target = $region954
        $region951: #{vocab_parallel_embedding.1} parent=946 // loop_body
          %v1260 = vld [vmem:[%s1258] sm:%s1251]
          %1261 = vst [vmem:[%s1259] sm:%s1251] %v1260
        $region952: #{vocab_parallel_embedding.1} parent=946 // loop_footer
          %s1257 = sadd.s32 1, %s1253
        $region953: #{vocab_parallel_embedding.1} parent=946 // loop_footer_branch
          %1252 = sbr.rel target = $region949
        $region954: #{vocab_parallel_embedding.1} parent=946 // loop_exit
          _
      $region947: #{vocab_parallel_embedding.1} parent=488 // pred_fallthru
        _
      // Predicated region
      $region966: #{vocab_parallel_embedding.1} parent=488 // pred_check
        _
      $region967: #{vocab_parallel_embedding.1} parent=488 // pred_check_branch
        %1278 = sbr.rel (0) target = $region969
      $region968: #{vocab_parallel_embedding.1} parent=488 // pred_region
        %1279 = vsyncadd %s1245, 16
      $region969: #{vocab_parallel_embedding.1} parent=488 // pred_fallthru
        _
    $region489: #{vocab_parallel_embedding.1} parent=1 // pred_fallthru
      _
    %s1280 = smul.u32 %s23, 16
    %s1281 = scalar_lea.sflag [#allocation3], %s1280
    %1283 = dma.done %s1281, 16
    %s1284 = sadd.s32 1, %s1280
    %s1285 = scalar_lea.sflag [#allocation3], %s1284
    %1287 = dma.done %s1285, 16
    %s1288 = sadd.s32 2, %s1280
    %s1289 = scalar_lea.sflag [#allocation3], %s1288
    %1291 = dma.done %s1289, 16
    %s1292 = sadd.s32 3, %s1280
    %s1293 = scalar_lea.sflag [#allocation3], %s1292
    %1295 = dma.done %s1293, 16
    %s1296 = sadd.s32 4, %s1280
    %s1297 = scalar_lea.sflag [#allocation3], %s1296
    %1299 = dma.done %s1297, 16
    %s1300 = sadd.s32 5, %s1280
    %s1301 = scalar_lea.sflag [#allocation3], %s1300
    %1303 = dma.done %s1301, 16
    %s1304 = sadd.s32 6, %s1280
    %s1305 = scalar_lea.sflag [#allocation3], %s1304
    %1307 = dma.done %s1305, 16
    %s1308 = sadd.s32 7, %s1280
    %s1309 = scalar_lea.sflag [#allocation3], %s1308
    %1311 = dma.done %s1309, 16
    %s1312 = sadd.s32 8, %s1280
    %s1313 = scalar_lea.sflag [#allocation3], %s1312
    %1315 = dma.done %s1313, 16
    %s1316 = sadd.s32 9, %s1280
    %s1317 = scalar_lea.sflag [#allocation3], %s1316
    %1319 = dma.done %s1317, 16
    %s1320 = sadd.s32 10, %s1280
    %s1321 = scalar_lea.sflag [#allocation3], %s1320
    %1323 = dma.done %s1321, 16
    %s1324 = sadd.s32 11, %s1280
    %s1325 = scalar_lea.sflag [#allocation3], %s1324
    %1327 = dma.done %s1325, 16
    %s1328 = sadd.s32 12, %s1280
    %s1329 = scalar_lea.sflag [#allocation3], %s1328
    %1331 = dma.done %s1329, 16
    %s1332 = sadd.s32 13, %s1280
    %s1333 = scalar_lea.sflag [#allocation3], %s1332
    %1335 = dma.done %s1333, 16
    %s1336 = sadd.s32 14, %s1280
    %s1337 = scalar_lea.sflag [#allocation3], %s1336
    %1339 = dma.done %s1337, 16
    %s1340 = sadd.s32 15, %s1280
    %s1341 = scalar_lea.sflag [#allocation3], %s1340
    %1343 = dma.done %s1341, 16
    %s1344 = scalar_lea.vmem [#allocation2], %s1280
    %v1345 = vld [vmem:[%s1344] sm:$0xff]
    %v1346 = vld [vmem:[%s1344 + $0x8] sm:$0xff]
    %1347 = vst [vmem:[#allocation6] sm:$0xff] %v1345
    %1348 = vst [vmem:[#allocation6 + $0x8] sm:$0xff] %v1346
    // Predicated region
    $region970: #{vocab_parallel_embedding.1} parent=1 // pred_check
      _
    $region971: #{vocab_parallel_embedding.1} parent=1 // pred_check_branch
      %1350 = sbr.rel (0) target = $region973
    $region972: #{vocab_parallel_embedding.1} parent=1 // pred_region
      %1352 = vsyncadd [#allocation7], 0
      %s1353 = sshll.u32 [#allocation6], 4
      %s1354 = int_to_ptr.vmem [resolvable:$true] %s1353
      %s1355 = sshll.u32 %s2, 4
      %s1356 = int_to_ptr.hbm [resolvable:$true] %s1355
      %1361 = dma.vmem_to_hbm [thread:$0]  %s1354, 256, %s1356, [#allocation7], 128, 128, 8
    $region973: #{vocab_parallel_embedding.1} parent=1 // pred_fallthru
      _
    // Predicated region
    $region974: #{vocab_parallel_embedding.1} parent=1 // pred_check
      _
    $region975: #{vocab_parallel_embedding.1} parent=1 // pred_check_branch
      %1363 = sbr.rel (0) target = $region977
    $region976: #{vocab_parallel_embedding.1} parent=1 // pred_region
      %1365 = dma.done [#allocation7], 256
    $region977: #{vocab_parallel_embedding.1} parent=1 // pred_fallthru
      _
    %1366 = vsyncpa [#allocation7], 1
  %1367 = vsyncmov [#allocation3]
  %s1368 = vpop.sfrf %1367
  %p1369 = scmp.eq.s32.totalorder %s1368, 0
  %p1370 = pneg %p1369
  %1372 = shalt.err (%p1370)
  %s1373 = scalar_lea.sflag [#allocation3], 1
  %1374 = vsyncmov %s1373
  %s1375 = vpop.sfrf %1374
  %p1376 = scmp.eq.s32.totalorder %s1375, 0
  %p1377 = pneg %p1376
  %1379 = shalt.err (%p1377)
  %s1380 = scalar_lea.sflag [#allocation3], 2
  %1381 = vsyncmov %s1380
  %s1382 = vpop.sfrf %1381
  %p1383 = scmp.eq.s32.totalorder %s1382, 0
  %p1384 = pneg %p1383
  %1386 = shalt.err (%p1384)
  %s1387 = scalar_lea.sflag [#allocation3], 3
  %1388 = vsyncmov %s1387
  %s1389 = vpop.sfrf %1388
  %p1390 = scmp.eq.s32.totalorder %s1389, 0
  %p1391 = pneg %p1390
  %1393 = shalt.err (%p1391)
  %s1394 = scalar_lea.sflag [#allocation3], 4
  %1395 = vsyncmov %s1394
  %s1396 = vpop.sfrf %1395
  %p1397 = scmp.eq.s32.totalorder %s1396, 0
  %p1398 = pneg %p1397
  %1400 = shalt.err (%p1398)
  %s1401 = scalar_lea.sflag [#allocation3], 5
  %1402 = vsyncmov %s1401
  %s1403 = vpop.sfrf %1402
  %p1404 = scmp.eq.s32.totalorder %s1403, 0
  %p1405 = pneg %p1404
  %1407 = shalt.err (%p1405)
  %s1408 = scalar_lea.sflag [#allocation3], 6
  %1409 = vsyncmov %s1408
  %s1410 = vpop.sfrf %1409
  %p1411 = scmp.eq.s32.totalorder %s1410, 0
  %p1412 = pneg %p1411
  %1414 = shalt.err (%p1412)
  %s1415 = scalar_lea.sflag [#allocation3], 7
  %1416 = vsyncmov %s1415
  %s1417 = vpop.sfrf %1416
  %p1418 = scmp.eq.s32.totalorder %s1417, 0
  %p1419 = pneg %p1418
  %1421 = shalt.err (%p1419)
  %s1422 = scalar_lea.sflag [#allocation3], 8
  %1423 = vsyncmov %s1422
  %s1424 = vpop.sfrf %1423
  %p1425 = scmp.eq.s32.totalorder %s1424, 0
  %p1426 = pneg %p1425
  %1428 = shalt.err (%p1426)
  %s1429 = scalar_lea.sflag [#allocation3], 9
  %1430 = vsyncmov %s1429
  %s1431 = vpop.sfrf %1430
  %p1432 = scmp.eq.s32.totalorder %s1431, 0
  %p1433 = pneg %p1432
  %1435 = shalt.err (%p1433)
  %s1436 = scalar_lea.sflag [#allocation3], 10
  %1437 = vsyncmov %s1436
  %s1438 = vpop.sfrf %1437
  %p1439 = scmp.eq.s32.totalorder %s1438, 0
  %p1440 = pneg %p1439
  %1442 = shalt.err (%p1440)
  %s1443 = scalar_lea.sflag [#allocation3], 11
  %1444 = vsyncmov %s1443
  %s1445 = vpop.sfrf %1444
  %p1446 = scmp.eq.s32.totalorder %s1445, 0
  %p1447 = pneg %p1446
  %1449 = shalt.err (%p1447)
  %s1450 = scalar_lea.sflag [#allocation3], 12
  %1451 = vsyncmov %s1450
  %s1452 = vpop.sfrf %1451
  %p1453 = scmp.eq.s32.totalorder %s1452, 0
  %p1454 = pneg %p1453
  %1456 = shalt.err (%p1454)
  %s1457 = scalar_lea.sflag [#allocation3], 13
  %1458 = vsyncmov %s1457
  %s1459 = vpop.sfrf %1458
  %p1460 = scmp.eq.s32.totalorder %s1459, 0
  %p1461 = pneg %p1460
  %1463 = shalt.err (%p1461)
  %s1464 = scalar_lea.sflag [#allocation3], 14
  %1465 = vsyncmov %s1464
  %s1466 = vpop.sfrf %1465
  %p1467 = scmp.eq.s32.totalorder %s1466, 0
  %p1468 = pneg %p1467
  %1470 = shalt.err (%p1468)
  %s1471 = scalar_lea.sflag [#allocation3], 15
  %1472 = vsyncmov %s1471
  %s1473 = vpop.sfrf %1472
  %p1474 = scmp.eq.s32.totalorder %s1473, 0
  %p1475 = pneg %p1474
  %1477 = shalt.err (%p1475)
  %s1478 = scalar_lea.sflag [#allocation3], 16
  %1479 = vsyncmov %s1478
  %s1480 = vpop.sfrf %1479
  %p1481 = scmp.eq.s32.totalorder %s1480, 0
  %p1482 = pneg %p1481
  %1484 = shalt.err (%p1482)
  %s1485 = scalar_lea.sflag [#allocation3], 17
  %1486 = vsyncmov %s1485
  %s1487 = vpop.sfrf %1486
  %p1488 = scmp.eq.s32.totalorder %s1487, 0
  %p1489 = pneg %p1488
  %1491 = shalt.err (%p1489)
  %s1492 = scalar_lea.sflag [#allocation3], 18
  %1493 = vsyncmov %s1492
  %s1494 = vpop.sfrf %1493
  %p1495 = scmp.eq.s32.totalorder %s1494, 0
  %p1496 = pneg %p1495
  %1498 = shalt.err (%p1496)
  %s1499 = scalar_lea.sflag [#allocation3], 19
  %1500 = vsyncmov %s1499
  %s1501 = vpop.sfrf %1500
  %p1502 = scmp.eq.s32.totalorder %s1501, 0
  %p1503 = pneg %p1502
  %1505 = shalt.err (%p1503)
  %s1506 = scalar_lea.sflag [#allocation3], 20
  %1507 = vsyncmov %s1506
  %s1508 = vpop.sfrf %1507
  %p1509 = scmp.eq.s32.totalorder %s1508, 0
  %p1510 = pneg %p1509
  %1512 = shalt.err (%p1510)
  %s1513 = scalar_lea.sflag [#allocation3], 21
  %1514 = vsyncmov %s1513
  %s1515 = vpop.sfrf %1514
  %p1516 = scmp.eq.s32.totalorder %s1515, 0
  %p1517 = pneg %p1516
  %1519 = shalt.err (%p1517)
  %s1520 = scalar_lea.sflag [#allocation3], 22
  %1521 = vsyncmov %s1520
  %s1522 = vpop.sfrf %1521
  %p1523 = scmp.eq.s32.totalorder %s1522, 0
  %p1524 = pneg %p1523
  %1526 = shalt.err (%p1524)
  %s1527 = scalar_lea.sflag [#allocation3], 23
  %1528 = vsyncmov %s1527
  %s1529 = vpop.sfrf %1528
  %p1530 = scmp.eq.s32.totalorder %s1529, 0
  %p1531 = pneg %p1530
  %1533 = shalt.err (%p1531)
  %s1534 = scalar_lea.sflag [#allocation3], 24
  %1535 = vsyncmov %s1534
  %s1536 = vpop.sfrf %1535
  %p1537 = scmp.eq.s32.totalorder %s1536, 0
  %p1538 = pneg %p1537
  %1540 = shalt.err (%p1538)
  %s1541 = scalar_lea.sflag [#allocation3], 25
  %1542 = vsyncmov %s1541
  %s1543 = vpop.sfrf %1542
  %p1544 = scmp.eq.s32.totalorder %s1543, 0
  %p1545 = pneg %p1544
  %1547 = shalt.err (%p1545)
  %s1548 = scalar_lea.sflag [#allocation3], 26
  %1549 = vsyncmov %s1548
  %s1550 = vpop.sfrf %1549
  %p1551 = scmp.eq.s32.totalorder %s1550, 0
  %p1552 = pneg %p1551
  %1554 = shalt.err (%p1552)
  %s1555 = scalar_lea.sflag [#allocation3], 27
  %1556 = vsyncmov %s1555
  %s1557 = vpop.sfrf %1556
  %p1558 = scmp.eq.s32.totalorder %s1557, 0
  %p1559 = pneg %p1558
  %1561 = shalt.err (%p1559)
  %s1562 = scalar_lea.sflag [#allocation3], 28
  %1563 = vsyncmov %s1562
  %s1564 = vpop.sfrf %1563
  %p1565 = scmp.eq.s32.totalorder %s1564, 0
  %p1566 = pneg %p1565
  %1568 = shalt.err (%p1566)
  %s1569 = scalar_lea.sflag [#allocation3], 29
  %1570 = vsyncmov %s1569
  %s1571 = vpop.sfrf %1570
  %p1572 = scmp.eq.s32.totalorder %s1571, 0
  %p1573 = pneg %p1572
  %1575 = shalt.err (%p1573)
  %s1576 = scalar_lea.sflag [#allocation3], 30
  %1577 = vsyncmov %s1576
  %s1578 = vpop.sfrf %1577
  %p1579 = scmp.eq.s32.totalorder %s1578, 0
  %p1580 = pneg %p1579
  %1582 = shalt.err (%p1580)
  %s1583 = scalar_lea.sflag [#allocation3], 31
  %1584 = vsyncmov %s1583
  %s1585 = vpop.sfrf %1584
  %p1586 = scmp.eq.s32.totalorder %s1585, 0
  %p1587 = pneg %p1586
  %1589 = shalt.err (%p1587)

</llo_original>
